<compile_context>
chip_gen: v7x
topology: tpu7x:2x2x1
jax: 0.10.0
libtpu: 0.0.40
codegen_flags: <defaults>
</compile_context>

<pallas_src>
import functools

import jax
import jax.numpy as jnp
from jax.experimental import pallas as pl
from jax.experimental.pallas import tpu as pltpu

LN_EPS = 1e-6  # DINO ViT uses nn.LayerNorm(eps=1e-6)


def _vmem_spec():
    return pl.BlockSpec(memory_space=pltpu.MemorySpace.VMEM)


def _layernorm(x, g, b, eps=LN_EPS):
    mu = jnp.mean(x, axis=-1, keepdims=True)
    var = jnp.mean(jnp.square(x - mu), axis=-1, keepdims=True)
    return (x - mu) * jax.lax.rsqrt(var + eps) * g + b


def _gelu_exact(x):
    # nn.GELU() default = exact erf formulation
    return 0.5 * x * (1.0 + jax.lax.erf(x * (1.0 / jnp.sqrt(2.0).astype(x.dtype))))


# ---------------------------------------------------------------------------
# Kernel 1: generic  (rows, K)bf16 @ (K, N)bf16 + bias  -> f32
#   used for patch-embed projection (conv k=P, stride=P == matmul on patches)
#   and for the linear classification head (N padded to a multiple of 128 lanes)
# ---------------------------------------------------------------------------
def _matmul_bias_kernel(x_ref, w_ref, b_ref, o_ref):
    o_ref[...] = (
        jnp.dot(x_ref[...].astype(jnp.bfloat16), w_ref[...],
                preferred_element_type=jnp.float32)
        + b_ref[...]
    )


def matmul_bias(x, w, b):
    # x: (rows, K), w: (K, N) bf16, b: (1, N) f32  ->  (rows, N) f32
    return pl.pallas_call(
        _matmul_bias_kernel,
        out_shape=jax.ShapeDtypeStruct((x.shape[0], w.shape[1]), jnp.float32),
        in_specs=[_vmem_spec()] * 3,
        out_specs=_vmem_spec(),
    )(x, w, b)


# ---------------------------------------------------------------------------
# Kernel 2: fused transformer stack
#   grid = (batch_tiles, depth)   depth = innermost ("arbitrary") axis
#   per-layer weights are stacked on a leading depth axis and streamed /
#   double-buffered by BlockSpec; the token tensor lives in a VMEM scratch that
#   persists across the depth sweep; per-layer output = final-LN CLS row.
# ---------------------------------------------------------------------------
def _vit_stack_kernel(
    x_in_ref,                              # (Bt, T, D)   f32
    ln1_g_ref, ln1_b_ref,                  # (1, 1, D)    f32
    w_qkv_ref, b_qkv_ref,                  # (1, D, 3D) bf16, (1, 1, 3D) f32
    w_o_ref, b_o_ref,                      # (1, D, D)  bf16, (1, 1, D)  f32
    ln2_g_ref, ln2_b_ref,                  # (1, 1, D)    f32
    w1_ref, b1_ref,                        # (1, D, H)  bf16, (1, 1, H)  f32
    w2_ref, b2_ref,                        # (1, H, D)  bf16, (1, 1, D)  f32
    norm_g_ref, norm_b_ref,                # (1, D)       f32  (final norm)
    cls_ref,                               # out: (1, Bt, D) f32
    x_scr,                                 # scratch: (Bt, T, D) f32 (persists over depth)
    *, num_heads,
):
    layer = pl.program_id(1)

    @pl.when(layer == 0)
    def _():
        x_scr[...] = x_in_ref[...]

    x = x_scr[...]                         # (Bt, T, D) f32
    Bt, _, D = x.shape
    dh = D // num_heads
    scale = float(dh) ** -0.5
    bf16 = jnp.bfloat16

    # ---- attention branch (pre-LN, fused QKV) ----
    xn = _layernorm(x, ln1_g_ref[0], ln1_b_ref[0])
    qkv = jnp.einsum("btd,de->bte", xn.astype(bf16), w_qkv_ref[0],
                     preferred_element_type=jnp.float32) + b_qkv_ref[0]   # (Bt,T,3D) f32
    qkv_b = qkv.astype(bf16)

    def stack_heads(base):
        # (Bt, T, D) lane-range -> (num_heads*Bt, T, dh): heads become part of the
        # einsum batch dim so ALL heads run as one batched MXU matmul (no per-head
        # matmul unrolling, no 4-D transpose needed).
        return jnp.concatenate(
            [qkv_b[:, :, base + h * dh: base + (h + 1) * dh]
             for h in range(num_heads)],
            axis=0,
        )

    qh = stack_heads(0)
    kh = stack_heads(D)
    vh = stack_heads(2 * D)

    s = jnp.einsum("bqd,bkd->bqk", qh, kh,
                   preferred_element_type=jnp.float32) * scale            # (nh*Bt,T,T)
    s = s - jnp.max(s, axis=-1, keepdims=True)                            # shift-invariant
    p = jnp.exp(s)
    p = p * pl.reciprocal(jnp.sum(p, axis=-1, keepdims=True), approx=True)
    ctx = jnp.einsum("bqk,bkd->bqd", p.astype(bf16), vh,
                     preferred_element_type=jnp.float32)                  # (nh*Bt,T,dh)
    ctx = jnp.concatenate(
        [ctx[h * Bt:(h + 1) * Bt] for h in range(num_heads)], axis=-1)    # (Bt,T,D)

    attn = jnp.einsum("btd,de->bte", ctx.astype(bf16), w_o_ref[0],
                      preferred_element_type=jnp.float32) + b_o_ref[0]
    x = x + attn                                      # drop_path = identity (eval)

    # ---- MLP branch ----
    xn2 = _layernorm(x, ln2_g_ref[0], ln2_b_ref[0])
    h1 = jnp.einsum("btd,dh->bth", xn2.astype(bf16), w1_ref[0],
                    preferred_element_type=jnp.float32) + b1_ref[0]
    h1 = _gelu_exact(h1)
    mlp = jnp.einsum("bth,hd->btd", h1.astype(bf16), w2_ref[0],
                     preferred_element_type=jnp.float32) + b2_ref[0]
    x = x + mlp

    x_scr[...] = x

    # final LayerNorm applied to the CLS token only (get_intermediate_layers + [:,0]);
    # the glue slices the last `extract_last_n` layers out of the (depth, B, D) output.
    cls_ref[...] = _layernorm(x[:, 0, :], norm_g_ref[...], norm_b_ref[...])[None]


def _pick_batch_tile(B):
    # The CLS output block is (1, batch_tile, D): its second-minor dim must be a
    # multiple of 8 or equal to the full batch (the (8,128) rule). Use 8-wide tiles
    # when possible so the "parallel" batch axis can shard across v7x's 2 cores.
    if B % 16 == 0:
        return 8
    return B


def _block_vmem_limit_bytes(bt, T, D, Hm, nh):
    f32, bf16 = 4, 2
    w_layer = (3 * D * D + D * D + D * Hm + Hm * D) * bf16           # matmul weights
    w_layer += (3 * D + D + Hm + D + 4 * D + 2 * D) * f32            # biases + LN params
    acts = bt * T * (D + 3 * D + D + Hm + D) * f32                   # x, qkv, ctx, h1, mlp
    acts += 2 * nh * bt * T * T * f32                                # scores + probs
    est = 2 * w_layer + 2 * acts + 2 * bt * T * D * f32 + (4 << 20)  # dbl-buffer + headroom
    return int(min(max(est, 32 << 20), 64 << 20))                    # stay within v7x VMEM


def vit_blocks(x, pk, *, num_heads):
    B, T, D = x.shape
    depth = pk["w_qkv"].shape[0]
    Hm = pk["w1"].shape[2]
    bt = _pick_batch_tile(B)
    nb = B // bt

    wmap = lambda b, l: (l, 0, 0)      # per-layer stacked weights
    nmap = lambda b, l: (0, 0)         # final norm params (shared)

    in_specs = [
        pl.BlockSpec((bt, T, D), lambda b, l: (b, 0, 0)),            # x (input tokens)
        pl.BlockSpec((1, 1, D), wmap), pl.BlockSpec((1, 1, D), wmap),        # ln1 g,b
        pl.BlockSpec((1, D, 3 * D), wmap), pl.BlockSpec((1, 1, 3 * D), wmap),  # qkv
        pl.BlockSpec((1, D, D), wmap), pl.BlockSpec((1, 1, D), wmap),          # proj
        pl.BlockSpec((1, 1, D), wmap), pl.BlockSpec((1, 1, D), wmap),        # ln2 g,b
        pl.BlockSpec((1, D, Hm), wmap), pl.BlockSpec((1, 1, Hm), wmap),        # mlp fc1
        pl.BlockSpec((1, Hm, D), wmap), pl.BlockSpec((1, 1, D), wmap),         # mlp fc2
        pl.BlockSpec((1, D), nmap), pl.BlockSpec((1, D), nmap),              # final norm
    ]
    grid_spec = pltpu.PrefetchScalarGridSpec(
        num_scalar_prefetch=0,
        grid=(nb, depth),
        in_specs=in_specs,
        out_specs=pl.BlockSpec((1, bt, D), lambda b, l: (l, b, 0)),
        scratch_shapes=[pltpu.VMEM((bt, T, D), jnp.float32)],
    )
    cls_all = pl.pallas_call(
        functools.partial(_vit_stack_kernel, num_heads=num_heads),
        grid_spec=grid_spec,
        out_shape=jax.ShapeDtypeStruct((depth, B, D), jnp.float32),
        compiler_params=pltpu.CompilerParams(
            dimension_semantics=("parallel", "arbitrary"),
            vmem_limit_bytes=_block_vmem_limit_bytes(bt, T, D, Hm, num_heads),
        ),
    )(x,
      pk["ln1_g"], pk["ln1_b"],
      pk["w_qkv"], pk["b_qkv"],
      pk["w_o"], pk["b_o"],
      pk["ln2_g"], pk["ln2_b"],
      pk["w1"], pk["b1"],
      pk["w2"], pk["b2"],
      pk["norm_g"], pk["norm_b"])
    return cls_all                      # (depth, B, D)


# ---------------------------------------------------------------------------
# Full forward (glue in JAX, hot paths in Pallas)
# ---------------------------------------------------------------------------
def dino_linear_eval_forward(img, pk, *, patch_size, num_heads, extract_last_n,
                             num_classes):
    B, C, H, W = img.shape
    P = patch_size
    nh_, nw_ = H // P, W // P
    D = pk["patch_b"].shape[1]

    # patch extraction (NCHW -> (B*Np, C*P*P); (C,ph,pw) flattening matches conv weight)
    patches = img.reshape(B, C, nh_, P, nw_, P)
    patches = patches.transpose(0, 2, 4, 1, 3, 5).reshape(B * nh_ * nw_, C * P * P)
    tok = matmul_bias(patches.astype(jnp.bfloat16), pk["patch_w"], pk["patch_b"])
    tok = tok.reshape(B, nh_ * nw_, D)

    # prepend CLS token and add positional embedding
    cls_tok = jnp.broadcast_to(pk["cls_token"], (B, 1, D))
    x = jnp.concatenate([cls_tok, tok], axis=1) + pk["pos_embed"]    # (B, T, D) f32

    # full transformer stack in one pipelined pallas_call
    cls_all = vit_blocks(x, pk, num_heads=num_heads)                 # (depth, B, D)
    depth = cls_all.shape[0]

    sel = cls_all[depth - extract_last_n:]                           # (N, B, D), layer order
    feat = jnp.transpose(sel, (1, 0, 2)).reshape(B, extract_last_n * D)
    feat_4d = feat[:, :, None, None]                                 # forward_backbone output

    logits_pad = matmul_bias(feat.astype(jnp.bfloat16), pk["head_w"], pk["head_b"])
    logits = logits_pad[:, :num_classes]
    return feat_4d, logits


# ---------------------------------------------------------------------------
# Deterministic synthetic parameter init (PyTorch layout) + one-time packing
# ---------------------------------------------------------------------------
def init_params(key, *, C, P, D, depth, hidden, num_patches, num_classes,
                extract_last_n):
    def w(k, shape):
        return (0.02 * jax.random.normal(k, shape)).astype(jnp.float32)

    keys = jax.random.split(key, 4 + depth)
    params = dict(
        patch_embed_w=w(keys[0], (D, C, P, P)),
        patch_embed_b=jnp.zeros((D,), jnp.float32),
        cls_token=w(keys[1], (1, 1, D)),
        pos_embed=w(keys[2], (1, num_patches + 1, D)),
        norm_g=jnp.ones((D,), jnp.float32),
        norm_b=jnp.zeros((D,), jnp.float32),
        head_w=w(keys[3], (num_classes, extract_last_n * D)),
        head_b=jnp.zeros((num_classes,), jnp.float32),
        blocks=[],
    )
    for i in range(depth):
        ks = jax.random.split(keys[4 + i], 6)
        params["blocks"].append(dict(
            ln1_g=jnp.ones((D,), jnp.float32), ln1_b=jnp.zeros((D,), jnp.float32),
            wq=w(ks[0], (D, D)), bq=jnp.zeros((D,), jnp.float32),
            wk=w(ks[1], (D, D)), bk=jnp.zeros((D,), jnp.float32),
            wv=w(ks[2], (D, D)), bv=jnp.zeros((D,), jnp.float32),
            wo=w(ks[3], (D, D)), bo=jnp.zeros((D,), jnp.float32),
            ln2_g=jnp.ones((D,), jnp.float32), ln2_b=jnp.zeros((D,), jnp.float32),
            w1=w(ks[4], (hidden, D)), b1=jnp.zeros((hidden,), jnp.float32),
            w2=w(ks[5], (D, hidden)), b2=jnp.zeros((D,), jnp.float32),
        ))
    return params


def pack_params(p):
    """One-time repacking of the frozen backbone: transpose/stack weights on a
    leading depth axis, fuse qkv, cast matmul weights to bf16, pad head classes."""
    bf = jnp.bfloat16
    blocks = p["blocks"]
    D = p["patch_embed_b"].shape[0]

    def stk(key):  # per-layer 1-D params -> (depth, 1, X) f32
        return jnp.stack([b[key][None, :] for b in blocks], axis=0)

    packed = {
        "patch_w": p["patch_embed_w"].reshape(D, -1).T.astype(bf),     # (C*P*P, D)
        "patch_b": p["patch_embed_b"][None, :],                        # (1, D) f32
        "cls_token": p["cls_token"],
        "pos_embed": p["pos_embed"],
        "ln1_g": stk("ln1_g"), "ln1_b": stk("ln1_b"),
        "w_qkv": jnp.stack(
            [jnp.concatenate([b["wq"].T, b["wk"].T, b["wv"].T], axis=1)
             for b in blocks], axis=0).astype(bf),                     # (depth, D, 3D)
        "b_qkv": jnp.stack(
            [jnp.concatenate([b["bq"], b["bk"], b["bv"]], axis=0)[None, :]
             for b in blocks], axis=0),                                # (depth, 1, 3D)
        "w_o": jnp.stack([b["wo"].T for b in blocks], axis=0).astype(bf),
        "b_o": stk("bo"),
        "ln2_g": stk("ln2_g"), "ln2_b": stk("ln2_b"),
        "w1": jnp.stack([b["w1"].T for b in blocks], axis=0).astype(bf),   # (depth, D, H)
        "b1": stk("b1"),
        "w2": jnp.stack([b["w2"].T for b in blocks], axis=0).astype(bf),   # (depth, H, D)
        "b2": stk("b2"),
        "norm_g": p["norm_g"][None, :], "norm_b": p["norm_b"][None, :],
    }
    # head: pad class dim up to a multiple of 128 lanes (lane-dense stores)
    ncls = p["head_w"].shape[0]
    ncls_pad = -(-ncls // 128) * 128
    hw = jnp.pad(p["head_w"].T, ((0, 0), (0, ncls_pad - ncls)))
    hb = jnp.pad(p["head_b"], (0, ncls_pad - ncls))
    packed["head_w"] = hw.astype(bf)
    packed["head_b"] = hb[None, :]
    return packed


# ---------------------------------------------------------------------------
# Pure-JAX f32 reference (PyTorch semantics) for tolerance checking
# ---------------------------------------------------------------------------
def reference_forward(img, params, *, patch_size, num_heads, extract_last_n):
    B, C, H, W = img.shape
    P = patch_size
    nh_, nw_ = H // P, W // P
    D = params["patch_embed_b"].shape[0]
    patches = img.reshape(B, C, nh_, P, nw_, P).transpose(0, 2, 4, 1, 3, 5)
    patches = patches.reshape(B * nh_ * nw_, C * P * P)
    tok = patches @ params["patch_embed_w"].reshape(D, -1).T + params["patch_embed_b"]
    tok = tok.reshape(B, nh_ * nw_, D)
    x = jnp.concatenate(
        [jnp.broadcast_to(params["cls_token"], (B, 1, D)), tok], axis=1
    ) + params["pos_embed"]

    depth = len(params["blocks"])
    dh = D // num_heads
    feats = []
    for i, blk in enumerate(params["blocks"]):
        xn = _layernorm(x, blk["ln1_g"], blk["ln1_b"])
        q = xn @ blk["wq"].T + blk["bq"]
        k = xn @ blk["wk"].T + blk["bk"]
        v = xn @ blk["wv"].T + blk["bv"]

        def heads(t):
            return t.reshape(B, -1, num_heads, dh).transpose(0, 2, 1, 3)

        qh, kh, vh = heads(q), heads(k), heads(v)
        s = (qh @ jnp.swapaxes(kh, -1, -2)) * (dh ** -0.5)
        p = jax.nn.softmax(s, axis=-1)
        ctx = (p @ vh).transpose(0, 2, 1, 3).reshape(B, -1, D)
        x = x + ctx @ blk["wo"].T + blk["bo"]
        xn2 = _layernorm(x, blk["ln2_g"], blk["ln2_b"])
        h1 = jax.nn.gelu(xn2 @ blk["w1"].T + blk["b1"], approximate=False)
        x = x + h1 @ blk["w2"].T + blk["b2"]
        if i >= depth - extract_last_n:
            feats.append(_layernorm(x, params["norm_g"], params["norm_b"])[:, 0])
    feat = jnp.concatenate(feats, axis=-1)
    logits = feat @ params["head_w"].T + params["head_b"]
    return feat[:, :, None, None], logits


if __name__ == "__main__":
    B, C, H, W = 2, 3, 16, 16
    P = 8                       # patch_size
    D = 32                      # embed_dim
    NUM_HEADS = 4
    DEPTH = 4
    EXTRACT_LAST_N = 4
    HIDDEN = 4 * D              # mlp_ratio = 4
    NUM_CLASSES = 10
    NUM_PATCHES = (H // P) * (W // P)

    key = jax.random.PRNGKey(0)
    k_params, k_img = jax.random.split(key)
    params = init_params(
        k_params, C=C, P=P, D=D, depth=DEPTH, hidden=HIDDEN,
        num_patches=NUM_PATCHES, num_classes=NUM_CLASSES,
        extract_last_n=EXTRACT_LAST_N,
    )
    img = jax.random.normal(k_img, (B, C, H, W), jnp.float32)

    packed = pack_params(params)   # one-time (backbone is frozen)

    fwd = jax.jit(functools.partial(
        dino_linear_eval_forward, patch_size=P, num_heads=NUM_HEADS,
        extract_last_n=EXTRACT_LAST_N, num_classes=NUM_CLASSES))
    feat, logits = fwd(img, packed)
    jax.block_until_ready((feat, logits))

    ref_feat, ref_logits = reference_forward(
        img, params, patch_size=P, num_heads=NUM_HEADS,
        extract_last_n=EXTRACT_LAST_N)

    assert feat.shape == (B, EXTRACT_LAST_N * D, 1, 1)
    assert logits.shape == (B, NUM_CLASSES)
    assert bool(jnp.all(jnp.isfinite(feat))) and bool(jnp.all(jnp.isfinite(logits)))
    # bf16 MXU inputs + approx reciprocal -> loose tolerance vs f32 reference
    assert bool(jnp.allclose(feat[:, :, 0, 0], ref_feat[:, :, 0, 0],
                             atol=1e-1, rtol=1e-1))
    assert bool(jnp.allclose(logits, ref_logits, atol=1e-1, rtol=1e-1))
    print("KERNEL_OK")
</pallas_src>

<mosaic_0001>
module attributes {stable_mosaic.version = 11 : i64} {
  func.func @_matmul_bias_kernel(%arg0: memref<8x192xbf16, #tpu.memory_space<vmem>>, %arg1: memref<192x32xbf16, #tpu.memory_space<vmem>>, %arg2: memref<1x32xf32, #tpu.memory_space<vmem>>, %arg3: memref<8x32xf32, #tpu.memory_space<vmem>>) attributes {dimension_semantics = [], scalar_prefetch = 0 : i64, scratch_operands = 0 : i64, tpu.core_type = #tpu.core_type<tc>} {
    %c0 = arith.constant 0 : index
    %c0_0 = arith.constant 0 : index
    %0 = vector.load %arg0[%c0, %c0_0] : memref<8x192xbf16, #tpu.memory_space<vmem>>, vector<8x192xbf16>
    %c0_1 = arith.constant 0 : index
    %c0_2 = arith.constant 0 : index
    %1 = vector.load %arg1[%c0_1, %c0_2] : memref<192x32xbf16, #tpu.memory_space<vmem>>, vector<192x32xbf16>
    %cst = arith.constant dense<0.000000e+00> : vector<8x32xf32>
    %2 = tpu.matmul %0, %1, %cst {dimension_numbers = #tpu.dot_dimension_numbers<[1], [0], [0], [1], [0, 0, 1, 1], [], []>} : vector<8x192xbf16>, vector<192x32xbf16>, vector<8x32xf32> -> vector<8x32xf32>
    %c0_3 = arith.constant 0 : index
    %c0_4 = arith.constant 0 : index
    %3 = vector.load %arg2[%c0_3, %c0_4] : memref<1x32xf32, #tpu.memory_space<vmem>>, vector<1x32xf32>
    %4 = vector.broadcast %3 : vector<1x32xf32> to vector<8x32xf32>
    %5 = arith.addf %2, %4 : vector<8x32xf32>
    %c0_5 = arith.constant 0 : index
    %c0_6 = arith.constant 0 : index
    %6 = vector.load %arg3[%c0_5, %c0_6] : memref<8x32xf32, #tpu.memory_space<vmem>>, vector<8x32xf32>
    tpu.vector_store %arg3[%c0_5, %c0_6], %5 {strides = array<i32>} : memref<8x32xf32, #tpu.memory_space<vmem>>, vector<8x32xf32>,
    return
  }
}

module attributes {stable_mosaic.version = 11 : i64} {
  func.func @_vit_stack_kernel(%arg0: i32, %arg1: i32, %arg2: memref<2x5x32xf32, #tpu.memory_space<vmem>>, %arg3: memref<1x1x32xf32, #tpu.memory_space<vmem>>, %arg4: memref<1x1x32xf32, #tpu.memory_space<vmem>>, %arg5: memref<1x32x96xbf16, #tpu.memory_space<vmem>>, %arg6: memref<1x1x96xf32, #tpu.memory_space<vmem>>, %arg7: memref<1x32x32xbf16, #tpu.memory_space<vmem>>, %arg8: memref<1x1x32xf32, #tpu.memory_space<vmem>>, %arg9: memref<1x1x32xf32, #tpu.memory_space<vmem>>, %arg10: memref<1x1x32xf32, #tpu.memory_space<vmem>>, %arg11: memref<1x32x128xbf16, #tpu.memory_space<vmem>>, %arg12: memref<1x1x128xf32, #tpu.memory_space<vmem>>, %arg13: memref<1x128x32xbf16, #tpu.memory_space<vmem>>, %arg14: memref<1x1x32xf32, #tpu.memory_space<vmem>>, %arg15: memref<1x32xf32, #tpu.memory_space<vmem>>, %arg16: memref<1x32xf32, #tpu.memory_space<vmem>>, %arg17: memref<1x2x32xf32, #tpu.memory_space<vmem>>, %arg18: memref<2x5x32xf32, #tpu.memory_space<vmem>>) attributes {dimension_semantics = [#tpu.dimension_semantics<parallel>, #tpu.dimension_semantics<arbitrary>], iteration_bounds = array<i64: 1, 4>, scalar_prefetch = 0 : i64, scratch_operands = 1 : i64, tpu.core_type = #tpu.core_type<tc>, window_params = [{transform_indices = @transform_0, window_bounds = array<i64: 2, 5, 32>}, {transform_indices = @transform_1, window_bounds = array<i64: 1, 1, 32>}, {transform_indices = @transform_2, window_bounds = array<i64: 1, 1, 32>}, {transform_indices = @transform_3, window_bounds = array<i64: 1, 32, 96>}, {transform_indices = @transform_4, window_bounds = array<i64: 1, 1, 96>}, {transform_indices = @transform_5, window_bounds = array<i64: 1, 32, 32>}, {transform_indices = @transform_6, window_bounds = array<i64: 1, 1, 32>}, {transform_indices = @transform_7, window_bounds = array<i64: 1, 1, 32>}, {transform_indices = @transform_8, window_bounds = array<i64: 1, 1, 32>}, {transform_indices = @transform_9, window_bounds = array<i64: 1, 32, 128>}, {transform_indices = @transform_10, window_bounds = array<i64: 1, 1, 128>}, {transform_indices = @transform_11, window_bounds = array<i64: 1, 128, 32>}, {transform_indices = @transform_12, window_bounds = array<i64: 1, 1, 32>}, {pipeline_mode = #tpu.pipeline_mode<synchronous>, transform_indices = @transform_13, window_bounds = array<i64: 1, 32>}, {pipeline_mode = #tpu.pipeline_mode<synchronous>, transform_indices = @transform_14, window_bounds = array<i64: 1, 32>}, {transform_indices = @transform_15, window_bounds = array<i64: 1, 2, 32>}]} {
    %c0_i32 = arith.constant 0 : i32
    %0 = arith.cmpi eq, %arg1, %c0_i32 : i32
    %1 = arith.extui %0 : i1 to i32
    %c0_i32_0 = arith.constant 0 : i32
    %2 = arith.cmpi ne, %1, %c0_i32_0 : i32
    scf.if %2 {
      %c0_76 = arith.constant 0 : index
      %c0_77 = arith.constant 0 : index
      %c0_78 = arith.constant 0 : index
      %173 = vector.load %arg2[%c0_76, %c0_77, %c0_78] : memref<2x5x32xf32, #tpu.memory_space<vmem>>, vector<2x5x32xf32>
      %c0_79 = arith.constant 0 : index
      %c0_80 = arith.constant 0 : index
      %c0_81 = arith.constant 0 : index
      %174 = vector.load %arg18[%c0_79, %c0_80, %c0_81] : memref<2x5x32xf32, #tpu.memory_space<vmem>>, vector<2x5x32xf32>
      tpu.vector_store %arg18[%c0_79, %c0_80, %c0_81], %173 {strides = array<i32>} : memref<2x5x32xf32, #tpu.memory_space<vmem>>, vector<2x5x32xf32>,
    } else {
    }
    %c0 = arith.constant 0 : index
    %c0_1 = arith.constant 0 : index
    %c0_2 = arith.constant 0 : index
    %3 = vector.load %arg18[%c0, %c0_1, %c0_2] : memref<2x5x32xf32, #tpu.memory_space<vmem>>, vector<2x5x32xf32>
    %c0_3 = arith.constant 0 : index
    %c0_4 = arith.constant 0 : index
    %c0_5 = arith.constant 0 : index
    %4 = vector.load %arg3[%c0_3, %c0_4, %c0_5] : memref<1x1x32xf32, #tpu.memory_space<vmem>>, vector<1x1x32xf32>
    %5 = vector.shape_cast %4 : vector<1x1x32xf32> to vector<1x32xf32>
    %c0_6 = arith.constant 0 : index
    %c0_7 = arith.constant 0 : index
    %c0_8 = arith.constant 0 : index
    %6 = vector.load %arg4[%c0_6, %c0_7, %c0_8] : memref<1x1x32xf32, #tpu.memory_space<vmem>>, vector<1x1x32xf32>
    %7 = vector.shape_cast %6 : vector<1x1x32xf32> to vector<1x32xf32>
    %cst = arith.constant dense<0.000000e+00> : vector<2x5xf32>
    %8 = vector.multi_reduction <add>, %3, %cst [2] : vector<2x5x32xf32> to vector<2x5xf32>
    %9 = vector.shape_cast %8 : vector<2x5xf32> to vector<2x5x1xf32>
    %cst_9 = arith.constant 3.200000e+01 : f32
    %10 = vector.broadcast %cst_9 : f32 to vector<2x5x1xf32>
    %11 = arith.divf %9, %10 : vector<2x5x1xf32>
    %12 = vector.broadcast %11 : vector<2x5x1xf32> to vector<2x5x32xf32>
    %13 = arith.subf %3, %12 : vector<2x5x32xf32>
    %14 = arith.mulf %13, %13 : vector<2x5x32xf32>
    %cst_10 = arith.constant dense<0.000000e+00> : vector<2x5xf32>
    %15 = vector.multi_reduction <add>, %14, %cst_10 [2] : vector<2x5x32xf32> to vector<2x5xf32>
    %16 = vector.shape_cast %15 : vector<2x5xf32> to vector<2x5x1xf32>
    %cst_11 = arith.constant 3.200000e+01 : f32
    %17 = vector.broadcast %cst_11 : f32 to vector<2x5x1xf32>
    %18 = arith.divf %16, %17 : vector<2x5x1xf32>
    %19 = vector.broadcast %11 : vector<2x5x1xf32> to vector<2x5x32xf32>
    %20 = arith.subf %3, %19 : vector<2x5x32xf32>
    %cst_12 = arith.constant 9.99999997E-7 : f32
    %21 = vector.broadcast %cst_12 : f32 to vector<2x5x1xf32>
    %22 = arith.addf %18, %21 : vector<2x5x1xf32>
    %23 = math.rsqrt %22 : vector<2x5x1xf32>
    %24 = vector.broadcast %23 : vector<2x5x1xf32> to vector<2x5x32xf32>
    %25 = arith.mulf %20, %24 : vector<2x5x32xf32>
    %26 = vector.shape_cast %5 : vector<1x32xf32> to vector<1x1x32xf32>
    %27 = vector.broadcast %26 : vector<1x1x32xf32> to vector<2x5x32xf32>
    %28 = arith.mulf %25, %27 : vector<2x5x32xf32>
    %29 = vector.shape_cast %7 : vector<1x32xf32> to vector<1x1x32xf32>
    %30 = vector.broadcast %29 : vector<1x1x32xf32> to vector<2x5x32xf32>
    %31 = arith.addf %28, %30 : vector<2x5x32xf32>
    %32 = arith.truncf %31 : vector<2x5x32xf32> to vector<2x5x32xbf16>
    %c0_13 = arith.constant 0 : index
    %c0_14 = arith.constant 0 : index
    %c0_15 = arith.constant 0 : index
    %33 = vector.load %arg5[%c0_13, %c0_14, %c0_15] : memref<1x32x96xbf16, #tpu.memory_space<vmem>>, vector<1x32x96xbf16>
    %34 = vector.shape_cast %33 : vector<1x32x96xbf16> to vector<32x96xbf16>
    "tpu.trace_start"() <{level = 10 : i32, message = "btd,de->bte"}> : () -> ()
    %cst_16 = arith.constant dense<0.000000e+00> : vector<2x5x96xf32>
    %35 = tpu.matmul %32, %34, %cst_16 {dimension_numbers = #tpu.dot_dimension_numbers<[2], [0], [0, 1], [1], [0, 0, 0, 1, 1, 1], [], []>} : vector<2x5x32xbf16>, vector<32x96xbf16>, vector<2x5x96xf32> -> vector<2x5x96xf32>
    "tpu.trace_stop"() : () -> ()
    %c0_17 = arith.constant 0 : index
    %c0_18 = arith.constant 0 : index
    %c0_19 = arith.constant 0 : index
    %36 = vector.load %arg6[%c0_17, %c0_18, %c0_19] : memref<1x1x96xf32, #tpu.memory_space<vmem>>, vector<1x1x96xf32>
    %37 = vector.shape_cast %36 : vector<1x1x96xf32> to vector<1x96xf32>
    %38 = vector.shape_cast %37 : vector<1x96xf32> to vector<1x1x96xf32>
    %39 = vector.broadcast %38 : vector<1x1x96xf32> to vector<2x5x96xf32>
    %40 = arith.addf %35, %39 : vector<2x5x96xf32>
    %41 = arith.truncf %40 : vector<2x5x96xf32> to vector<2x5x96xbf16>
    %42 = vector.extract_strided_slice %41 {offsets = [0, 0, 0], sizes = [2, 5, 8], strides = [1, 1, 1]} : vector<2x5x96xbf16> to vector<2x5x8xbf16>
    %43 = vector.extract_strided_slice %41 {offsets = [0, 0, 8], sizes = [2, 5, 8], strides = [1, 1, 1]} : vector<2x5x96xbf16> to vector<2x5x8xbf16>
    %44 = vector.extract_strided_slice %41 {offsets = [0, 0, 16], sizes = [2, 5, 8], strides = [1, 1, 1]} : vector<2x5x96xbf16> to vector<2x5x8xbf16>
    %45 = vector.extract_strided_slice %41 {offsets = [0, 0, 24], sizes = [2, 5, 8], strides = [1, 1, 1]} : vector<2x5x96xbf16> to vector<2x5x8xbf16>
    %46 = tpu.concatenate %42, %43, %44, %45 in 0 : vector<2x5x8xbf16>, vector<2x5x8xbf16>, vector<2x5x8xbf16>, vector<2x5x8xbf16> -> vector<8x5x8xbf16>
    %47 = vector.extract_strided_slice %41 {offsets = [0, 0, 32], sizes = [2, 5, 8], strides = [1, 1, 1]} : vector<2x5x96xbf16> to vector<2x5x8xbf16>
    %48 = vector.extract_strided_slice %41 {offsets = [0, 0, 40], sizes = [2, 5, 8], strides = [1, 1, 1]} : vector<2x5x96xbf16> to vector<2x5x8xbf16>
    %49 = vector.extract_strided_slice %41 {offsets = [0, 0, 48], sizes = [2, 5, 8], strides = [1, 1, 1]} : vector<2x5x96xbf16> to vector<2x5x8xbf16>
    %50 = vector.extract_strided_slice %41 {offsets = [0, 0, 56], sizes = [2, 5, 8], strides = [1, 1, 1]} : vector<2x5x96xbf16> to vector<2x5x8xbf16>
    %51 = tpu.concatenate %47, %48, %49, %50 in 0 : vector<2x5x8xbf16>, vector<2x5x8xbf16>, vector<2x5x8xbf16>, vector<2x5x8xbf16> -> vector<8x5x8xbf16>
    %52 = vector.extract_strided_slice %41 {offsets = [0, 0, 64], sizes = [2, 5, 8], strides = [1, 1, 1]} : vector<2x5x96xbf16> to vector<2x5x8xbf16>
    %53 = vector.extract_strided_slice %41 {offsets = [0, 0, 72], sizes = [2, 5, 8], strides = [1, 1, 1]} : vector<2x5x96xbf16> to vector<2x5x8xbf16>
    %54 = vector.extract_strided_slice %41 {offsets = [0, 0, 80], sizes = [2, 5, 8], strides = [1, 1, 1]} : vector<2x5x96xbf16> to vector<2x5x8xbf16>
    %55 = vector.extract_strided_slice %41 {offsets = [0, 0, 88], sizes = [2, 5, 8], strides = [1, 1, 1]} : vector<2x5x96xbf16> to vector<2x5x8xbf16>
    %56 = tpu.concatenate %52, %53, %54, %55 in 0 : vector<2x5x8xbf16>, vector<2x5x8xbf16>, vector<2x5x8xbf16>, vector<2x5x8xbf16> -> vector<8x5x8xbf16>
    "tpu.trace_start"() <{level = 10 : i32, message = "bqd,bkd->bqk"}> : () -> ()
    %cst_20 = arith.constant dense<0.000000e+00> : vector<8x5x5xf32>
    %57 = tpu.matmul %46, %51, %cst_20 {dimension_numbers = #tpu.dot_dimension_numbers<[2], [2], [1], [1], [0, 0, 0, 1, 1, 1], [0], [0]>} : vector<8x5x8xbf16>, vector<8x5x8xbf16>, vector<8x5x5xf32> -> vector<8x5x5xf32>
    "tpu.trace_stop"() : () -> ()
    %cst_21 = arith.constant 0.353553385 : f32
    %58 = vector.broadcast %cst_21 : f32 to vector<8x5x5xf32>
    %59 = arith.mulf %57, %58 : vector<8x5x5xf32>
    %cst_22 = arith.constant dense<0xFF800000> : vector<8x5xf32>
    %60 = vector.multi_reduction <maximumf>, %59, %cst_22 [2] : vector<8x5x5xf32> to vector<8x5xf32>
    %61 = vector.shape_cast %60 : vector<8x5xf32> to vector<8x5x1xf32>
    %62 = vector.broadcast %61 : vector<8x5x1xf32> to vector<8x5x5xf32>
    %63 = arith.subf %59, %62 : vector<8x5x5xf32>
    %64 = math.exp %63 : vector<8x5x5xf32>
    %cst_23 = arith.constant dense<0.000000e+00> : vector<8x5xf32>
    %65 = vector.multi_reduction <add>, %64, %cst_23 [2] : vector<8x5x5xf32> to vector<8x5xf32>
    %66 = vector.shape_cast %65 : vector<8x5xf32> to vector<8x5x1xf32>
    %67 = tpu.reciprocal %66 {approx = true} : vector<8x5x1xf32> -> vector<8x5x1xf32>
    %68 = vector.broadcast %67 : vector<8x5x1xf32> to vector<8x5x5xf32>
    %69 = arith.mulf %64, %68 : vector<8x5x5xf32>
    %70 = arith.truncf %69 : vector<8x5x5xf32> to vector<8x5x5xbf16>
    "tpu.trace_start"() <{level = 10 : i32, message = "bqk,bkd->bqd"}> : () -> ()
    %cst_24 = arith.constant dense<0.000000e+00> : vector<8x5x8xf32>
    %71 = tpu.matmul %70, %56, %cst_24 {dimension_numbers = #tpu.dot_dimension_numbers<[2], [1], [1], [2], [0, 0, 0, 1, 1, 2], [0], [0]>} : vector<8x5x5xbf16>, vector<8x5x8xbf16>, vector<8x5x8xf32> -> vector<8x5x8xf32>
    "tpu.trace_stop"() : () -> ()
    %72 = vector.extract_strided_slice %71 {offsets = [0, 0, 0], sizes = [2, 5, 8], strides = [1, 1, 1]} : vector<8x5x8xf32> to vector<2x5x8xf32>
    %73 = vector.extract_strided_slice %71 {offsets = [2, 0, 0], sizes = [2, 5, 8], strides = [1, 1, 1]} : vector<8x5x8xf32> to vector<2x5x8xf32>
    %74 = vector.extract_strided_slice %71 {offsets = [4, 0, 0], sizes = [2, 5, 8], strides = [1, 1, 1]} : vector<8x5x8xf32> to vector<2x5x8xf32>
    %75 = vector.extract_strided_slice %71 {offsets = [6, 0, 0], sizes = [2, 5, 8], strides = [1, 1, 1]} : vector<8x5x8xf32> to vector<2x5x8xf32>
    %76 = tpu.concatenate %72, %73, %74, %75 in 2 : vector<2x5x8xf32>, vector<2x5x8xf32>, vector<2x5x8xf32>, vector<2x5x8xf32> -> vector<2x5x32xf32>
    %77 = arith.truncf %76 : vector<2x5x32xf32> to vector<2x5x32xbf16>
    %c0_25 = arith.constant 0 : index
    %c0_26 = arith.constant 0 : index
    %c0_27 = arith.constant 0 : index
    %78 = vector.load %arg7[%c0_25, %c0_26, %c0_27] : memref<1x32x32xbf16, #tpu.memory_space<vmem>>, vector<1x32x32xbf16>
    %79 = vector.shape_cast %78 : vector<1x32x32xbf16> to vector<32x32xbf16>
    "tpu.trace_start"() <{level = 10 : i32, message = "btd,de->bte"}> : () -> ()
    %cst_28 = arith.constant dense<0.000000e+00> : vector<2x5x32xf32>
    %80 = tpu.matmul %77, %79, %cst_28 {dimension_numbers = #tpu.dot_dimension_numbers<[2], [0], [0, 1], [1], [0, 0, 0, 1, 1, 1], [], []>} : vector<2x5x32xbf16>, vector<32x32xbf16>, vector<2x5x32xf32> -> vector<2x5x32xf32>
    "tpu.trace_stop"() : () -> ()
    %c0_29 = arith.constant 0 : index
    %c0_30 = arith.constant 0 : index
    %c0_31 = arith.constant 0 : index
    %81 = vector.load %arg8[%c0_29, %c0_30, %c0_31] : memref<1x1x32xf32, #tpu.memory_space<vmem>>, vector<1x1x32xf32>
    %82 = vector.shape_cast %81 : vector<1x1x32xf32> to vector<1x32xf32>
    %83 = vector.shape_cast %82 : vector<1x32xf32> to vector<1x1x32xf32>
    %84 = vector.broadcast %83 : vector<1x1x32xf32> to vector<2x5x32xf32>
    %85 = arith.addf %80, %84 : vector<2x5x32xf32>
    %86 = arith.addf %3, %85 : vector<2x5x32xf32>
    %c0_32 = arith.constant 0 : index
    %c0_33 = arith.constant 0 : index
    %c0_34 = arith.constant 0 : index
    %87 = vector.load %arg9[%c0_32, %c0_33, %c0_34] : memref<1x1x32xf32, #tpu.memory_space<vmem>>, vector<1x1x32xf32>
    %88 = vector.shape_cast %87 : vector<1x1x32xf32> to vector<1x32xf32>
    %c0_35 = arith.constant 0 : index
    %c0_36 = arith.constant 0 : index
    %c0_37 = arith.constant 0 : index
    %89 = vector.load %arg10[%c0_35, %c0_36, %c0_37] : memref<1x1x32xf32, #tpu.memory_space<vmem>>, vector<1x1x32xf32>
    %90 = vector.shape_cast %89 : vector<1x1x32xf32> to vector<1x32xf32>
    %cst_38 = arith.constant dense<0.000000e+00> : vector<2x5xf32>
    %91 = vector.multi_reduction <add>, %86, %cst_38 [2] : vector<2x5x32xf32> to vector<2x5xf32>
    %92 = vector.shape_cast %91 : vector<2x5xf32> to vector<2x5x1xf32>
    %cst_39 = arith.constant 3.200000e+01 : f32
    %93 = vector.broadcast %cst_39 : f32 to vector<2x5x1xf32>
    %94 = arith.divf %92, %93 : vector<2x5x1xf32>
    %95 = vector.broadcast %94 : vector<2x5x1xf32> to vector<2x5x32xf32>
    %96 = arith.subf %86, %95 : vector<2x5x32xf32>
    %97 = arith.mulf %96, %96 : vector<2x5x32xf32>
    %cst_40 = arith.constant dense<0.000000e+00> : vector<2x5xf32>
    %98 = vector.multi_reduction <add>, %97, %cst_40 [2] : vector<2x5x32xf32> to vector<2x5xf32>
    %99 = vector.shape_cast %98 : vector<2x5xf32> to vector<2x5x1xf32>
    %cst_41 = arith.constant 3.200000e+01 : f32
    %100 = vector.broadcast %cst_41 : f32 to vector<2x5x1xf32>
    %101 = arith.divf %99, %100 : vector<2x5x1xf32>
    %102 = vector.broadcast %94 : vector<2x5x1xf32> to vector<2x5x32xf32>
    %103 = arith.subf %86, %102 : vector<2x5x32xf32>
    %cst_42 = arith.constant 9.99999997E-7 : f32
    %104 = vector.broadcast %cst_42 : f32 to vector<2x5x1xf32>
    %105 = arith.addf %101, %104 : vector<2x5x1xf32>
    %106 = math.rsqrt %105 : vector<2x5x1xf32>
    %107 = vector.broadcast %106 : vector<2x5x1xf32> to vector<2x5x32xf32>
    %108 = arith.mulf %103, %107 : vector<2x5x32xf32>
    %109 = vector.shape_cast %88 : vector<1x32xf32> to vector<1x1x32xf32>
    %110 = vector.broadcast %109 : vector<1x1x32xf32> to vector<2x5x32xf32>
    %111 = arith.mulf %108, %110 : vector<2x5x32xf32>
    %112 = vector.shape_cast %90 : vector<1x32xf32> to vector<1x1x32xf32>
    %113 = vector.broadcast %112 : vector<1x1x32xf32> to vector<2x5x32xf32>
    %114 = arith.addf %111, %113 : vector<2x5x32xf32>
    %115 = arith.truncf %114 : vector<2x5x32xf32> to vector<2x5x32xbf16>
    %c0_43 = arith.constant 0 : index
    %c0_44 = arith.constant 0 : index
    %c0_45 = arith.constant 0 : index
    %116 = vector.load %arg11[%c0_43, %c0_44, %c0_45] : memref<1x32x128xbf16, #tpu.memory_space<vmem>>, vector<1x32x128xbf16>
    %117 = vector.shape_cast %116 : vector<1x32x128xbf16> to vector<32x128xbf16>
    "tpu.trace_start"() <{level = 10 : i32, message = "btd,dh->bth"}> : () -> ()
    %cst_46 = arith.constant dense<0.000000e+00> : vector<2x5x128xf32>
    %118 = tpu.matmul %115, %117, %cst_46 {dimension_numbers = #tpu.dot_dimension_numbers<[2], [0], [0, 1], [1], [0, 0, 0, 1, 1, 1], [], []>} : vector<2x5x32xbf16>, vector<32x128xbf16>, vector<2x5x128xf32> -> vector<2x5x128xf32>
    "tpu.trace_stop"() : () -> ()
    %c0_47 = arith.constant 0 : index
    %c0_48 = arith.constant 0 : index
    %c0_49 = arith.constant 0 : index
    %119 = vector.load %arg12[%c0_47, %c0_48, %c0_49] : memref<1x1x128xf32, #tpu.memory_space<vmem>>, vector<1x1x128xf32>
    %120 = vector.shape_cast %119 : vector<1x1x128xf32> to vector<1x128xf32>
    %121 = vector.shape_cast %120 : vector<1x128xf32> to vector<1x1x128xf32>
    %122 = vector.broadcast %121 : vector<1x1x128xf32> to vector<2x5x128xf32>
    %123 = arith.addf %118, %122 : vector<2x5x128xf32>
    %cst_50 = arith.constant 5.000000e-01 : f32
    %124 = vector.broadcast %cst_50 : f32 to vector<2x5x128xf32>
    %125 = arith.mulf %124, %123 : vector<2x5x128xf32>
    %cst_51 = arith.constant 2.000000e+00 : f32
    %126 = math.sqrt %cst_51 : f32
    %cst_52 = arith.constant 1.000000e+00 : f32
    %127 = arith.divf %cst_52, %126 : f32
    %128 = vector.broadcast %127 : f32 to vector<2x5x128xf32>
    %129 = arith.mulf %123, %128 : vector<2x5x128xf32>
    %130 = math.erf %129 : vector<2x5x128xf32>
    %cst_53 = arith.constant 1.000000e+00 : f32
    %131 = vector.broadcast %cst_53 : f32 to vector<2x5x128xf32>
    %132 = arith.addf %131, %130 : vector<2x5x128xf32>
    %133 = arith.mulf %125, %132 : vector<2x5x128xf32>
    %134 = arith.truncf %133 : vector<2x5x128xf32> to vector<2x5x128xbf16>
    %c0_54 = arith.constant 0 : index
    %c0_55 = arith.constant 0 : index
    %c0_56 = arith.constant 0 : index
    %135 = vector.load %arg13[%c0_54, %c0_55, %c0_56] : memref<1x128x32xbf16, #tpu.memory_space<vmem>>, vector<1x128x32xbf16>
    %136 = vector.shape_cast %135 : vector<1x128x32xbf16> to vector<128x32xbf16>
    "tpu.trace_start"() <{level = 10 : i32, message = "bth,hd->btd"}> : () -> ()
    %cst_57 = arith.constant dense<0.000000e+00> : vector<2x5x32xf32>
    %137 = tpu.matmul %134, %136, %cst_57 {dimension_numbers = #tpu.dot_dimension_numbers<[2], [0], [0, 1], [1], [0, 0, 0, 1, 1, 1], [], []>} : vector<2x5x128xbf16>, vector<128x32xbf16>, vector<2x5x32xf32> -> vector<2x5x32xf32>
    "tpu.trace_stop"() : () -> ()
    %c0_58 = arith.constant 0 : index
    %c0_59 = arith.constant 0 : index
    %c0_60 = arith.constant 0 : index
    %138 = vector.load %arg14[%c0_58, %c0_59, %c0_60] : memref<1x1x32xf32, #tpu.memory_space<vmem>>, vector<1x1x32xf32>
    %139 = vector.shape_cast %138 : vector<1x1x32xf32> to vector<1x32xf32>
    %140 = vector.shape_cast %139 : vector<1x32xf32> to vector<1x1x32xf32>
    %141 = vector.broadcast %140 : vector<1x1x32xf32> to vector<2x5x32xf32>
    %142 = arith.addf %137, %141 : vector<2x5x32xf32>
    %143 = arith.addf %86, %142 : vector<2x5x32xf32>
    %c0_61 = arith.constant 0 : index
    %c0_62 = arith.constant 0 : index
    %c0_63 = arith.constant 0 : index
    %144 = vector.load %arg18[%c0_61, %c0_62, %c0_63] : memref<2x5x32xf32, #tpu.memory_space<vmem>>, vector<2x5x32xf32>
    tpu.vector_store %arg18[%c0_61, %c0_62, %c0_63], %143 {strides = array<i32>} : memref<2x5x32xf32, #tpu.memory_space<vmem>>, vector<2x5x32xf32>,
    %145 = vector.extract_strided_slice %143 {offsets = [0, 0, 0], sizes = [2, 1, 32], strides = [1, 1, 1]} : vector<2x5x32xf32> to vector<2x1x32xf32>
    %146 = vector.shape_cast %145 : vector<2x1x32xf32> to vector<2x32xf32>
    %c0_64 = arith.constant 0 : index
    %c0_65 = arith.constant 0 : index
    %147 = vector.load %arg15[%c0_64, %c0_65] : memref<1x32xf32, #tpu.memory_space<vmem>>, vector<1x32xf32>
    %c0_66 = arith.constant 0 : index
    %c0_67 = arith.constant 0 : index
    %148 = vector.load %arg16[%c0_66, %c0_67] : memref<1x32xf32, #tpu.memory_space<vmem>>, vector<1x32xf32>
    %cst_68 = arith.constant dense<0.000000e+00> : vector<2xf32>
    %149 = vector.multi_reduction <add>, %146, %cst_68 [1] : vector<2x32xf32> to vector<2xf32>
    %150 = vector.shape_cast %149 : vector<2xf32> to vector<2x1xf32>
    %cst_69 = arith.constant 3.200000e+01 : f32
    %151 = vector.broadcast %cst_69 : f32 to vector<2x1xf32>
    %152 = arith.divf %150, %151 : vector<2x1xf32>
    %153 = vector.broadcast %152 : vector<2x1xf32> to vector<2x32xf32>
    %154 = arith.subf %146, %153 : vector<2x32xf32>
    %155 = arith.mulf %154, %154 : vector<2x32xf32>
    %cst_70 = arith.constant dense<0.000000e+00> : vector<2xf32>
    %156 = vector.multi_reduction <add>, %155, %cst_70 [1] : vector<2x32xf32> to vector<2xf32>
    %157 = vector.shape_cast %156 : vector<2xf32> to vector<2x1xf32>
    %cst_71 = arith.constant 3.200000e+01 : f32
    %158 = vector.broadcast %cst_71 : f32 to vector<2x1xf32>
    %159 = arith.divf %157, %158 : vector<2x1xf32>
    %160 = vector.broadcast %152 : vector<2x1xf32> to vector<2x32xf32>
    %161 = arith.subf %146, %160 : vector<2x32xf32>
    %cst_72 = arith.constant 9.99999997E-7 : f32
    %162 = vector.broadcast %cst_72 : f32 to vector<2x1xf32>
    %163 = arith.addf %159, %162 : vector<2x1xf32>
    %164 = math.rsqrt %163 : vector<2x1xf32>
    %165 = vector.broadcast %164 : vector<2x1xf32> to vector<2x32xf32>
    %166 = arith.mulf %161, %165 : vector<2x32xf32>
    %167 = vector.broadcast %147 : vector<1x32xf32> to vector<2x32xf32>
    %168 = arith.mulf %166, %167 : vector<2x32xf32>
    %169 = vector.broadcast %148 : vector<1x32xf32> to vector<2x32xf32>
    %170 = arith.addf %168, %169 : vector<2x32xf32>
    %171 = vector.shape_cast %170 : vector<2x32xf32> to vector<1x2x32xf32>
    %c0_73 = arith.constant 0 : index
    %c0_74 = arith.constant 0 : index
    %c0_75 = arith.constant 0 : index
    %172 = vector.load %arg17[%c0_73, %c0_74, %c0_75] : memref<1x2x32xf32, #tpu.memory_space<vmem>>, vector<1x2x32xf32>
    tpu.vector_store %arg17[%c0_73, %c0_74, %c0_75], %171 {strides = array<i32>} : memref<1x2x32xf32, #tpu.memory_space<vmem>>, vector<1x2x32xf32>,
    return
  }
  func.func @transform_0(%arg0: i32, %arg1: i32) -> (i32, i32, i32) {
    %c0_i32 = arith.constant 0 : i32
    %c0_i32_0 = arith.constant 0 : i32
    %c0_i32_1 = arith.constant 0 : i32
    return %arg0, %c0_i32, %c0_i32_0 : i32, i32, i32
  }
  func.func @transform_1(%arg0: i32, %arg1: i32) -> (i32, i32, i32) {
    %c0_i32 = arith.constant 0 : i32
    %c0_i32_0 = arith.constant 0 : i32
    %c0_i32_1 = arith.constant 0 : i32
    return %arg1, %c0_i32, %c0_i32_0 : i32, i32, i32
  }
  func.func @transform_2(%arg0: i32, %arg1: i32) -> (i32, i32, i32) {
    %c0_i32 = arith.constant 0 : i32
    %c0_i32_0 = arith.constant 0 : i32
    %c0_i32_1 = arith.constant 0 : i32
    return %arg1, %c0_i32, %c0_i32_0 : i32, i32, i32
  }
  func.func @transform_3(%arg0: i32, %arg1: i32) -> (i32, i32, i32) {
    %c0_i32 = arith.constant 0 : i32
    %c0_i32_0 = arith.constant 0 : i32
    %c0_i32_1 = arith.constant 0 : i32
    return %arg1, %c0_i32, %c0_i32_0 : i32, i32, i32
  }
  func.func @transform_4(%arg0: i32, %arg1: i32) -> (i32, i32, i32) {
    %c0_i32 = arith.constant 0 : i32
    %c0_i32_0 = arith.constant 0 : i32
    %c0_i32_1 = arith.constant 0 : i32
    return %arg1, %c0_i32, %c0_i32_0 : i32, i32, i32
  }
  func.func @transform_5(%arg0: i32, %arg1: i32) -> (i32, i32, i32) {
    %c0_i32 = arith.constant 0 : i32
    %c0_i32_0 = arith.constant 0 : i32
    %c0_i32_1 = arith.constant 0 : i32
    return %arg1, %c0_i32, %c0_i32_0 : i32, i32, i32
  }
  func.func @transform_6(%arg0: i32, %arg1: i32) -> (i32, i32, i32) {
    %c0_i32 = arith.constant 0 : i32
    %c0_i32_0 = arith.constant 0 : i32
    %c0_i32_1 = arith.constant 0 : i32
    return %arg1, %c0_i32, %c0_i32_0 : i32, i32, i32
  }
  func.func @transform_7(%arg0: i32, %arg1: i32) -> (i32, i32, i32) {
    %c0_i32 = arith.constant 0 : i32
    %c0_i32_0 = arith.constant 0 : i32
    %c0_i32_1 = arith.constant 0 : i32
    return %arg1, %c0_i32, %c0_i32_0 : i32, i32, i32
  }
  func.func @transform_8(%arg0: i32, %arg1: i32) -> (i32, i32, i32) {
    %c0_i32 = arith.constant 0 : i32
    %c0_i32_0 = arith.constant 0 : i32
    %c0_i32_1 = arith.constant 0 : i32
    return %arg1, %c0_i32, %c0_i32_0 : i32, i32, i32
  }
  func.func @transform_9(%arg0: i32, %arg1: i32) -> (i32, i32, i32) {
    %c0_i32 = arith.constant 0 : i32
    %c0_i32_0 = arith.constant 0 : i32
    %c0_i32_1 = arith.constant 0 : i32
    return %arg1, %c0_i32, %c0_i32_0 : i32, i32, i32
  }
  func.func @transform_10(%arg0: i32, %arg1: i32) -> (i32, i32, i32) {
    %c0_i32 = arith.constant 0 : i32
    %c0_i32_0 = arith.constant 0 : i32
    %c0_i32_1 = arith.constant 0 : i32
    return %arg1, %c0_i32, %c0_i32_0 : i32, i32, i32
  }
  func.func @transform_11(%arg0: i32, %arg1: i32) -> (i32, i32, i32) {
    %c0_i32 = arith.constant 0 : i32
    %c0_i32_0 = arith.constant 0 : i32
    %c0_i32_1 = arith.constant 0 : i32
    return %arg1, %c0_i32, %c0_i32_0 : i32, i32, i32
  }
  func.func @transform_12(%arg0: i32, %arg1: i32) -> (i32, i32, i32) {
    %c0_i32 = arith.constant 0 : i32
    %c0_i32_0 = arith.constant 0 : i32
    %c0_i32_1 = arith.constant 0 : i32
    return %arg1, %c0_i32, %c0_i32_0 : i32, i32, i32
  }
  func.func @transform_13(%arg0: i32, %arg1: i32) -> (i32, i32) {
    %c0_i32 = arith.constant 0 : i32
    %c0_i32_0 = arith.constant 0 : i32
    %c0_i32_1 = arith.constant 0 : i32
    return %c0_i32, %c0_i32_0 : i32, i32
  }
  func.func @transform_14(%arg0: i32, %arg1: i32) -> (i32, i32) {
    %c0_i32 = arith.constant 0 : i32
    %c0_i32_0 = arith.constant 0 : i32
    %c0_i32_1 = arith.constant 0 : i32
    return %c0_i32, %c0_i32_0 : i32, i32
  }
  func.func @transform_15(%arg0: i32, %arg1: i32) -> (i32, i32, i32) {
    %c0_i32 = arith.constant 0 : i32
    %c0_i32_0 = arith.constant 0 : i32
    return %arg1, %arg0, %c0_i32 : i32, i32, i32
  }
}

module attributes {stable_mosaic.version = 11 : i64} {
  func.func @_matmul_bias_kernel(%arg0: memref<2x128xbf16, #tpu.memory_space<vmem>>, %arg1: memref<128x128xbf16, #tpu.memory_space<vmem>>, %arg2: memref<1x128xf32, #tpu.memory_space<vmem>>, %arg3: memref<2x128xf32, #tpu.memory_space<vmem>>) attributes {dimension_semantics = [], scalar_prefetch = 0 : i64, scratch_operands = 0 : i64, tpu.core_type = #tpu.core_type<tc>} {
    %c0 = arith.constant 0 : index
    %c0_0 = arith.constant 0 : index
    %0 = vector.load %arg0[%c0, %c0_0] : memref<2x128xbf16, #tpu.memory_space<vmem>>, vector<2x128xbf16>
    %c0_1 = arith.constant 0 : index
    %c0_2 = arith.constant 0 : index
    %1 = vector.load %arg1[%c0_1, %c0_2] : memref<128x128xbf16, #tpu.memory_space<vmem>>, vector<128x128xbf16>
    %cst = arith.constant dense<0.000000e+00> : vector<2x128xf32>
    %2 = tpu.matmul %0, %1, %cst {dimension_numbers = #tpu.dot_dimension_numbers<[1], [0], [0], [1], [0, 0, 1, 1], [], []>} : vector<2x128xbf16>, vector<128x128xbf16>, vector<2x128xf32> -> vector<2x128xf32>
    %c0_3 = arith.constant 0 : index
    %c0_4 = arith.constant 0 : index
    %3 = vector.load %arg2[%c0_3, %c0_4] : memref<1x128xf32, #tpu.memory_space<vmem>>, vector<1x128xf32>
    %4 = vector.broadcast %3 : vector<1x128xf32> to vector<2x128xf32>
    %5 = arith.addf %2, %4 : vector<2x128xf32>
    %c0_5 = arith.constant 0 : index
    %c0_6 = arith.constant 0 : index
    %6 = vector.load %arg3[%c0_5, %c0_6] : memref<2x128xf32, #tpu.memory_space<vmem>>, vector<2x128xf32>
    tpu.vector_store %arg3[%c0_5, %c0_6], %5 {strides = array<i32>} : memref<2x128xf32, #tpu.memory_space<vmem>>, vector<2x128xf32>,
    return
  }
}

</mosaic_0001>

<llo_original>
// kernel: dino_linear_eval_forward.3
$region0: #{dino_linear_eval_forward.3}
  #allocation0 [shape = 'u32[]', space=smem, size = 0x4, offset = 0x4, fixed_abs, tag = 'smem constant byte address 0x4 - core index']
  #allocation1 [shape = 'u32[144,128]{1,0:T(1,128)}', space=vmem, size = 0x12000, scoped, tag = 'internal scratch']
  %s0 = inlined_call_operand.vmem [shape: bf16[8,192], index: 0, kind: input, shape index: {}]
  %s1 = inlined_call_operand.vmem [shape: bf16[192,32], index: 1, kind: input, shape index: {}]
  %s2 = inlined_call_operand.vmem [shape: f32[1,32], index: 2, kind: input, shape index: {}]
  %s3 = inlined_call_operand.vmem [shape: f32[8,32], index: 3, kind: output, shape index: {}]
  %s4 = sld [smem:[#allocation0]]
  $region22: #{dino_linear_eval_forward.3} parent=0
    _
  %s6 = ssub.s32 1, %s4
  %s7 = scalar_select 0, %s6, %s4
  // Predicated region
  $region2: #{dino_linear_eval_forward.3} parent=0 // pred_check
    _
  $region3: #{dino_linear_eval_forward.3} parent=0 // pred_check_branch
    %9 = sbr.rel (0) target = $region5
  $region4: #{dino_linear_eval_forward.3} parent=0 // pred_region
    _
  $region5: #{dino_linear_eval_forward.3} parent=0 // pred_fallthru
    _
  // Predicated region
  $region6: #{dino_linear_eval_forward.3} parent=0 // pred_check
    _
  $region7: #{dino_linear_eval_forward.3} parent=0 // pred_check_branch
    %11 = sbr.rel (0) target = $region9
  $region8: #{dino_linear_eval_forward.3} parent=0 // pred_region
    _
  $region9: #{dino_linear_eval_forward.3} parent=0 // pred_fallthru
    _
  // Predicated region
  $region10: #{dino_linear_eval_forward.3} parent=0 // pred_check
    _
  $region11: #{dino_linear_eval_forward.3} parent=0 // pred_check_branch
    %13 = sbr.rel (0) target = $region13
  $region12: #{dino_linear_eval_forward.3} parent=0 // pred_region
    _
  $region13: #{dino_linear_eval_forward.3} parent=0 // pred_fallthru
    _
  %v15 = vld [vmem:[%s0] sm:$0xff]
  %v16 = vld [vmem:[%s1] sm:$0xf]
  %v17 = vld [vmem:[%s1 + $0x4] sm:$0xf]
  %v18 = vld [vmem:[%s1 + $0x8] sm:$0xf]
  %v19 = vld [vmem:[%s1 + $0xc] sm:$0xf]
  %v20 = vld [vmem:[%s1 + $0x10] sm:$0xf]
  %v21 = vld [vmem:[%s1 + $0x14] sm:$0xf]
  %v22 = vld [vmem:[%s1 + $0x18] sm:$0xf]
  %v23 = vld [vmem:[%s1 + $0x1c] sm:$0xf]
  %v24 = vld [vmem:[%s1 + $0x20] sm:$0xf]
  %v25 = vld [vmem:[%s1 + $0x24] sm:$0xf]
  %v26 = vld [vmem:[%s1 + $0x28] sm:$0xf]
  %v27 = vld [vmem:[%s1 + $0x2c] sm:$0xf]
  %v28 = vld [vmem:[%s1 + $0x30] sm:$0xf]
  %v29 = vld [vmem:[%s1 + $0x34] sm:$0xf]
  %v30 = vld [vmem:[%s1 + $0x38] sm:$0xf]
  %v31 = vld [vmem:[%s1 + $0x3c] sm:$0xf]
  %v32 = vld [vmem:[%s1 + $0x40] sm:$0xf]
  %v33 = vld [vmem:[%s1 + $0x44] sm:$0xf]
  %v34 = vld [vmem:[%s1 + $0x48] sm:$0xf]
  %v35 = vld [vmem:[%s1 + $0x4c] sm:$0xf]
  %v36 = vld [vmem:[%s1 + $0x50] sm:$0xf]
  %v37 = vld [vmem:[%s1 + $0x54] sm:$0xf]
  %v38 = vld [vmem:[%s1 + $0x58] sm:$0xf]
  %v39 = vld [vmem:[%s1 + $0x5c] sm:$0xf]
  %v40 = vld [vmem:[%s2] sm:$0x1]
  %v42 = vlaneseq
  %v43 = vshrl.u32 %v42, 7
  %v44 = vsub.s32 0, %v43
  %v45 = vrot.slane %v40, %v44
  %v48 = vunpack.c.l.b16 %v15
  %v49 = vunpack.c.h.b16 %v15
  %v50 = vpack.c.b16 %v48, %v48
  %v51 = vpack.c.b16 %v49, %v49
  %v77 = vunpack.c.l.b16 %v16
  %v78 = vunpack.c.l.b16 %v17
  %v79 = vunpack.c.l.b16 %v18
  %v80 = vunpack.c.l.b16 %v19
  %v81 = vunpack.c.l.b16 %v20
  %v82 = vunpack.c.l.b16 %v21
  %v83 = vunpack.c.l.b16 %v22
  %v84 = vunpack.c.l.b16 %v23
  %v85 = vunpack.c.l.b16 %v24
  %v86 = vunpack.c.l.b16 %v25
  %v87 = vunpack.c.l.b16 %v26
  %v88 = vunpack.c.l.b16 %v27
  %v89 = vunpack.c.l.b16 %v28
  %v90 = vunpack.c.l.b16 %v29
  %v91 = vunpack.c.l.b16 %v30
  %v92 = vunpack.c.l.b16 %v31
  %v93 = vunpack.c.l.b16 %v32
  %v94 = vunpack.c.l.b16 %v33
  %v95 = vunpack.c.l.b16 %v34
  %v96 = vunpack.c.l.b16 %v35
  %v97 = vunpack.c.l.b16 %v36
  %v98 = vunpack.c.l.b16 %v37
  %v99 = vunpack.c.l.b16 %v38
  %v100 = vunpack.c.l.b16 %v39
  %v101 = vpack.c.b16 %v78, %v77
  %v102 = vpack.c.b16 %v80, %v79
  %v103 = vpack.c.b16 %v82, %v81
  %v104 = vpack.c.b16 %v84, %v83
  %v105 = vpack.c.b16 %v86, %v85
  %v106 = vpack.c.b16 %v88, %v87
  %v107 = vpack.c.b16 %v90, %v89
  %v108 = vpack.c.b16 %v92, %v91
  %v109 = vpack.c.b16 %v94, %v93
  %v110 = vpack.c.b16 %v96, %v95
  %v111 = vpack.c.b16 %v98, %v97
  %v112 = vpack.c.b16 %v100, %v99
  %vm125 = vcmask 523264
  %v127 = vsel %vm125, %v51, 0
  %129 = vmatprep.subr.bf16.mxu0 0
  %130 = vmatpush1.bf16.msra.mxu0 %v101
  %131 = vmatprep.subr.bf16.mxu0 0
  %132 = vmatpush1.bf16.msra.mxu0 %v102
  %133 = vmatprep.subr.bf16.mxu0 0
  %134 = vmatpush1.bf16.msra.mxu0 %v103
  %135 = vmatprep.subr.bf16.mxu0 0
  %136 = vmatpush1.bf16.msra.mxu0 %v104
  %137 = vmatprep.subr.bf16.mxu0 0
  %138 = vmatpush1.bf16.msra.mxu0 %v105
  %139 = vmatprep.subr.bf16.mxu0 0
  %140 = vmatpush1.bf16.msra.mxu0 %v106
  %141 = vmatprep.subr.bf16.mxu0 0
  %142 = vmatpush1.bf16.msra.mxu0 %v107
  %143 = vmatprep.subr.bf16.mxu0 0
  %144 = vmatpush1.bf16.msra.mxu0 %v108
  %145 = vmatprep.subr.bf16.mxu0 0
  %146 = vmatpush1.bf16.msra.mxu0 %v109
  %147 = vmatprep.subr.bf16.mxu0 0
  %148 = vmatpush1.bf16.msra.mxu0 %v110
  %149 = vmatprep.subr.bf16.mxu0 0
  %150 = vmatpush1.bf16.msra.mxu0 %v111
  %151 = vmatprep.subr.bf16.mxu0 0
  %152 = vmatpush1.bf16.msra.mxu0 %v112
  %153 = vmatprep.subr.bf16.mxu0 0
  %154 = vmatpush1.bf16.msra.mxu0 0
  %155 = vmatprep.subr.bf16.mxu0 0
  %156 = vmatpush1.bf16.msra.mxu0 0
  %157 = vmatprep.subr.bf16.mxu0 0
  %158 = vmatpush1.bf16.msra.mxu0 0
  %159 = vmatprep.subr.bf16.mxu0 0
  %160 = vmatpush1.bf16.msra.mxu0 0
  %161 = vmatprep.mubr.bf16.mxu0 %v127
  %162 = vmatmul.mubr.bf16.gmra.mrb[0].mxu0 %v50
  %v163 = vpop.f32.mrb[0].mxu0
  %v164 = vadd.f32 %v45, %v163
  %v165 = vpop.f32.mrb[0].mxu0
  %v166 = vpop.f32.mrb[0].mxu0
  %v167 = vpop.f32.mrb[0].mxu0
  %168 = vdwg.mxu0
  %vm169 = vcmask 261120
  %170 = vst.msk [vmem:[%s3] sm:$0xff] %vm169, %v164
  // Predicated region
  $region14: #{dino_linear_eval_forward.3} parent=0 // pred_check
    _
  $region15: #{dino_linear_eval_forward.3} parent=0 // pred_check_branch
    %172 = sbr.rel (0) target = $region17
  $region16: #{dino_linear_eval_forward.3} parent=0 // pred_region
    _
  $region17: #{dino_linear_eval_forward.3} parent=0 // pred_fallthru
    _
  // Predicated region
  $region18: #{dino_linear_eval_forward.3} parent=0 // pred_check
    _
  $region19: #{dino_linear_eval_forward.3} parent=0 // pred_check_branch
    %174 = sbr.rel (0) target = $region21
  $region20: #{dino_linear_eval_forward.3} parent=0 // pred_region
    _
  $region21: #{dino_linear_eval_forward.3} parent=0 // pred_fallthru
    _

// kernel: dino_linear_eval_forward.5
$region0: #{dino_linear_eval_forward.5}
  #allocation0 [shape = 'u32[]', space=smem, size = 0x4, offset = 0x4, fixed_abs, tag = 'smem constant byte address 0x4 - core index']
  #allocation1 [shape = 'u32[144,128]{1,0:T(1,128)}', space=vmem, size = 0x12000, scoped, tag = 'internal scratch']
  %s0 = inlined_call_operand.vmem [shape: bf16[2,128], index: 0, kind: input, shape index: {}]
  %s1 = inlined_call_operand.vmem [shape: bf16[128,128], index: 1, kind: input, shape index: {}]
  %s2 = inlined_call_operand.vmem [shape: f32[1,128], index: 2, kind: input, shape index: {}]
  %s3 = inlined_call_operand.hbm [shape: f32[2,128], index: 3, kind: output, shape index: {}]
  %s4 = sld [smem:[#allocation0]]
  $region22: #{dino_linear_eval_forward.5} parent=0
    _
  %s6 = ssub.s32 1, %s4
  %s7 = scalar_select 0, %s6, %s4
  $region1: #{dino_linear_eval_forward.5} parent=0
    #allocation2 [shape = 'u8[1024]{0}', space=vmem, size = 0x400, scoped, tag = 'output window, operand 0, single buffered']
    #allocation3 [shape = 's32[1]{0}', space=sflag, size = 0x4, scoped, tag = 'scoped memory for dino_linear_eval_forward.5']
    %8 = vsyncpa [#allocation3], 0
    // Predicated region
    $region2: #{dino_linear_eval_forward.5} parent=1 // pred_check
      _
    $region3: #{dino_linear_eval_forward.5} parent=1 // pred_check_branch
      %10 = sbr.rel (0) target = $region5
    $region4: #{dino_linear_eval_forward.5} parent=1 // pred_region
      _
    $region5: #{dino_linear_eval_forward.5} parent=1 // pred_fallthru
      _
    // Predicated region
    $region6: #{dino_linear_eval_forward.5} parent=1 // pred_check
      _
    $region7: #{dino_linear_eval_forward.5} parent=1 // pred_check_branch
      %12 = sbr.rel (0) target = $region9
    $region8: #{dino_linear_eval_forward.5} parent=1 // pred_region
      _
    $region9: #{dino_linear_eval_forward.5} parent=1 // pred_fallthru
      _
    // Predicated region
    $region10: #{dino_linear_eval_forward.5} parent=1 // pred_check
      _
    $region11: #{dino_linear_eval_forward.5} parent=1 // pred_check_branch
      %14 = sbr.rel (0) target = $region13
    $region12: #{dino_linear_eval_forward.5} parent=1 // pred_region
      _
    $region13: #{dino_linear_eval_forward.5} parent=1 // pred_fallthru
      _
    %v16 = vld [vmem:[%s0] sm:$0x1]
    %v17 = vld [vmem:[%s1] sm:$0xf]
    %v18 = vld [vmem:[%s1 + $0x4] sm:$0xf]
    %v19 = vld [vmem:[%s1 + $0x8] sm:$0xf]
    %v20 = vld [vmem:[%s1 + $0xc] sm:$0xf]
    %v21 = vld [vmem:[%s1 + $0x10] sm:$0xf]
    %v22 = vld [vmem:[%s1 + $0x14] sm:$0xf]
    %v23 = vld [vmem:[%s1 + $0x18] sm:$0xf]
    %v24 = vld [vmem:[%s1 + $0x1c] sm:$0xf]
    %v25 = vld [vmem:[%s1 + $0x20] sm:$0xf]
    %v26 = vld [vmem:[%s1 + $0x24] sm:$0xf]
    %v27 = vld [vmem:[%s1 + $0x28] sm:$0xf]
    %v28 = vld [vmem:[%s1 + $0x2c] sm:$0xf]
    %v29 = vld [vmem:[%s1 + $0x30] sm:$0xf]
    %v30 = vld [vmem:[%s1 + $0x34] sm:$0xf]
    %v31 = vld [vmem:[%s1 + $0x38] sm:$0xf]
    %v32 = vld [vmem:[%s1 + $0x3c] sm:$0xf]
    %v33 = vld [vmem:[%s2] sm:$0x1]
    %v35 = vlaneseq
    %v36 = vshrl.u32 %v35, 7
    %v37 = vsub.s32 0, %v36
    %v38 = vrot.slane %v33, %v37
    %v56 = vunpack.c.l.b16 %v17
    %v57 = vunpack.c.l.b16 %v18
    %v58 = vunpack.c.l.b16 %v19
    %v59 = vunpack.c.l.b16 %v20
    %v60 = vunpack.c.l.b16 %v21
    %v61 = vunpack.c.l.b16 %v22
    %v62 = vunpack.c.l.b16 %v23
    %v63 = vunpack.c.l.b16 %v24
    %v64 = vunpack.c.l.b16 %v25
    %v65 = vunpack.c.l.b16 %v26
    %v66 = vunpack.c.l.b16 %v27
    %v67 = vunpack.c.l.b16 %v28
    %v68 = vunpack.c.l.b16 %v29
    %v69 = vunpack.c.l.b16 %v30
    %v70 = vunpack.c.l.b16 %v31
    %v71 = vunpack.c.l.b16 %v32
    %v72 = vpack.c.b16 %v57, %v56
    %v73 = vpack.c.b16 %v59, %v58
    %v74 = vpack.c.b16 %v61, %v60
    %v75 = vpack.c.b16 %v63, %v62
    %v76 = vpack.c.b16 %v65, %v64
    %v77 = vpack.c.b16 %v67, %v66
    %v78 = vpack.c.b16 %v69, %v68
    %v79 = vpack.c.b16 %v71, %v70
    %88 = vmatprep.subr.bf16.mxu0 0
    %89 = vmatpush1.bf16.msra.mxu0 %v72
    %90 = vmatprep.subr.bf16.mxu0 0
    %91 = vmatpush1.bf16.msra.mxu0 %v73
    %92 = vmatprep.subr.bf16.mxu0 0
    %93 = vmatpush1.bf16.msra.mxu0 %v74
    %94 = vmatprep.subr.bf16.mxu0 0
    %95 = vmatpush1.bf16.msra.mxu0 %v75
    %96 = vmatprep.subr.bf16.mxu0 0
    %97 = vmatpush1.bf16.msra.mxu0 %v76
    %98 = vmatprep.subr.bf16.mxu0 0
    %99 = vmatpush1.bf16.msra.mxu0 %v77
    %100 = vmatprep.subr.bf16.mxu0 0
    %101 = vmatpush1.bf16.msra.mxu0 %v78
    %102 = vmatprep.subr.bf16.mxu0 0
    %103 = vmatpush1.bf16.msra.mxu0 %v79
    %104 = vmatprep.subr.bf16.mxu0 0
    %105 = vmatpush1.bf16.msra.mxu0 0
    %106 = vmatprep.subr.bf16.mxu0 0
    %107 = vmatpush1.bf16.msra.mxu0 0
    %108 = vmatprep.subr.bf16.mxu0 0
    %109 = vmatpush1.bf16.msra.mxu0 0
    %110 = vmatprep.subr.bf16.mxu0 0
    %111 = vmatpush1.bf16.msra.mxu0 0
    %112 = vmatprep.subr.bf16.mxu0 0
    %113 = vmatpush1.bf16.msra.mxu0 0
    %114 = vmatprep.subr.bf16.mxu0 0
    %115 = vmatpush1.bf16.msra.mxu0 0
    %116 = vmatprep.subr.bf16.mxu0 0
    %117 = vmatpush1.bf16.msra.mxu0 0
    %118 = vmatprep.subr.bf16.mxu0 0
    %119 = vmatpush1.bf16.msra.mxu0 0
    %120 = vmatprep.mubr.bf16.mxu0 0
    %121 = vmatmul.mubr.bf16.gmra.mrb[0].mxu0 %v16
    %v122 = vpop.f32.mrb[0].mxu0
    %v123 = vadd.f32 %v38, %v122
    %v124 = vpop.f32.mrb[0].mxu0
    %v125 = vpop.f32.mrb[0].mxu0
    %v126 = vpop.f32.mrb[0].mxu0
    %127 = vdwg.mxu0
    %128 = vst [vmem:[#allocation2] sm:$0x3] %v123
    // Predicated region
    $region14: #{dino_linear_eval_forward.5} parent=1 // pred_check
      _
    $region15: #{dino_linear_eval_forward.5} parent=1 // pred_check_branch
      %130 = sbr.rel (0) target = $region17
    $region16: #{dino_linear_eval_forward.5} parent=1 // pred_region
      %s132 = ssub.s32 32, 32
      %133 = vsyncadd [#allocation3], %s132
      %s135 = sshll.u32 [#allocation2], 4
      %s136 = int_to_ptr.vmem [resolvable:$true] %s135
      %138 = dma.vmem_to_hbm [thread:$0]  %s136, 32, %s3, [#allocation3]
    $region17: #{dino_linear_eval_forward.5} parent=1 // pred_fallthru
      _
    // Predicated region
    $region18: #{dino_linear_eval_forward.5} parent=1 // pred_check
      _
    $region19: #{dino_linear_eval_forward.5} parent=1 // pred_check_branch
      %140 = sbr.rel (0) target = $region21
    $region20: #{dino_linear_eval_forward.5} parent=1 // pred_region
      %141 = dma.done [#allocation3], 32
    $region21: #{dino_linear_eval_forward.5} parent=1 // pred_fallthru
      _
    %142 = vsyncpa [#allocation3], 1

// kernel: dino_linear_eval_forward.4
$region0: #{dino_linear_eval_forward.4}
  #allocation0 [shape = 'u32[]', space=smem, size = 0x4, offset = 0x4, fixed_abs, tag = 'smem constant byte address 0x4 - core index']
  #allocation1 [shape = 'u32[144,128]{1,0:T(1,128)}', space=vmem, size = 0x12000, scoped, tag = 'internal scratch']
  #allocation2 [shape = 'f32[2,5,32]{2,1,0:T(8,128)}', space=vmem, size = 0x2000, scoped, tag = 'scratch operand']
  %s0 = inlined_call_operand.vmem [shape: f32[2,5,32], index: 0, kind: input, shape index: {}]
  %s1 = inlined_call_operand.vmem [shape: f32[4,1,32], index: 1, kind: input, shape index: {}]
  %s2 = inlined_call_operand.vmem [shape: f32[4,1,32], index: 2, kind: input, shape index: {}]
  %s3 = inlined_call_operand.vmem [shape: bf16[4,32,96], index: 3, kind: input, shape index: {}]
  %s4 = inlined_call_operand.vmem [shape: f32[4,1,96], index: 4, kind: input, shape index: {}]
  %s5 = inlined_call_operand.vmem [shape: bf16[4,32,32], index: 5, kind: input, shape index: {}]
  %s6 = inlined_call_operand.vmem [shape: f32[4,1,32], index: 6, kind: input, shape index: {}]
  %s7 = inlined_call_operand.vmem [shape: f32[4,1,32], index: 7, kind: input, shape index: {}]
  %s8 = inlined_call_operand.vmem [shape: f32[4,1,32], index: 8, kind: input, shape index: {}]
  %s9 = inlined_call_operand.vmem [shape: bf16[4,32,128], index: 9, kind: input, shape index: {}]
  %s10 = inlined_call_operand.vmem [shape: f32[4,1,128], index: 10, kind: input, shape index: {}]
  %s11 = inlined_call_operand.vmem [shape: bf16[4,128,32], index: 11, kind: input, shape index: {}]
  %s12 = inlined_call_operand.vmem [shape: f32[4,1,32], index: 12, kind: input, shape index: {}]
  %s13 = inlined_call_operand.vmem [shape: f32[1,32], index: 13, kind: input, shape index: {}]
  %s14 = inlined_call_operand.vmem [shape: f32[1,32], index: 14, kind: input, shape index: {}]
  %s15 = inlined_call_operand.vmem [shape: f32[4,2,32], index: 15, kind: output, shape index: {}]
  %s16 = sld [smem:[#allocation0]]
  $region97: #{dino_linear_eval_forward.4} parent=0
    _
  %s18 = ssub.s32 1, %s16
  %s19 = scalar_select 0, %s18, %s16
  loop: start=0, step=1, limit=6
  $region2: #{dino_linear_eval_forward.4} parent=0 // loop_pre_header
    _
  $region3: #{dino_linear_eval_forward.4} parent=0 // loop_header
    %s21 = sphi 0, %s25
    %p22 = scmp.ge.s32.totalorder %s21, 6
    %s28 = sphi 0, %s40
    %s29 = sphi 0, %s36
    %s30 = sphi 0, %s28
    %s31 = sphi 0, %s29
    %s32 = sphi 0, %s30
    %s33 = sphi 0, %s31
    %s43 = sphi 0, %s45
    %s46 = sphi 0, %s43
    %s47 = sphi 0, %s46
    %s63 = sphi 0, %s47
    %s69 = sphi 0, %s71
    %s72 = sphi 0, %s69
    %s73 = sphi 0, %s72
    %s89 = sphi 0, %s73
    %s95 = sphi 0, %s97
    %s98 = sphi 0, %s95
    %s99 = sphi 0, %s98
    %s115 = sphi 0, %s99
    %s121 = sphi 0, %s123
    %s124 = sphi 0, %s121
    %s125 = sphi 0, %s124
    %s141 = sphi 0, %s125
    %s147 = sphi 0, %s149
    %s150 = sphi 0, %s147
    %s151 = sphi 0, %s150
    %s167 = sphi 0, %s151
    %s173 = sphi 0, %s175
    %s176 = sphi 0, %s173
    %s177 = sphi 0, %s176
    %s193 = sphi 0, %s177
    %s199 = sphi 0, %s201
    %s202 = sphi 0, %s199
    %s203 = sphi 0, %s202
    %s219 = sphi 0, %s203
    %s225 = sphi 0, %s227
    %s228 = sphi 0, %s225
    %s229 = sphi 0, %s228
    %s245 = sphi 0, %s229
    %s251 = sphi 0, %s253
    %s254 = sphi 0, %s251
    %s255 = sphi 0, %s254
    %s271 = sphi 0, %s255
    %s277 = sphi 0, %s279
    %s280 = sphi 0, %s277
    %s281 = sphi 0, %s280
    %s297 = sphi 0, %s281
    %s303 = sphi 0, %s305
    %s306 = sphi 0, %s303
    %s307 = sphi 0, %s306
    %s323 = sphi 0, %s307
    %s329 = sphi 0, %s331
    %s332 = sphi 0, %s329
    %s333 = sphi 0, %s332
    %s349 = sphi 0, %s333
    %s355 = sphi 0, %s357
    %s358 = sphi 0, %s355
    %s359 = sphi 0, %s358
    %s375 = sphi 0, %s359
    %s379 = sphi 0, %s379
    %s381 = sphi 0, %s379
    %s382 = sphi 0, %s381
    %s396 = sphi 0, %s382
    %s400 = sphi 0, %s400
    %s402 = sphi 0, %s400
    %s403 = sphi 0, %s402
    %s417 = sphi 0, %s403
    %s425 = sphi 0, %s427
    %s428 = sphi 0, %s425
    %s429 = sphi 0, %s428
    %s445 = sphi 0, %s429
  $region4: #{dino_linear_eval_forward.4} parent=0 // loop_header_branch
    %24 = sbr.rel (%p22) target = $region8
  $region5: #{dino_linear_eval_forward.4} parent=0 // loop_body
    %s26 = ssub.s32 %s21, 1
    %s27 = ssub.s32 %s21, 2
    %s34 = sadd.s32 1, %s29
    %p35 = scmp.ge.s32.totalorder %s34, 4
    %s36 = scalar_select %p35, 0, %s34
    %s37 = sadd.s32 1, %s28
    %s38 = scalar_select %p35, %s37, %s28
    %p39 = scmp.ge.s32.totalorder %s38, 1
    %s40 = scalar_select %p39, 0, %s38
    %s41 = ssub.s32 %s28, %s40
    %p42 = scmp.eq.s32.totalorder %s41, 0
    %s44 = sadd.s32 %s43, 1
    %s45 = scalar_select %p42, %s43, %s44
    %p48 = pneg %p42
    %p49 = scmp.eq.s32.totalorder %s21, 3
    %p50 = por %p48, %p49
    %p51 = scmp.ne.s32.totalorder %s43, %s46
    %p52 = scmp.eq.s32.totalorder %s21, 0
    %p53 = por %p51, %p52
    %p54 = scmp.ne.s32.totalorder %s43, %s46
    %p55 = scmp.eq.s32.totalorder %s26, 3
    %p56 = por %p54, %p55
    %p57 = scmp.ne.s32.totalorder %s46, %s47
    %p58 = scmp.eq.s32.totalorder %s26, 0
    %p59 = por %p57, %p58
    %p60 = scmp.ne.s32.totalorder %s46, %s47
    %p61 = scmp.eq.s32.totalorder %s27, 3
    %p62 = por %p60, %p61
    %p64 = scmp.ne.s32.totalorder %s47, %s63
    %p65 = scmp.eq.s32.totalorder %s27, 0
    %p66 = por %p64, %p65
    %s67 = ssub.s32 %s29, %s36
    %p68 = scmp.eq.s32.totalorder %s67, 0
    %s70 = sadd.s32 %s69, 1
    %s71 = scalar_select %p68, %s69, %s70
    %p74 = pneg %p68
    %p75 = scmp.eq.s32.totalorder %s21, 3
    %p76 = por %p74, %p75
    %p77 = scmp.ne.s32.totalorder %s69, %s72
    %p78 = scmp.eq.s32.totalorder %s21, 0
    %p79 = por %p77, %p78
    %p80 = scmp.ne.s32.totalorder %s69, %s72
    %p81 = scmp.eq.s32.totalorder %s26, 3
    %p82 = por %p80, %p81
    %p83 = scmp.ne.s32.totalorder %s72, %s73
    %p84 = scmp.eq.s32.totalorder %s26, 0
    %p85 = por %p83, %p84
    %p86 = scmp.ne.s32.totalorder %s72, %s73
    %p87 = scmp.eq.s32.totalorder %s27, 3
    %p88 = por %p86, %p87
    %p90 = scmp.ne.s32.totalorder %s73, %s89
    %p91 = scmp.eq.s32.totalorder %s27, 0
    %p92 = por %p90, %p91
    %s93 = ssub.s32 %s29, %s36
    %p94 = scmp.eq.s32.totalorder %s93, 0
    %s96 = sadd.s32 %s95, 1
    %s97 = scalar_select %p94, %s95, %s96
    %p100 = pneg %p94
    %p101 = scmp.eq.s32.totalorder %s21, 3
    %p102 = por %p100, %p101
    %p103 = scmp.ne.s32.totalorder %s95, %s98
    %p104 = scmp.eq.s32.totalorder %s21, 0
    %p105 = por %p103, %p104
    %p106 = scmp.ne.s32.totalorder %s95, %s98
    %p107 = scmp.eq.s32.totalorder %s26, 3
    %p108 = por %p106, %p107
    %p109 = scmp.ne.s32.totalorder %s98, %s99
    %p110 = scmp.eq.s32.totalorder %s26, 0
    %p111 = por %p109, %p110
    %p112 = scmp.ne.s32.totalorder %s98, %s99
    %p113 = scmp.eq.s32.totalorder %s27, 3
    %p114 = por %p112, %p113
    %p116 = scmp.ne.s32.totalorder %s99, %s115
    %p117 = scmp.eq.s32.totalorder %s27, 0
    %p118 = por %p116, %p117
    %s119 = ssub.s32 %s29, %s36
    %p120 = scmp.eq.s32.totalorder %s119, 0
    %s122 = sadd.s32 %s121, 1
    %s123 = scalar_select %p120, %s121, %s122
    %p126 = pneg %p120
    %p127 = scmp.eq.s32.totalorder %s21, 3
    %p128 = por %p126, %p127
    %p129 = scmp.ne.s32.totalorder %s121, %s124
    %p130 = scmp.eq.s32.totalorder %s21, 0
    %p131 = por %p129, %p130
    %p132 = scmp.ne.s32.totalorder %s121, %s124
    %p133 = scmp.eq.s32.totalorder %s26, 3
    %p134 = por %p132, %p133
    %p135 = scmp.ne.s32.totalorder %s124, %s125
    %p136 = scmp.eq.s32.totalorder %s26, 0
    %p137 = por %p135, %p136
    %p138 = scmp.ne.s32.totalorder %s124, %s125
    %p139 = scmp.eq.s32.totalorder %s27, 3
    %p140 = por %p138, %p139
    %p142 = scmp.ne.s32.totalorder %s125, %s141
    %p143 = scmp.eq.s32.totalorder %s27, 0
    %p144 = por %p142, %p143
    %s145 = ssub.s32 %s29, %s36
    %p146 = scmp.eq.s32.totalorder %s145, 0
    %s148 = sadd.s32 %s147, 1
    %s149 = scalar_select %p146, %s147, %s148
    %p152 = pneg %p146
    %p153 = scmp.eq.s32.totalorder %s21, 3
    %p154 = por %p152, %p153
    %p155 = scmp.ne.s32.totalorder %s147, %s150
    %p156 = scmp.eq.s32.totalorder %s21, 0
    %p157 = por %p155, %p156
    %p158 = scmp.ne.s32.totalorder %s147, %s150
    %p159 = scmp.eq.s32.totalorder %s26, 3
    %p160 = por %p158, %p159
    %p161 = scmp.ne.s32.totalorder %s150, %s151
    %p162 = scmp.eq.s32.totalorder %s26, 0
    %p163 = por %p161, %p162
    %p164 = scmp.ne.s32.totalorder %s150, %s151
    %p165 = scmp.eq.s32.totalorder %s27, 3
    %p166 = por %p164, %p165
    %p168 = scmp.ne.s32.totalorder %s151, %s167
    %p169 = scmp.eq.s32.totalorder %s27, 0
    %p170 = por %p168, %p169
    %s171 = ssub.s32 %s29, %s36
    %p172 = scmp.eq.s32.totalorder %s171, 0
    %s174 = sadd.s32 %s173, 1
    %s175 = scalar_select %p172, %s173, %s174
    %p178 = pneg %p172
    %p179 = scmp.eq.s32.totalorder %s21, 3
    %p180 = por %p178, %p179
    %p181 = scmp.ne.s32.totalorder %s173, %s176
    %p182 = scmp.eq.s32.totalorder %s21, 0
    %p183 = por %p181, %p182
    %p184 = scmp.ne.s32.totalorder %s173, %s176
    %p185 = scmp.eq.s32.totalorder %s26, 3
    %p186 = por %p184, %p185
    %p187 = scmp.ne.s32.totalorder %s176, %s177
    %p188 = scmp.eq.s32.totalorder %s26, 0
    %p189 = por %p187, %p188
    %p190 = scmp.ne.s32.totalorder %s176, %s177
    %p191 = scmp.eq.s32.totalorder %s27, 3
    %p192 = por %p190, %p191
    %p194 = scmp.ne.s32.totalorder %s177, %s193
    %p195 = scmp.eq.s32.totalorder %s27, 0
    %p196 = por %p194, %p195
    %s197 = ssub.s32 %s29, %s36
    %p198 = scmp.eq.s32.totalorder %s197, 0
    %s200 = sadd.s32 %s199, 1
    %s201 = scalar_select %p198, %s199, %s200
    %p204 = pneg %p198
    %p205 = scmp.eq.s32.totalorder %s21, 3
    %p206 = por %p204, %p205
    %p207 = scmp.ne.s32.totalorder %s199, %s202
    %p208 = scmp.eq.s32.totalorder %s21, 0
    %p209 = por %p207, %p208
    %p210 = scmp.ne.s32.totalorder %s199, %s202
    %p211 = scmp.eq.s32.totalorder %s26, 3
    %p212 = por %p210, %p211
    %p213 = scmp.ne.s32.totalorder %s202, %s203
    %p214 = scmp.eq.s32.totalorder %s26, 0
    %p215 = por %p213, %p214
    %p216 = scmp.ne.s32.totalorder %s202, %s203
    %p217 = scmp.eq.s32.totalorder %s27, 3
    %p218 = por %p216, %p217
    %p220 = scmp.ne.s32.totalorder %s203, %s219
    %p221 = scmp.eq.s32.totalorder %s27, 0
    %p222 = por %p220, %p221
    %s223 = ssub.s32 %s29, %s36
    %p224 = scmp.eq.s32.totalorder %s223, 0
    %s226 = sadd.s32 %s225, 1
    %s227 = scalar_select %p224, %s225, %s226
    %p230 = pneg %p224
    %p231 = scmp.eq.s32.totalorder %s21, 3
    %p232 = por %p230, %p231
    %p233 = scmp.ne.s32.totalorder %s225, %s228
    %p234 = scmp.eq.s32.totalorder %s21, 0
    %p235 = por %p233, %p234
    %p236 = scmp.ne.s32.totalorder %s225, %s228
    %p237 = scmp.eq.s32.totalorder %s26, 3
    %p238 = por %p236, %p237
    %p239 = scmp.ne.s32.totalorder %s228, %s229
    %p240 = scmp.eq.s32.totalorder %s26, 0
    %p241 = por %p239, %p240
    %p242 = scmp.ne.s32.totalorder %s228, %s229
    %p243 = scmp.eq.s32.totalorder %s27, 3
    %p244 = por %p242, %p243
    %p246 = scmp.ne.s32.totalorder %s229, %s245
    %p247 = scmp.eq.s32.totalorder %s27, 0
    %p248 = por %p246, %p247
    %s249 = ssub.s32 %s29, %s36
    %p250 = scmp.eq.s32.totalorder %s249, 0
    %s252 = sadd.s32 %s251, 1
    %s253 = scalar_select %p250, %s251, %s252
    %p256 = pneg %p250
    %p257 = scmp.eq.s32.totalorder %s21, 3
    %p258 = por %p256, %p257
    %p259 = scmp.ne.s32.totalorder %s251, %s254
    %p260 = scmp.eq.s32.totalorder %s21, 0
    %p261 = por %p259, %p260
    %p262 = scmp.ne.s32.totalorder %s251, %s254
    %p263 = scmp.eq.s32.totalorder %s26, 3
    %p264 = por %p262, %p263
    %p265 = scmp.ne.s32.totalorder %s254, %s255
    %p266 = scmp.eq.s32.totalorder %s26, 0
    %p267 = por %p265, %p266
    %p268 = scmp.ne.s32.totalorder %s254, %s255
    %p269 = scmp.eq.s32.totalorder %s27, 3
    %p270 = por %p268, %p269
    %p272 = scmp.ne.s32.totalorder %s255, %s271
    %p273 = scmp.eq.s32.totalorder %s27, 0
    %p274 = por %p272, %p273
    %s275 = ssub.s32 %s29, %s36
    %p276 = scmp.eq.s32.totalorder %s275, 0
    %s278 = sadd.s32 %s277, 1
    %s279 = scalar_select %p276, %s277, %s278
    %p282 = pneg %p276
    %p283 = scmp.eq.s32.totalorder %s21, 3
    %p284 = por %p282, %p283
    %p285 = scmp.ne.s32.totalorder %s277, %s280
    %p286 = scmp.eq.s32.totalorder %s21, 0
    %p287 = por %p285, %p286
    %p288 = scmp.ne.s32.totalorder %s277, %s280
    %p289 = scmp.eq.s32.totalorder %s26, 3
    %p290 = por %p288, %p289
    %p291 = scmp.ne.s32.totalorder %s280, %s281
    %p292 = scmp.eq.s32.totalorder %s26, 0
    %p293 = por %p291, %p292
    %p294 = scmp.ne.s32.totalorder %s280, %s281
    %p295 = scmp.eq.s32.totalorder %s27, 3
    %p296 = por %p294, %p295
    %p298 = scmp.ne.s32.totalorder %s281, %s297
    %p299 = scmp.eq.s32.totalorder %s27, 0
    %p300 = por %p298, %p299
    %s301 = ssub.s32 %s29, %s36
    %p302 = scmp.eq.s32.totalorder %s301, 0
    %s304 = sadd.s32 %s303, 1
    %s305 = scalar_select %p302, %s303, %s304
    %p308 = pneg %p302
    %p309 = scmp.eq.s32.totalorder %s21, 3
    %p310 = por %p308, %p309
    %p311 = scmp.ne.s32.totalorder %s303, %s306
    %p312 = scmp.eq.s32.totalorder %s21, 0
    %p313 = por %p311, %p312
    %p314 = scmp.ne.s32.totalorder %s303, %s306
    %p315 = scmp.eq.s32.totalorder %s26, 3
    %p316 = por %p314, %p315
    %p317 = scmp.ne.s32.totalorder %s306, %s307
    %p318 = scmp.eq.s32.totalorder %s26, 0
    %p319 = por %p317, %p318
    %p320 = scmp.ne.s32.totalorder %s306, %s307
    %p321 = scmp.eq.s32.totalorder %s27, 3
    %p322 = por %p320, %p321
    %p324 = scmp.ne.s32.totalorder %s307, %s323
    %p325 = scmp.eq.s32.totalorder %s27, 0
    %p326 = por %p324, %p325
    %s327 = ssub.s32 %s29, %s36
    %p328 = scmp.eq.s32.totalorder %s327, 0
    %s330 = sadd.s32 %s329, 1
    %s331 = scalar_select %p328, %s329, %s330
    %p334 = pneg %p328
    %p335 = scmp.eq.s32.totalorder %s21, 3
    %p336 = por %p334, %p335
    %p337 = scmp.ne.s32.totalorder %s329, %s332
    %p338 = scmp.eq.s32.totalorder %s21, 0
    %p339 = por %p337, %p338
    %p340 = scmp.ne.s32.totalorder %s329, %s332
    %p341 = scmp.eq.s32.totalorder %s26, 3
    %p342 = por %p340, %p341
    %p343 = scmp.ne.s32.totalorder %s332, %s333
    %p344 = scmp.eq.s32.totalorder %s26, 0
    %p345 = por %p343, %p344
    %p346 = scmp.ne.s32.totalorder %s332, %s333
    %p347 = scmp.eq.s32.totalorder %s27, 3
    %p348 = por %p346, %p347
    %p350 = scmp.ne.s32.totalorder %s333, %s349
    %p351 = scmp.eq.s32.totalorder %s27, 0
    %p352 = por %p350, %p351
    %s353 = ssub.s32 %s29, %s36
    %p354 = scmp.eq.s32.totalorder %s353, 0
    %s356 = sadd.s32 %s355, 1
    %s357 = scalar_select %p354, %s355, %s356
    %p360 = pneg %p354
    %p361 = scmp.eq.s32.totalorder %s21, 3
    %p362 = por %p360, %p361
    %p363 = scmp.ne.s32.totalorder %s355, %s358
    %p364 = scmp.eq.s32.totalorder %s21, 0
    %p365 = por %p363, %p364
    %p366 = scmp.ne.s32.totalorder %s355, %s358
    %p367 = scmp.eq.s32.totalorder %s26, 3
    %p368 = por %p366, %p367
    %p369 = scmp.ne.s32.totalorder %s358, %s359
    %p370 = scmp.eq.s32.totalorder %s26, 0
    %p371 = por %p369, %p370
    %p372 = scmp.ne.s32.totalorder %s358, %s359
    %p373 = scmp.eq.s32.totalorder %s27, 3
    %p374 = por %p372, %p373
    %p376 = scmp.ne.s32.totalorder %s359, %s375
    %p377 = scmp.eq.s32.totalorder %s27, 0
    %p378 = por %p376, %p377
    %s380 = sadd.s32 %s379, 1
    %p383 = scmp.eq.s32.totalorder %s21, 3
    %p384 = scmp.ne.s32.totalorder %s379, %s381
    %p385 = scmp.eq.s32.totalorder %s21, 0
    %p386 = por %p384, %p385
    %p387 = scmp.ne.s32.totalorder %s379, %s381
    %p388 = scmp.eq.s32.totalorder %s26, 3
    %p389 = por %p387, %p388
    %p390 = scmp.ne.s32.totalorder %s381, %s382
    %p391 = scmp.eq.s32.totalorder %s26, 0
    %p392 = por %p390, %p391
    %p393 = scmp.ne.s32.totalorder %s381, %s382
    %p394 = scmp.eq.s32.totalorder %s27, 3
    %p395 = por %p393, %p394
    %p397 = scmp.ne.s32.totalorder %s382, %s396
    %p398 = scmp.eq.s32.totalorder %s27, 0
    %p399 = por %p397, %p398
    %s401 = sadd.s32 %s400, 1
    %p404 = scmp.eq.s32.totalorder %s21, 3
    %p405 = scmp.ne.s32.totalorder %s400, %s402
    %p406 = scmp.eq.s32.totalorder %s21, 0
    %p407 = por %p405, %p406
    %p408 = scmp.ne.s32.totalorder %s400, %s402
    %p409 = scmp.eq.s32.totalorder %s26, 3
    %p410 = por %p408, %p409
    %p411 = scmp.ne.s32.totalorder %s402, %s403
    %p412 = scmp.eq.s32.totalorder %s26, 0
    %p413 = por %p411, %p412
    %p414 = scmp.ne.s32.totalorder %s402, %s403
    %p415 = scmp.eq.s32.totalorder %s27, 3
    %p416 = por %p414, %p415
    %p418 = scmp.ne.s32.totalorder %s403, %s417
    %p419 = scmp.eq.s32.totalorder %s27, 0
    %p420 = por %p418, %p419
    %s421 = ssub.s32 %s29, %s36
    %s422 = ssub.s32 %s28, %s40
    %s423 = sor.u32 %s421, %s422
    %p424 = scmp.eq.s32.totalorder %s423, 0
    %s426 = sadd.s32 %s425, 1
    %s427 = scalar_select %p424, %s425, %s426
    %p430 = pneg %p424
    %p431 = scmp.eq.s32.totalorder %s21, 3
    %p432 = por %p430, %p431
    %p433 = scmp.ne.s32.totalorder %s425, %s428
    %p434 = scmp.eq.s32.totalorder %s21, 0
    %p435 = por %p433, %p434
    %p436 = scmp.ne.s32.totalorder %s425, %s428
    %p437 = scmp.eq.s32.totalorder %s26, 3
    %p438 = por %p436, %p437
    %p439 = scmp.ne.s32.totalorder %s428, %s429
    %p440 = scmp.eq.s32.totalorder %s26, 0
    %p441 = por %p439, %p440
    %p442 = scmp.ne.s32.totalorder %s428, %s429
    %p443 = scmp.eq.s32.totalorder %s27, 3
    %p444 = por %p442, %p443
    %p446 = scmp.ne.s32.totalorder %s429, %s445
    %p447 = scmp.eq.s32.totalorder %s27, 0
    %p448 = por %p446, %p447
    %p449 = scmp.le.s32.totalorder 1, %s21
    %p450 = scmp.lt.s32.totalorder %s21, 5
    %p451 = pnand %p449, %p450
    %p452 = pneg %p451
    // Predicated region
    $region9: #{dino_linear_eval_forward.4} parent=5 // pred_check
      _
    $region10: #{dino_linear_eval_forward.4} parent=5 // pred_check_branch
      %454 = sbr.rel (%p451) target = $region12
    $region11: #{dino_linear_eval_forward.4} parent=5 // pred_region
      %s455 = ssub.s32 %s21, 1
      // Predicated region
      $region13: #{dino_linear_eval_forward.4} parent=11 // pred_check
        %p456 = pneg %p59
      $region14: #{dino_linear_eval_forward.4} parent=11 // pred_check_branch
        %458 = sbr.rel (%p456) target = $region16
      $region15: #{dino_linear_eval_forward.4} parent=11 // pred_region
        %s459 = smul.u32 2, %s30
        %p460 = scmp.lt.s32.totalorder %s459, 1
        %s461 = scalar_select %p460, %s459, 1
        %s462 = smul.addr %s461, 8
        %s463 = scalar_lea.vmem %s0, %s462
        %s464 = smul.u32 2, %s30
      $region16: #{dino_linear_eval_forward.4} parent=11 // pred_fallthru
        _
      // Predicated region
      $region17: #{dino_linear_eval_forward.4} parent=11 // pred_check
        %p465 = pneg %p392
      $region18: #{dino_linear_eval_forward.4} parent=11 // pred_check_branch
        %467 = sbr.rel (%p465) target = $region20
      $region19: #{dino_linear_eval_forward.4} parent=11 // pred_region
        _
      $region20: #{dino_linear_eval_forward.4} parent=11 // pred_fallthru
        _
      // Predicated region
      $region21: #{dino_linear_eval_forward.4} parent=11 // pred_check
        %p468 = pneg %p413
      $region22: #{dino_linear_eval_forward.4} parent=11 // pred_check_branch
        %470 = sbr.rel (%p468) target = $region24
      $region23: #{dino_linear_eval_forward.4} parent=11 // pred_region
        _
      $region24: #{dino_linear_eval_forward.4} parent=11 // pred_fallthru
        _
    $region12: #{dino_linear_eval_forward.4} parent=5 // pred_fallthru
      _
    %p471 = scmp.lt.s32.totalorder %s21, 4
    // Predicated region
    $region25: #{dino_linear_eval_forward.4} parent=5 // pred_check
      %p472 = pneg %p471
    $region26: #{dino_linear_eval_forward.4} parent=5 // pred_check_branch
      %474 = sbr.rel (%p472) target = $region28
    $region27: #{dino_linear_eval_forward.4} parent=5 // pred_region
      // Predicated region
      $region29: #{dino_linear_eval_forward.4} parent=27 // pred_check
        %p475 = pneg %p79
      $region30: #{dino_linear_eval_forward.4} parent=27 // pred_check_branch
        %477 = sbr.rel (%p475) target = $region32
      $region31: #{dino_linear_eval_forward.4} parent=27 // pred_region
        %p478 = scmp.lt.s32.totalorder %s29, 3
        %s479 = scalar_select %p478, %s29, 3
        %s480 = scalar_lea.vmem %s1, %s479
      $region32: #{dino_linear_eval_forward.4} parent=27 // pred_fallthru
        _
      // Predicated region
      $region33: #{dino_linear_eval_forward.4} parent=27 // pred_check
        %p481 = pneg %p105
      $region34: #{dino_linear_eval_forward.4} parent=27 // pred_check_branch
        %483 = sbr.rel (%p481) target = $region36
      $region35: #{dino_linear_eval_forward.4} parent=27 // pred_region
        %p484 = scmp.lt.s32.totalorder %s29, 3
        %s485 = scalar_select %p484, %s29, 3
        %s486 = scalar_lea.vmem %s2, %s485
      $region36: #{dino_linear_eval_forward.4} parent=27 // pred_fallthru
        _
      // Predicated region
      $region37: #{dino_linear_eval_forward.4} parent=27 // pred_check
        %p487 = pneg %p131
      $region38: #{dino_linear_eval_forward.4} parent=27 // pred_check_branch
        %489 = sbr.rel (%p487) target = $region40
      $region39: #{dino_linear_eval_forward.4} parent=27 // pred_region
        %p490 = scmp.lt.s32.totalorder %s29, 3
        %s491 = scalar_select %p490, %s29, 3
        %s492 = smul.addr %s491, 4
        %s493 = smul.addr %s492, 4
        %s494 = scalar_lea.vmem %s3, %s493
      $region40: #{dino_linear_eval_forward.4} parent=27 // pred_fallthru
        _
      // Predicated region
      $region41: #{dino_linear_eval_forward.4} parent=27 // pred_check
        %p495 = pneg %p157
      $region42: #{dino_linear_eval_forward.4} parent=27 // pred_check_branch
        %497 = sbr.rel (%p495) target = $region44
      $region43: #{dino_linear_eval_forward.4} parent=27 // pred_region
        %p498 = scmp.lt.s32.totalorder %s29, 3
        %s499 = scalar_select %p498, %s29, 3
        %s500 = scalar_lea.vmem %s4, %s499
      $region44: #{dino_linear_eval_forward.4} parent=27 // pred_fallthru
        _
      // Predicated region
      $region45: #{dino_linear_eval_forward.4} parent=27 // pred_check
        %p501 = pneg %p183
      $region46: #{dino_linear_eval_forward.4} parent=27 // pred_check_branch
        %503 = sbr.rel (%p501) target = $region48
      $region47: #{dino_linear_eval_forward.4} parent=27 // pred_region
        %p504 = scmp.lt.s32.totalorder %s29, 3
        %s505 = scalar_select %p504, %s29, 3
        %s506 = smul.addr %s505, 4
        %s507 = smul.addr %s506, 4
        %s508 = scalar_lea.vmem %s5, %s507
      $region48: #{dino_linear_eval_forward.4} parent=27 // pred_fallthru
        _
      // Predicated region
      $region49: #{dino_linear_eval_forward.4} parent=27 // pred_check
        %p509 = pneg %p209
      $region50: #{dino_linear_eval_forward.4} parent=27 // pred_check_branch
        %511 = sbr.rel (%p509) target = $region52
      $region51: #{dino_linear_eval_forward.4} parent=27 // pred_region
        %p512 = scmp.lt.s32.totalorder %s29, 3
        %s513 = scalar_select %p512, %s29, 3
        %s514 = scalar_lea.vmem %s6, %s513
      $region52: #{dino_linear_eval_forward.4} parent=27 // pred_fallthru
        _
      // Predicated region
      $region53: #{dino_linear_eval_forward.4} parent=27 // pred_check
        %p515 = pneg %p235
      $region54: #{dino_linear_eval_forward.4} parent=27 // pred_check_branch
        %517 = sbr.rel (%p515) target = $region56
      $region55: #{dino_linear_eval_forward.4} parent=27 // pred_region
        %p518 = scmp.lt.s32.totalorder %s29, 3
        %s519 = scalar_select %p518, %s29, 3
        %s520 = scalar_lea.vmem %s7, %s519
      $region56: #{dino_linear_eval_forward.4} parent=27 // pred_fallthru
        _
      // Predicated region
      $region57: #{dino_linear_eval_forward.4} parent=27 // pred_check
        %p521 = pneg %p261
      $region58: #{dino_linear_eval_forward.4} parent=27 // pred_check_branch
        %523 = sbr.rel (%p521) target = $region60
      $region59: #{dino_linear_eval_forward.4} parent=27 // pred_region
        %p524 = scmp.lt.s32.totalorder %s29, 3
        %s525 = scalar_select %p524, %s29, 3
        %s526 = scalar_lea.vmem %s8, %s525
      $region60: #{dino_linear_eval_forward.4} parent=27 // pred_fallthru
        _
      // Predicated region
      $region61: #{dino_linear_eval_forward.4} parent=27 // pred_check
        %p527 = pneg %p287
      $region62: #{dino_linear_eval_forward.4} parent=27 // pred_check_branch
        %529 = sbr.rel (%p527) target = $region64
      $region63: #{dino_linear_eval_forward.4} parent=27 // pred_region
        %p530 = scmp.lt.s32.totalorder %s29, 3
        %s531 = scalar_select %p530, %s29, 3
        %s532 = smul.addr %s531, 4
        %s533 = smul.addr %s532, 4
        %s534 = scalar_lea.vmem %s9, %s533
      $region64: #{dino_linear_eval_forward.4} parent=27 // pred_fallthru
        _
      // Predicated region
      $region65: #{dino_linear_eval_forward.4} parent=27 // pred_check
        %p535 = pneg %p313
      $region66: #{dino_linear_eval_forward.4} parent=27 // pred_check_branch
        %537 = sbr.rel (%p535) target = $region68
      $region67: #{dino_linear_eval_forward.4} parent=27 // pred_region
        %p538 = scmp.lt.s32.totalorder %s29, 3
        %s539 = scalar_select %p538, %s29, 3
        %s540 = scalar_lea.vmem %s10, %s539
      $region68: #{dino_linear_eval_forward.4} parent=27 // pred_fallthru
        _
      // Predicated region
      $region69: #{dino_linear_eval_forward.4} parent=27 // pred_check
        %p541 = pneg %p339
      $region70: #{dino_linear_eval_forward.4} parent=27 // pred_check_branch
        %543 = sbr.rel (%p541) target = $region72
      $region71: #{dino_linear_eval_forward.4} parent=27 // pred_region
        %p544 = scmp.lt.s32.totalorder %s29, 3
        %s545 = scalar_select %p544, %s29, 3
        %s546 = smul.addr %s545, 16
        %s547 = smul.addr %s546, 4
        %s548 = scalar_lea.vmem %s11, %s547
      $region72: #{dino_linear_eval_forward.4} parent=27 // pred_fallthru
        _
      // Predicated region
      $region73: #{dino_linear_eval_forward.4} parent=27 // pred_check
        %p549 = pneg %p365
      $region74: #{dino_linear_eval_forward.4} parent=27 // pred_check_branch
        %551 = sbr.rel (%p549) target = $region76
      $region75: #{dino_linear_eval_forward.4} parent=27 // pred_region
        %p552 = scmp.lt.s32.totalorder %s29, 3
        %s553 = scalar_select %p552, %s29, 3
        %s554 = scalar_lea.vmem %s12, %s553
      $region76: #{dino_linear_eval_forward.4} parent=27 // pred_fallthru
        _
    $region28: #{dino_linear_eval_forward.4} parent=5 // pred_fallthru
      _
    %p555 = scmp.le.s32.totalorder 1, %s21
    %p556 = scmp.lt.s32.totalorder %s21, 5
    %p557 = pnand %p555, %p556
    %p558 = pneg %p557
    // Predicated region
    $region77: #{dino_linear_eval_forward.4} parent=5 // pred_check
      _
    $region78: #{dino_linear_eval_forward.4} parent=5 // pred_check_branch
      %560 = sbr.rel (%p557) target = $region80
    $region79: #{dino_linear_eval_forward.4} parent=5 // pred_region
      %s561 = ssub.s32 %s21, 1
      %s562 = smul.u32 2, %s30
      %p563 = scmp.lt.s32.totalorder %s562, 1
      %s564 = scalar_select %p563, %s562, 1
      %s565 = smul.addr %s564, 8
      %s566 = scalar_lea.vmem %s0, %s565
      %p567 = pneg %p59
      %p568 = pneg %p56
      %p569 = scmp.lt.s32.totalorder %s31, 3
      %s570 = scalar_select %p569, %s31, 3
      %s571 = scalar_lea.vmem %s1, %s570
      %p572 = pneg %p85
      %p573 = pneg %p82
      %p574 = scmp.lt.s32.totalorder %s31, 3
      %s575 = scalar_select %p574, %s31, 3
      %s576 = scalar_lea.vmem %s2, %s575
      %p577 = pneg %p111
      %p578 = pneg %p108
      %p579 = scmp.lt.s32.totalorder %s31, 3
      %s580 = scalar_select %p579, %s31, 3
      %s581 = smul.addr %s580, 4
      %s582 = smul.addr %s581, 4
      %s583 = scalar_lea.vmem %s3, %s582
      %p584 = pneg %p137
      %p585 = pneg %p134
      %p586 = scmp.lt.s32.totalorder %s31, 3
      %s587 = scalar_select %p586, %s31, 3
      %s588 = scalar_lea.vmem %s4, %s587
      %p589 = pneg %p163
      %p590 = pneg %p160
      %p591 = scmp.lt.s32.totalorder %s31, 3
      %s592 = scalar_select %p591, %s31, 3
      %s593 = smul.addr %s592, 4
      %s594 = smul.addr %s593, 4
      %s595 = scalar_lea.vmem %s5, %s594
      %p596 = pneg %p189
      %p597 = pneg %p186
      %p598 = scmp.lt.s32.totalorder %s31, 3
      %s599 = scalar_select %p598, %s31, 3
      %s600 = scalar_lea.vmem %s6, %s599
      %p601 = pneg %p215
      %p602 = pneg %p212
      %p603 = scmp.lt.s32.totalorder %s31, 3
      %s604 = scalar_select %p603, %s31, 3
      %s605 = scalar_lea.vmem %s7, %s604
      %p606 = pneg %p241
      %p607 = pneg %p238
      %p608 = scmp.lt.s32.totalorder %s31, 3
      %s609 = scalar_select %p608, %s31, 3
      %s610 = scalar_lea.vmem %s8, %s609
      %p611 = pneg %p267
      %p612 = pneg %p264
      %p613 = scmp.lt.s32.totalorder %s31, 3
      %s614 = scalar_select %p613, %s31, 3
      %s615 = smul.addr %s614, 4
      %s616 = smul.addr %s615, 4
      %s617 = scalar_lea.vmem %s9, %s616
      %p618 = pneg %p293
      %p619 = pneg %p290
      %p620 = scmp.lt.s32.totalorder %s31, 3
      %s621 = scalar_select %p620, %s31, 3
      %s622 = scalar_lea.vmem %s10, %s621
      %p623 = pneg %p319
      %p624 = pneg %p316
      %p625 = scmp.lt.s32.totalorder %s31, 3
      %s626 = scalar_select %p625, %s31, 3
      %s627 = smul.addr %s626, 16
      %s628 = smul.addr %s627, 4
      %s629 = scalar_lea.vmem %s11, %s628
      %p630 = pneg %p345
      %p631 = pneg %p342
      %p632 = scmp.lt.s32.totalorder %s31, 3
      %s633 = scalar_select %p632, %s31, 3
      %s634 = scalar_lea.vmem %s12, %s633
      %p635 = pneg %p371
      %p636 = pneg %p368
      %p637 = pneg %p392
      %p638 = pneg %p389
      %p639 = pneg %p413
      %p640 = pneg %p410
      %p641 = pneg %p441
      %p642 = pneg %p438
      %p643 = scmp.lt.s32.totalorder %s31, 3
      %s644 = scalar_select %p643, %s31, 3
      %p645 = scmp.lt.s32.totalorder %s30, 0
      %s646 = scalar_select %p645, %s30, 0
      %s647 = sadd.s32 %s646, %s644
      %s648 = smul.addr %s647, 2
      %s649 = scalar_lea.vmem %s15, %s648
      %s650 = smul.u32 2, %s30
      %p651 = scmp.lt.s32.totalorder %s650, 1
      %s652 = scalar_select %p651, %s650, 1
      %s653 = smul.addr %s652, 8
      %s654 = scalar_lea.vmem %s0, %s653
      %s655 = smul.u32 2, %s30
      %p656 = scmp.lt.s32.totalorder %s31, 3
      %s657 = scalar_select %p656, %s31, 3
      %s658 = scalar_lea.vmem %s1, %s657
      %p659 = scmp.lt.s32.totalorder %s31, 3
      %s660 = scalar_select %p659, %s31, 3
      %s661 = scalar_lea.vmem %s2, %s660
      %p662 = scmp.lt.s32.totalorder %s31, 3
      %s663 = scalar_select %p662, %s31, 3
      %s664 = smul.addr %s663, 4
      %s665 = smul.addr %s664, 4
      %s666 = scalar_lea.vmem %s3, %s665
      %p667 = scmp.lt.s32.totalorder %s31, 3
      %s668 = scalar_select %p667, %s31, 3
      %s669 = scalar_lea.vmem %s4, %s668
      %p670 = scmp.lt.s32.totalorder %s31, 3
      %s671 = scalar_select %p670, %s31, 3
      %s672 = smul.addr %s671, 4
      %s673 = smul.addr %s672, 4
      %s674 = scalar_lea.vmem %s5, %s673
      %p675 = scmp.lt.s32.totalorder %s31, 3
      %s676 = scalar_select %p675, %s31, 3
      %s677 = scalar_lea.vmem %s6, %s676
      %p678 = scmp.lt.s32.totalorder %s31, 3
      %s679 = scalar_select %p678, %s31, 3
      %s680 = scalar_lea.vmem %s7, %s679
      %p681 = scmp.lt.s32.totalorder %s31, 3
      %s682 = scalar_select %p681, %s31, 3
      %s683 = scalar_lea.vmem %s8, %s682
      %p684 = scmp.lt.s32.totalorder %s31, 3
      %s685 = scalar_select %p684, %s31, 3
      %s686 = smul.addr %s685, 4
      %s687 = smul.addr %s686, 4
      %s688 = scalar_lea.vmem %s9, %s687
      %p689 = scmp.lt.s32.totalorder %s31, 3
      %s690 = scalar_select %p689, %s31, 3
      %s691 = scalar_lea.vmem %s10, %s690
      %p692 = scmp.lt.s32.totalorder %s31, 3
      %s693 = scalar_select %p692, %s31, 3
      %s694 = smul.addr %s693, 16
      %s695 = smul.addr %s694, 4
      %s696 = scalar_lea.vmem %s11, %s695
      %p697 = scmp.lt.s32.totalorder %s31, 3
      %s698 = scalar_select %p697, %s31, 3
      %s699 = scalar_lea.vmem %s12, %s698
      %p700 = scmp.lt.s32.totalorder %s31, 3
      %s701 = scalar_select %p700, %s31, 3
      %p702 = scmp.lt.s32.totalorder %s30, 0
      %s703 = scalar_select %p702, %s30, 0
      %s704 = sadd.s32 %s703, %s701
      %s705 = smul.addr %s704, 2
      %s706 = scalar_lea.vmem %s15, %s705
      %p708 = scmp.eq.s32.totalorder %s31, 0
      // Predicated region
      $region81: #{dino_linear_eval_forward.4} parent=79 // pred_check
        %p709 = pneg %p708
      $region82: #{dino_linear_eval_forward.4} parent=79 // pred_check_branch
        %711 = sbr.rel (%p709) target = $region84
      $region83: #{dino_linear_eval_forward.4} parent=79 // pred_region
        %v712 = vld [vmem:[%s654] sm:$0x1f]
        %v713 = vld [vmem:[%s654 + $0x8] sm:$0x1f]
        %vm714 = vcmask 258048
        %715 = vst.msk [vmem:[#allocation2] sm:$0x1f] %vm714, %v712
        %716 = vst.msk [vmem:[#allocation2 + $0x8] sm:$0x1f] %vm714, %v713
      $region84: #{dino_linear_eval_forward.4} parent=79 // pred_fallthru
        _
      %v717 = vld [vmem:[#allocation2] sm:$0x1f]
      %v718 = vld [vmem:[#allocation2 + $0x8] sm:$0x1f]
      %v719 = vld [vmem:[%s658] sm:$0x1]
      %v720 = vld [vmem:[%s661] sm:$0x1]
      %vm721 = vcmask 258048
      %v722 = vsel %vm721, %v717, 0.0
      %723 = vadd.xlane.f32.xlu0 %v722
      %v724 = vpop.xlane.xlu0 %723
      %v725 = vsel %vm721, %v718, 0.0
      %726 = vadd.xlane.f32.xlu0 %v725
      %v727 = vpop.xlane.xlu0 %726
      %v728 = vrcp.pop 32.0
      %v729 = vmul.f32 %v724, %v728
      %v730 = vmul.f32 %v727, %v728
      %v731 = vsub.f32 %v717, %v729
      %v732 = vsub.f32 %v718, %v730
      %v733 = vmul.f32 %v731, %v731
      %v734 = vmul.f32 %v732, %v732
      %v735 = vsel %vm721, %v733, 0.0
      %736 = vadd.xlane.f32.xlu0 %v735
      %v737 = vpop.xlane.xlu0 %736
      %v738 = vsel %vm721, %v734, 0.0
      %739 = vadd.xlane.f32.xlu0 %v738
      %v740 = vpop.xlane.xlu0 %739
      %v741 = vmul.f32 %v737, %v728
      %v742 = vmul.f32 %v740, %v728
      %v743 = vadd.f32 %v741, 1e-06
      %v744 = vadd.f32 %v742, 1e-06
      %v745 = vrsqrt.pop %v743
      %v746 = vrsqrt.pop %v744
      %v747 = vmul.f32 %v731, %v745
      %v748 = vmul.f32 %v732, %v746
      %v750 = vlaneseq
      %v751 = vshrl.u32 %v750, 7
      %v752 = vsub.s32 0, %v751
      %v753 = vrot.slane %v719, %v752
      %v755 = vmul.f32 %v747, %v753
      %v756 = vmul.f32 %v748, %v753
      %v758 = vlaneseq
      %v759 = vshrl.u32 %v758, 7
      %v760 = vsub.s32 0, %v759
      %v761 = vrot.slane %v720, %v760
      %v763 = vadd.f32 %v755, %v761
      %v764 = vadd.f32 %v756, %v761
      %v765 = vpack.c.bf16 %v763, %v763
      %v766 = vpack.c.bf16 %v764, %v764
      %v767 = vld [vmem:[%s666] sm:$0xf]
      %v768 = vld [vmem:[%s666 + $0x4] sm:$0xf]
      %v769 = vld [vmem:[%s666 + $0x8] sm:$0xf]
      %v770 = vld [vmem:[%s666 + $0xc] sm:$0xf]
      %v771 = vld [vmem:[%s669] sm:$0x1]
      %v773 = vlaneseq
      %v774 = vshrl.u32 %v773, 7
      %v775 = vsub.s32 0, %v774
      %v776 = vrot.slane %v771, %v775
      %v780 = vunpack.c.l.s4 1966171168
      %v781 = vunpack.c.0.s8 %v780
      %v782 = vlaneseq
      %v783 = vshrl.u32 %v782, 7
      %v784 = vsub.s32 %v781, %v783
      %v785 = vrot.slane %v765, %v784
      %v786 = vcombine.high %v785, %v785
      %v788 = vunpack.c.l.s4 1966171168
      %v789 = vunpack.c.0.s8 %v788
      %v790 = vlaneseq
      %v791 = vshrl.u32 %v790, 7
      %v792 = vsub.s32 %v789, %v791
      %v793 = vrot.slane %v785, %v792
      %v795 = vunpack.c.l.s4 1966171168
      %v796 = vunpack.c.0.s8 %v795
      %v797 = vlaneseq
      %v798 = vshrl.u32 %v797, 7
      %v799 = vsub.s32 %v796, %v798
      %v800 = vrot.slane %v786, %v799
      %v801 = vcombine.high %v793, %v793
      %v803 = vunpack.c.l.s4 1966171168
      %v804 = vunpack.c.0.s8 %v803
      %v805 = vlaneseq
      %v806 = vshrl.u32 %v805, 7
      %v807 = vsub.s32 %v804, %v806
      %v808 = vrot.slane %v766, %v807
      %v809 = vcombine.high %v808, %v808
      %v811 = vunpack.c.l.s4 1966171168
      %v812 = vunpack.c.0.s8 %v811
      %v813 = vlaneseq
      %v814 = vshrl.u32 %v813, 7
      %v815 = vsub.s32 %v812, %v814
      %v816 = vrot.slane %v808, %v815
      %v818 = vunpack.c.l.s4 1966171168
      %v819 = vunpack.c.0.s8 %v818
      %v820 = vlaneseq
      %v821 = vshrl.u32 %v820, 7
      %v822 = vsub.s32 %v819, %v821
      %v823 = vrot.slane %v809, %v822
      %v824 = vcombine.high %v816, %v816
      %v825 = vunpack.i.l.s16 %v793
      %v826 = vunpack.i.h.s16 %v793
      %v827 = vunpack.i.l.s16 %v800
      %v828 = vunpack.i.h.s16 %v800
      %v829 = vunpack.i.l.s16 %v801
      %v830 = vunpack.i.l.s16 %v816
      %v831 = vunpack.i.h.s16 %v816
      %v832 = vunpack.i.l.s16 %v823
      %v833 = vunpack.i.h.s16 %v823
      %v834 = vunpack.i.l.s16 %v824
      %v835 = vcombine.high %v776, %v776
      %v837 = vunpack.c.l.s4 1966171168
      %v838 = vunpack.c.0.s8 %v837
      %v839 = vlaneseq
      %v840 = vshrl.u32 %v839, 7
      %v841 = vsub.s32 %v838, %v840
      %v842 = vrot.slane %v776, %v841
      %v844 = vunpack.c.l.s4 1966171168
      %v845 = vunpack.c.0.s8 %v844
      %v846 = vlaneseq
      %v847 = vshrl.u32 %v846, 7
      %v848 = vsub.s32 %v845, %v847
      %v849 = vrot.slane %v835, %v848
      %v850 = vcombine.high %v842, %v842
      %v852 = vunpack.c.l.s4 1966171168
      %v853 = vunpack.c.0.s8 %v852
      %v854 = vlaneseq
      %v855 = vshrl.u32 %v854, 7
      %v856 = vsub.s32 %v853, %v855
      %v857 = vrot.slane %v842, %v856
      %v859 = vunpack.c.l.s4 1966171168
      %v860 = vunpack.c.0.s8 %v859
      %v861 = vlaneseq
      %v862 = vshrl.u32 %v861, 7
      %v863 = vsub.s32 %v860, %v862
      %v864 = vrot.slane %v849, %v863
      %v866 = vunpack.c.l.s4 1966171168
      %v867 = vunpack.c.0.s8 %v866
      %v868 = vlaneseq
      %v869 = vshrl.u32 %v868, 7
      %v870 = vsub.s32 %v867, %v869
      %v871 = vrot.slane %v850, %v870
      %v872 = vcombine.high %v857, %v857
      %v873 = vcombine.high %v871, %v871
      %v874 = vpack.i.b16 %v826, %v825
      %v875 = vpack.i.b16 %v828, %v827
      %v876 = vpack.i.b16 %v830, %v829
      %v877 = vpack.i.b16 %v832, %v831
      %v878 = vpack.i.b16 %v834, %v833
      %v879 = vcombine.low %v874, %v875
      %v880 = vcombine.low %v876, %v877
      %v882 = vunpack.c.l.s4 1966171168
      %v883 = vunpack.c.0.s8 %v882
      %v884 = vlaneseq
      %v885 = vshrl.u32 %v884, 7
      %v886 = vsub.s32 %v883, %v885
      %v887 = vrot.slane %v879, %v886
      %v889 = vunpack.c.l.s4 1966171168
      %v890 = vunpack.c.0.s8 %v889
      %v891 = vlaneseq
      %v892 = vshrl.u32 %v891, 7
      %v893 = vsub.s32 %v890, %v892
      %v894 = vrot.slane %v880, %v893
      %v896 = vunpack.c.l.s4 1966171168
      %v897 = vunpack.c.0.s8 %v896
      %v898 = vlaneseq
      %v899 = vshrl.u32 %v898, 7
      %v900 = vsub.s32 %v897, %v899
      %v901 = vrot.slane %v878, %v900
      %v902 = vcombine.low %v887, %v894
      %v904 = vunpack.c.l.s4 1966171168
      %v905 = vunpack.c.0.s8 %v904
      %v906 = vlaneseq
      %v907 = vshrl.u32 %v906, 7
      %v908 = vsub.s32 %v905, %v907
      %v909 = vrot.slane %v902, %v908
      %v911 = vunpack.c.l.s4 1966171168
      %v912 = vunpack.c.0.s8 %v911
      %v913 = vlaneseq
      %v914 = vshrl.u32 %v913, 7
      %v915 = vsub.s32 %v912, %v914
      %v916 = vrot.slane %v901, %v915
      %v917 = vcombine.low %v909, %v916
      %v922 = vunpack.c.l.b16 %v767
      %v923 = vunpack.c.l.b16 %v768
      %v924 = vunpack.c.l.b16 %v769
      %v925 = vunpack.c.l.b16 %v770
      %v926 = vpack.c.b16 %v923, %v922
      %v927 = vpack.c.b16 %v925, %v924
      %v930 = vcombine.low %v857, %v871
      %v931 = vcombine.low %v872, %v873
      %v932 = vcombine.low %v864, %v857
      %v933 = vcombine.low %v871, %v872
      %v935 = vunpack.c.l.s4 1966171168
      %v936 = vunpack.c.0.s8 %v935
      %v937 = vlaneseq
      %v938 = vshrl.u32 %v937, 7
      %v939 = vsub.s32 %v936, %v938
      %v940 = vrot.slane %v930, %v939
      %v942 = vunpack.c.l.s4 1966171168
      %v943 = vunpack.c.0.s8 %v942
      %v944 = vlaneseq
      %v945 = vshrl.u32 %v944, 7
      %v946 = vsub.s32 %v943, %v945
      %v947 = vrot.slane %v931, %v946
      %v949 = vunpack.c.l.s4 1966171168
      %v950 = vunpack.c.0.s8 %v949
      %v951 = vlaneseq
      %v952 = vshrl.u32 %v951, 7
      %v953 = vsub.s32 %v950, %v952
      %v954 = vrot.slane %v932, %v953
      %v956 = vunpack.c.l.s4 1966171168
      %v957 = vunpack.c.0.s8 %v956
      %v958 = vlaneseq
      %v959 = vshrl.u32 %v958, 7
      %v960 = vsub.s32 %v957, %v959
      %v961 = vrot.slane %v933, %v960
      %v962 = vcombine.low %v940, %v947
      %v963 = vcombine.low %v954, %v961
      %v965 = vunpack.c.l.s4 1966171168
      %v966 = vunpack.c.0.s8 %v965
      %v967 = vlaneseq
      %v968 = vshrl.u32 %v967, 7
      %v969 = vsub.s32 %v966, %v968
      %v970 = vrot.slane %v962, %v969
      %v972 = vunpack.c.l.s4 1966171168
      %v973 = vunpack.c.0.s8 %v972
      %v974 = vlaneseq
      %v975 = vshrl.u32 %v974, 7
      %v976 = vsub.s32 %v973, %v975
      %v977 = vrot.slane %v963, %v976
      %v978 = vcombine.low %v970, %v977
      %v979 = vcombine.low %v873, %v864
      %v981 = vunpack.c.l.s4 1966171168
      %v982 = vunpack.c.0.s8 %v981
      %v983 = vlaneseq
      %v984 = vshrl.u32 %v983, 7
      %v985 = vsub.s32 %v982, %v984
      %v986 = vrot.slane %v979, %v985
      %v988 = vunpack.c.l.s4 1966171168
      %v989 = vunpack.c.0.s8 %v988
      %v990 = vlaneseq
      %v991 = vshrl.u32 %v990, 7
      %v992 = vsub.s32 %v989, %v991
      %v993 = vrot.slane %v986, %v992
      %vm996 = vcmask 261120
      %v998 = vsel %vm996, %v917, 0
      %1000 = vmatprep.subr.bf16.mxu0 0
      %1001 = vmatpush1.bf16.msra.mxu0 %v926
      %1002 = vmatprep.subr.bf16.mxu0 0
      %1003 = vmatpush1.bf16.msra.mxu0 %v927
      %1004 = vmatprep.subr.bf16.mxu0 0
      %1005 = vmatpush1.bf16.msra.mxu0 0
      %1006 = vmatprep.subr.bf16.mxu0 0
      %1007 = vmatpush1.bf16.msra.mxu0 0
      %1008 = vmatprep.subr.bf16.mxu0 0
      %1009 = vmatpush1.bf16.msra.mxu0 0
      %1010 = vmatprep.subr.bf16.mxu0 0
      %1011 = vmatpush1.bf16.msra.mxu0 0
      %1012 = vmatprep.subr.bf16.mxu0 0
      %1013 = vmatpush1.bf16.msra.mxu0 0
      %1014 = vmatprep.subr.bf16.mxu0 0
      %1015 = vmatpush1.bf16.msra.mxu0 0
      %1016 = vmatprep.subr.bf16.mxu0 0
      %1017 = vmatpush1.bf16.msra.mxu0 0
      %1018 = vmatprep.subr.bf16.mxu0 0
      %1019 = vmatpush1.bf16.msra.mxu0 0
      %1020 = vmatprep.subr.bf16.mxu0 0
      %1021 = vmatpush1.bf16.msra.mxu0 0
      %1022 = vmatprep.subr.bf16.mxu0 0
      %1023 = vmatpush1.bf16.msra.mxu0 0
      %1024 = vmatprep.subr.bf16.mxu0 0
      %1025 = vmatpush1.bf16.msra.mxu0 0
      %1026 = vmatprep.subr.bf16.mxu0 0
      %1027 = vmatpush1.bf16.msra.mxu0 0
      %1028 = vmatprep.subr.bf16.mxu0 0
      %1029 = vmatpush1.bf16.msra.mxu0 0
      %1030 = vmatprep.subr.bf16.mxu0 0
      %1031 = vmatpush1.bf16.msra.mxu0 0
      %1032 = vmatprep.mubr.bf16.mxu0 0
      %1033 = vmatmul.mubr.bf16.gmra.mrb[0].mxu0 %v998
      %v1034 = vpop.f32.mrb[0].mxu0
      %v1035 = vadd.f32 %v978, %v1034
      %v1036 = vpop.f32.mrb[0].mxu0
      %v1037 = vpop.f32.mrb[0].mxu0
      %v1038 = vadd.f32 %v993, %v1037
      %v1039 = vpop.f32.mrb[0].mxu0
      %1040 = vdwg.mxu0
      %v1043 = vcombine.high %v1035, %v1035
      %v1045 = vunpack.c.l.s4 1966171168
      %v1046 = vunpack.c.0.s8 %v1045
      %v1047 = vlaneseq
      %v1048 = vshrl.u32 %v1047, 7
      %v1049 = vsub.s32 %v1046, %v1048
      %v1050 = vrot.slane %v1035, %v1049
      %v1052 = vunpack.c.l.s4 1966171168
      %v1053 = vunpack.c.0.s8 %v1052
      %v1054 = vlaneseq
      %v1055 = vshrl.u32 %v1054, 7
      %v1056 = vsub.s32 %v1053, %v1055
      %v1057 = vrot.slane %v1043, %v1056
      %v1058 = vcombine.high %v1050, %v1050
      %v1059 = vcombine.high %v1057, %v1057
      %v1061 = vunpack.c.l.s4 1966171168
      %v1062 = vunpack.c.0.s8 %v1061
      %v1063 = vlaneseq
      %v1064 = vshrl.u32 %v1063, 7
      %v1065 = vsub.s32 %v1062, %v1064
      %v1066 = vrot.slane %v1050, %v1065
      %v1068 = vunpack.c.l.s4 1966171168
      %v1069 = vunpack.c.0.s8 %v1068
      %v1070 = vlaneseq
      %v1071 = vshrl.u32 %v1070, 7
      %v1072 = vsub.s32 %v1069, %v1071
      %v1073 = vrot.slane %v1057, %v1072
      %v1075 = vunpack.c.l.s4 1966171168
      %v1076 = vunpack.c.0.s8 %v1075
      %v1077 = vlaneseq
      %v1078 = vshrl.u32 %v1077, 7
      %v1079 = vsub.s32 %v1076, %v1078
      %v1080 = vrot.slane %v1058, %v1079
      %v1082 = vunpack.c.l.s4 1966171168
      %v1083 = vunpack.c.0.s8 %v1082
      %v1084 = vlaneseq
      %v1085 = vshrl.u32 %v1084, 7
      %v1086 = vsub.s32 %v1083, %v1085
      %v1087 = vrot.slane %v1059, %v1086
      %v1088 = vcombine.high %v1066, %v1066
      %v1089 = vcombine.high %v1073, %v1073
      %v1090 = vcombine.high %v1080, %v1080
      %v1091 = vcombine.high %v1087, %v1087
      %v1093 = vunpack.c.l.s4 1966171168
      %v1094 = vunpack.c.0.s8 %v1093
      %v1095 = vlaneseq
      %v1096 = vshrl.u32 %v1095, 7
      %v1097 = vsub.s32 %v1094, %v1096
      %v1098 = vrot.slane %v1038, %v1097
      %v1099 = vcombine.high %v1098, %v1098
      %v1101 = vunpack.c.l.s4 1966171168
      %v1102 = vunpack.c.0.s8 %v1101
      %v1103 = vlaneseq
      %v1104 = vshrl.u32 %v1103, 7
      %v1105 = vsub.s32 %v1102, %v1104
      %v1106 = vrot.slane %v1098, %v1105
      %v1108 = vunpack.c.l.s4 1966171168
      %v1109 = vunpack.c.0.s8 %v1108
      %v1110 = vlaneseq
      %v1111 = vshrl.u32 %v1110, 7
      %v1112 = vsub.s32 %v1109, %v1111
      %v1113 = vrot.slane %v1099, %v1112
      %v1114 = vcombine.low %v1066, %v1080
      %v1115 = vcombine.low %v1088, %v1090
      %v1117 = vunpack.c.l.s4 1966171168
      %v1118 = vunpack.c.0.s8 %v1117
      %v1119 = vlaneseq
      %v1120 = vshrl.u32 %v1119, 7
      %v1121 = vsub.s32 %v1118, %v1120
      %v1122 = vrot.slane %v1114, %v1121
      %v1124 = vunpack.c.l.s4 1966171168
      %v1125 = vunpack.c.0.s8 %v1124
      %v1126 = vlaneseq
      %v1127 = vshrl.u32 %v1126, 7
      %v1128 = vsub.s32 %v1125, %v1127
      %v1129 = vrot.slane %v1115, %v1128
      %v1131 = vunpack.c.l.s4 1966171168
      %v1132 = vunpack.c.0.s8 %v1131
      %v1133 = vlaneseq
      %v1134 = vshrl.u32 %v1133, 7
      %v1135 = vsub.s32 %v1132, %v1134
      %v1136 = vrot.slane %v1073, %v1135
      %v1137 = vcombine.low %v1122, %v1129
      %v1139 = vunpack.c.l.s4 1966171168
      %v1140 = vunpack.c.0.s8 %v1139
      %v1141 = vlaneseq
      %v1142 = vshrl.u32 %v1141, 7
      %v1143 = vsub.s32 %v1140, %v1142
      %v1144 = vrot.slane %v1137, %v1143
      %v1146 = vunpack.c.l.s4 1966171168
      %v1147 = vunpack.c.0.s8 %v1146
      %v1148 = vlaneseq
      %v1149 = vshrl.u32 %v1148, 7
      %v1150 = vsub.s32 %v1147, %v1149
      %v1151 = vrot.slane %v1136, %v1150
      %v1152 = vcombine.low %v1144, %v1151
      %v1153 = vcombine.low %v1087, %v1089
      %v1154 = vcombine.low %v1091, %v1106
      %v1156 = vunpack.c.l.s4 1966171168
      %v1157 = vunpack.c.0.s8 %v1156
      %v1158 = vlaneseq
      %v1159 = vshrl.u32 %v1158, 7
      %v1160 = vsub.s32 %v1157, %v1159
      %v1161 = vrot.slane %v1153, %v1160
      %v1163 = vunpack.c.l.s4 1966171168
      %v1164 = vunpack.c.0.s8 %v1163
      %v1165 = vlaneseq
      %v1166 = vshrl.u32 %v1165, 7
      %v1167 = vsub.s32 %v1164, %v1166
      %v1168 = vrot.slane %v1154, %v1167
      %v1170 = vunpack.c.l.s4 1966171168
      %v1171 = vunpack.c.0.s8 %v1170
      %v1172 = vlaneseq
      %v1173 = vshrl.u32 %v1172, 7
      %v1174 = vsub.s32 %v1171, %v1173
      %v1175 = vrot.slane %v1113, %v1174
      %v1176 = vcombine.low %v1161, %v1168
      %v1178 = vunpack.c.l.s4 1966171168
      %v1179 = vunpack.c.0.s8 %v1178
      %v1180 = vlaneseq
      %v1181 = vshrl.u32 %v1180, 7
      %v1182 = vsub.s32 %v1179, %v1181
      %v1183 = vrot.slane %v1176, %v1182
      %v1185 = vunpack.c.l.s4 1966171168
      %v1186 = vunpack.c.0.s8 %v1185
      %v1187 = vlaneseq
      %v1188 = vshrl.u32 %v1187, 7
      %v1189 = vsub.s32 %v1186, %v1188
      %v1190 = vrot.slane %v1175, %v1189
      %v1191 = vcombine.low %v1183, %v1190
      %v1194 = vpack.c.bf16 %v1152, %v1152
      %v1195 = vpack.c.bf16 %v1191, %v1191
      %1198 = vrot.lane.b32.xlu0 %v1194, 120
      %v1199 = vpop.permute.xlu0 %1198
      %1200 = vrot.lane.b32.xlu0 %v1195, 120
      %v1201 = vpop.permute.xlu0 %1200
      %1202 = vrot.lane.b32.xlu0 %v1194, 112
      %v1203 = vpop.permute.xlu0 %1202
      %1204 = vrot.lane.b32.xlu0 %v1195, 112
      %v1205 = vpop.permute.xlu0 %1204
      %1206 = vrot.lane.b32.xlu0 %v1194, 104
      %v1207 = vpop.permute.xlu0 %1206
      %1208 = vrot.lane.b32.xlu0 %v1195, 104
      %v1209 = vpop.permute.xlu0 %1208
      %1210 = vrot.lane.b32.xlu0 %v1194, 96
      %v1211 = vpop.permute.xlu0 %1210
      %vm1212 = vcmask 64512
      %v1214 = vsel %vm1212, %v1194, 0
      %v1217 = vsel %vm1212, %v1211, 0
      %1219 = vmatprep.subr.bf16.mxu0 0
      %1220 = vmatpush1.bf16.xpose.msra.mxu0 %v1217
      %1221 = vmatprep.subr.bf16.mxu0 0
      %1222 = vmatpush1.bf16.xpose.msra.mxu0 0
      %1223 = vmatprep.subr.bf16.mxu0 0
      %1224 = vmatpush1.bf16.xpose.msra.mxu0 0
      %1225 = vmatprep.subr.bf16.mxu0 0
      %1226 = vmatpush1.bf16.xpose.msra.mxu0 0
      %1227 = vmatprep.subr.bf16.mxu0 0
      %1228 = vmatpush1.bf16.xpose.msra.mxu0 0
      %1229 = vmatprep.subr.bf16.mxu0 0
      %1230 = vmatpush1.bf16.xpose.msra.mxu0 0
      %1231 = vmatprep.subr.bf16.mxu0 0
      %1232 = vmatpush1.bf16.xpose.msra.mxu0 0
      %1233 = vmatprep.subr.bf16.mxu0 0
      %1234 = vmatpush1.bf16.xpose.msra.mxu0 0
      %1235 = vmatprep.subr.bf16.mxu0 0
      %1236 = vmatpush1.bf16.xpose.msra.mxu0 0
      %1237 = vmatprep.subr.bf16.mxu0 0
      %1238 = vmatpush1.bf16.xpose.msra.mxu0 0
      %1239 = vmatprep.subr.bf16.mxu0 0
      %1240 = vmatpush1.bf16.xpose.msra.mxu0 0
      %1241 = vmatprep.subr.bf16.mxu0 0
      %1242 = vmatpush1.bf16.xpose.msra.mxu0 0
      %1243 = vmatprep.subr.bf16.mxu0 0
      %1244 = vmatpush1.bf16.xpose.msra.mxu0 0
      %1245 = vmatprep.subr.bf16.mxu0 0
      %1246 = vmatpush1.bf16.xpose.msra.mxu0 0
      %1247 = vmatprep.subr.bf16.mxu0 0
      %1248 = vmatpush1.bf16.xpose.msra.mxu0 0
      %1249 = vmatprep.subr.bf16.mxu0 0
      %1250 = vmatpush1.bf16.xpose.msra.mxu0 0
      %1251 = vmatprep.mubr.bf16.mxu0 0
      %1252 = vmatmul.mubr.bf16.gmra.mrb[0].mxu0 %v1214
      %v1253 = vpop.f32.mrb[0].mxu0
      %v1254 = vadd.f32 0.0, %v1253
      %v1255 = vpop.f32.mrb[0].mxu0
      %v1256 = vpop.f32.mrb[0].mxu0
      %v1257 = vpop.f32.mrb[0].mxu0
      %1258 = vdwg.mxu0
      %1259 = vrot.lane.b32.xlu0 %v1195, 96
      %v1260 = vpop.permute.xlu0 %1259
      %v1262 = vsel %vm1212, %v1195, 0
      %v1265 = vsel %vm1212, %v1260, 0
      %1267 = vmatprep.subr.bf16.mxu0 0
      %1268 = vmatpush1.bf16.xpose.msra.mxu0 %v1265
      %1269 = vmatprep.subr.bf16.mxu0 0
      %1270 = vmatpush1.bf16.xpose.msra.mxu0 0
      %1271 = vmatprep.subr.bf16.mxu0 0
      %1272 = vmatpush1.bf16.xpose.msra.mxu0 0
      %1273 = vmatprep.subr.bf16.mxu0 0
      %1274 = vmatpush1.bf16.xpose.msra.mxu0 0
      %1275 = vmatprep.subr.bf16.mxu0 0
      %1276 = vmatpush1.bf16.xpose.msra.mxu0 0
      %1277 = vmatprep.subr.bf16.mxu0 0
      %1278 = vmatpush1.bf16.xpose.msra.mxu0 0
      %1279 = vmatprep.subr.bf16.mxu0 0
      %1280 = vmatpush1.bf16.xpose.msra.mxu0 0
      %1281 = vmatprep.subr.bf16.mxu0 0
      %1282 = vmatpush1.bf16.xpose.msra.mxu0 0
      %1283 = vmatprep.subr.bf16.mxu0 0
      %1284 = vmatpush1.bf16.xpose.msra.mxu0 0
      %1285 = vmatprep.subr.bf16.mxu0 0
      %1286 = vmatpush1.bf16.xpose.msra.mxu0 0
      %1287 = vmatprep.subr.bf16.mxu0 0
      %1288 = vmatpush1.bf16.xpose.msra.mxu0 0
      %1289 = vmatprep.subr.bf16.mxu0 0
      %1290 = vmatpush1.bf16.xpose.msra.mxu0 0
      %1291 = vmatprep.subr.bf16.mxu0 0
      %1292 = vmatpush1.bf16.xpose.msra.mxu0 0
      %1293 = vmatprep.subr.bf16.mxu0 0
      %1294 = vmatpush1.bf16.xpose.msra.mxu0 0
      %1295 = vmatprep.subr.bf16.mxu0 0
      %1296 = vmatpush1.bf16.xpose.msra.mxu0 0
      %1297 = vmatprep.subr.bf16.mxu0 0
      %1298 = vmatpush1.bf16.xpose.msra.mxu0 0
      %1299 = vmatprep.mubr.bf16.mxu0 0
      %1300 = vmatmul.mubr.bf16.gmra.mrb[0].mxu0 %v1262
      %v1301 = vpop.f32.mrb[0].mxu0
      %v1302 = vadd.f32 0.0, %v1301
      %v1303 = vpop.f32.mrb[0].mxu0
      %v1304 = vpop.f32.mrb[0].mxu0
      %v1305 = vpop.f32.mrb[0].mxu0
      %1306 = vdwg.mxu0
      %1307 = vrot.lane.b32.xlu0 %v1199, 96
      %v1308 = vpop.permute.xlu0 %1307
      %v1310 = vsel %vm1212, %v1199, 0
      %v1313 = vsel %vm1212, %v1308, 0
      %1315 = vmatprep.subr.bf16.mxu0 0
      %1316 = vmatpush1.bf16.xpose.msra.mxu0 %v1313
      %1317 = vmatprep.subr.bf16.mxu0 0
      %1318 = vmatpush1.bf16.xpose.msra.mxu0 0
      %1319 = vmatprep.subr.bf16.mxu0 0
      %1320 = vmatpush1.bf16.xpose.msra.mxu0 0
      %1321 = vmatprep.subr.bf16.mxu0 0
      %1322 = vmatpush1.bf16.xpose.msra.mxu0 0
      %1323 = vmatprep.subr.bf16.mxu0 0
      %1324 = vmatpush1.bf16.xpose.msra.mxu0 0
      %1325 = vmatprep.subr.bf16.mxu0 0
      %1326 = vmatpush1.bf16.xpose.msra.mxu0 0
      %1327 = vmatprep.subr.bf16.mxu0 0
      %1328 = vmatpush1.bf16.xpose.msra.mxu0 0
      %1329 = vmatprep.subr.bf16.mxu0 0
      %1330 = vmatpush1.bf16.xpose.msra.mxu0 0
      %1331 = vmatprep.subr.bf16.mxu0 0
      %1332 = vmatpush1.bf16.xpose.msra.mxu0 0
      %1333 = vmatprep.subr.bf16.mxu0 0
      %1334 = vmatpush1.bf16.xpose.msra.mxu0 0
      %1335 = vmatprep.subr.bf16.mxu0 0
      %1336 = vmatpush1.bf16.xpose.msra.mxu0 0
      %1337 = vmatprep.subr.bf16.mxu0 0
      %1338 = vmatpush1.bf16.xpose.msra.mxu0 0
      %1339 = vmatprep.subr.bf16.mxu0 0
      %1340 = vmatpush1.bf16.xpose.msra.mxu0 0
      %1341 = vmatprep.subr.bf16.mxu0 0
      %1342 = vmatpush1.bf16.xpose.msra.mxu0 0
      %1343 = vmatprep.subr.bf16.mxu0 0
      %1344 = vmatpush1.bf16.xpose.msra.mxu0 0
      %1345 = vmatprep.subr.bf16.mxu0 0
      %1346 = vmatpush1.bf16.xpose.msra.mxu0 0
      %1347 = vmatprep.mubr.bf16.mxu0 0
      %1348 = vmatmul.mubr.bf16.gmra.mrb[0].mxu0 %v1310
      %v1349 = vpop.f32.mrb[0].mxu0
      %v1350 = vadd.f32 0.0, %v1349
      %v1351 = vpop.f32.mrb[0].mxu0
      %v1352 = vpop.f32.mrb[0].mxu0
      %v1353 = vpop.f32.mrb[0].mxu0
      %1354 = vdwg.mxu0
      %1355 = vrot.lane.b32.xlu0 %v1201, 96
      %v1356 = vpop.permute.xlu0 %1355
      %v1358 = vsel %vm1212, %v1201, 0
      %v1361 = vsel %vm1212, %v1356, 0
      %1363 = vmatprep.subr.bf16.mxu0 0
      %1364 = vmatpush1.bf16.xpose.msra.mxu0 %v1361
      %1365 = vmatprep.subr.bf16.mxu0 0
      %1366 = vmatpush1.bf16.xpose.msra.mxu0 0
      %1367 = vmatprep.subr.bf16.mxu0 0
      %1368 = vmatpush1.bf16.xpose.msra.mxu0 0
      %1369 = vmatprep.subr.bf16.mxu0 0
      %1370 = vmatpush1.bf16.xpose.msra.mxu0 0
      %1371 = vmatprep.subr.bf16.mxu0 0
      %1372 = vmatpush1.bf16.xpose.msra.mxu0 0
      %1373 = vmatprep.subr.bf16.mxu0 0
      %1374 = vmatpush1.bf16.xpose.msra.mxu0 0
      %1375 = vmatprep.subr.bf16.mxu0 0
      %1376 = vmatpush1.bf16.xpose.msra.mxu0 0
      %1377 = vmatprep.subr.bf16.mxu0 0
      %1378 = vmatpush1.bf16.xpose.msra.mxu0 0
      %1379 = vmatprep.subr.bf16.mxu0 0
      %1380 = vmatpush1.bf16.xpose.msra.mxu0 0
      %1381 = vmatprep.subr.bf16.mxu0 0
      %1382 = vmatpush1.bf16.xpose.msra.mxu0 0
      %1383 = vmatprep.subr.bf16.mxu0 0
      %1384 = vmatpush1.bf16.xpose.msra.mxu0 0
      %1385 = vmatprep.subr.bf16.mxu0 0
      %1386 = vmatpush1.bf16.xpose.msra.mxu0 0
      %1387 = vmatprep.subr.bf16.mxu0 0
      %1388 = vmatpush1.bf16.xpose.msra.mxu0 0
      %1389 = vmatprep.subr.bf16.mxu0 0
      %1390 = vmatpush1.bf16.xpose.msra.mxu0 0
      %1391 = vmatprep.subr.bf16.mxu0 0
      %1392 = vmatpush1.bf16.xpose.msra.mxu0 0
      %1393 = vmatprep.subr.bf16.mxu0 0
      %1394 = vmatpush1.bf16.xpose.msra.mxu0 0
      %1395 = vmatprep.mubr.bf16.mxu0 0
      %1396 = vmatmul.mubr.bf16.gmra.mrb[0].mxu0 %v1358
      %v1397 = vpop.f32.mrb[0].mxu0
      %v1398 = vadd.f32 0.0, %v1397
      %v1399 = vpop.f32.mrb[0].mxu0
      %v1400 = vpop.f32.mrb[0].mxu0
      %v1401 = vpop.f32.mrb[0].mxu0
      %1402 = vdwg.mxu0
      %1403 = vrot.lane.b32.xlu0 %v1203, 96
      %v1404 = vpop.permute.xlu0 %1403
      %v1406 = vsel %vm1212, %v1203, 0
      %v1409 = vsel %vm1212, %v1404, 0
      %1411 = vmatprep.subr.bf16.mxu0 0
      %1412 = vmatpush1.bf16.xpose.msra.mxu0 %v1409
      %1413 = vmatprep.subr.bf16.mxu0 0
      %1414 = vmatpush1.bf16.xpose.msra.mxu0 0
      %1415 = vmatprep.subr.bf16.mxu0 0
      %1416 = vmatpush1.bf16.xpose.msra.mxu0 0
      %1417 = vmatprep.subr.bf16.mxu0 0
      %1418 = vmatpush1.bf16.xpose.msra.mxu0 0
      %1419 = vmatprep.subr.bf16.mxu0 0
      %1420 = vmatpush1.bf16.xpose.msra.mxu0 0
      %1421 = vmatprep.subr.bf16.mxu0 0
      %1422 = vmatpush1.bf16.xpose.msra.mxu0 0
      %1423 = vmatprep.subr.bf16.mxu0 0
      %1424 = vmatpush1.bf16.xpose.msra.mxu0 0
      %1425 = vmatprep.subr.bf16.mxu0 0
      %1426 = vmatpush1.bf16.xpose.msra.mxu0 0
      %1427 = vmatprep.subr.bf16.mxu0 0
      %1428 = vmatpush1.bf16.xpose.msra.mxu0 0
      %1429 = vmatprep.subr.bf16.mxu0 0
      %1430 = vmatpush1.bf16.xpose.msra.mxu0 0
      %1431 = vmatprep.subr.bf16.mxu0 0
      %1432 = vmatpush1.bf16.xpose.msra.mxu0 0
      %1433 = vmatprep.subr.bf16.mxu0 0
      %1434 = vmatpush1.bf16.xpose.msra.mxu0 0
      %1435 = vmatprep.subr.bf16.mxu0 0
      %1436 = vmatpush1.bf16.xpose.msra.mxu0 0
      %1437 = vmatprep.subr.bf16.mxu0 0
      %1438 = vmatpush1.bf16.xpose.msra.mxu0 0
      %1439 = vmatprep.subr.bf16.mxu0 0
      %1440 = vmatpush1.bf16.xpose.msra.mxu0 0
      %1441 = vmatprep.subr.bf16.mxu0 0
      %1442 = vmatpush1.bf16.xpose.msra.mxu0 0
      %1443 = vmatprep.mubr.bf16.mxu0 0
      %1444 = vmatmul.mubr.bf16.gmra.mrb[0].mxu0 %v1406
      %v1445 = vpop.f32.mrb[0].mxu0
      %v1446 = vadd.f32 0.0, %v1445
      %v1447 = vpop.f32.mrb[0].mxu0
      %v1448 = vpop.f32.mrb[0].mxu0
      %v1449 = vpop.f32.mrb[0].mxu0
      %1450 = vdwg.mxu0
      %1451 = vrot.lane.b32.xlu0 %v1205, 96
      %v1452 = vpop.permute.xlu0 %1451
      %v1454 = vsel %vm1212, %v1205, 0
      %v1457 = vsel %vm1212, %v1452, 0
      %1459 = vmatprep.subr.bf16.mxu0 0
      %1460 = vmatpush1.bf16.xpose.msra.mxu0 %v1457
      %1461 = vmatprep.subr.bf16.mxu0 0
      %1462 = vmatpush1.bf16.xpose.msra.mxu0 0
      %1463 = vmatprep.subr.bf16.mxu0 0
      %1464 = vmatpush1.bf16.xpose.msra.mxu0 0
      %1465 = vmatprep.subr.bf16.mxu0 0
      %1466 = vmatpush1.bf16.xpose.msra.mxu0 0
      %1467 = vmatprep.subr.bf16.mxu0 0
      %1468 = vmatpush1.bf16.xpose.msra.mxu0 0
      %1469 = vmatprep.subr.bf16.mxu0 0
      %1470 = vmatpush1.bf16.xpose.msra.mxu0 0
      %1471 = vmatprep.subr.bf16.mxu0 0
      %1472 = vmatpush1.bf16.xpose.msra.mxu0 0
      %1473 = vmatprep.subr.bf16.mxu0 0
      %1474 = vmatpush1.bf16.xpose.msra.mxu0 0
      %1475 = vmatprep.subr.bf16.mxu0 0
      %1476 = vmatpush1.bf16.xpose.msra.mxu0 0
      %1477 = vmatprep.subr.bf16.mxu0 0
      %1478 = vmatpush1.bf16.xpose.msra.mxu0 0
      %1479 = vmatprep.subr.bf16.mxu0 0
      %1480 = vmatpush1.bf16.xpose.msra.mxu0 0
      %1481 = vmatprep.subr.bf16.mxu0 0
      %1482 = vmatpush1.bf16.xpose.msra.mxu0 0
      %1483 = vmatprep.subr.bf16.mxu0 0
      %1484 = vmatpush1.bf16.xpose.msra.mxu0 0
      %1485 = vmatprep.subr.bf16.mxu0 0
      %1486 = vmatpush1.bf16.xpose.msra.mxu0 0
      %1487 = vmatprep.subr.bf16.mxu0 0
      %1488 = vmatpush1.bf16.xpose.msra.mxu0 0
      %1489 = vmatprep.subr.bf16.mxu0 0
      %1490 = vmatpush1.bf16.xpose.msra.mxu0 0
      %1491 = vmatprep.mubr.bf16.mxu0 0
      %1492 = vmatmul.mubr.bf16.gmra.mrb[0].mxu0 %v1454
      %v1493 = vpop.f32.mrb[0].mxu0
      %v1494 = vadd.f32 0.0, %v1493
      %v1495 = vpop.f32.mrb[0].mxu0
      %v1496 = vpop.f32.mrb[0].mxu0
      %v1497 = vpop.f32.mrb[0].mxu0
      %1498 = vdwg.mxu0
      %1499 = vrot.lane.b32.xlu0 %v1207, 96
      %v1500 = vpop.permute.xlu0 %1499
      %v1502 = vsel %vm1212, %v1207, 0
      %v1505 = vsel %vm1212, %v1500, 0
      %1507 = vmatprep.subr.bf16.mxu0 0
      %1508 = vmatpush1.bf16.xpose.msra.mxu0 %v1505
      %1509 = vmatprep.subr.bf16.mxu0 0
      %1510 = vmatpush1.bf16.xpose.msra.mxu0 0
      %1511 = vmatprep.subr.bf16.mxu0 0
      %1512 = vmatpush1.bf16.xpose.msra.mxu0 0
      %1513 = vmatprep.subr.bf16.mxu0 0
      %1514 = vmatpush1.bf16.xpose.msra.mxu0 0
      %1515 = vmatprep.subr.bf16.mxu0 0
      %1516 = vmatpush1.bf16.xpose.msra.mxu0 0
      %1517 = vmatprep.subr.bf16.mxu0 0
      %1518 = vmatpush1.bf16.xpose.msra.mxu0 0
      %1519 = vmatprep.subr.bf16.mxu0 0
      %1520 = vmatpush1.bf16.xpose.msra.mxu0 0
      %1521 = vmatprep.subr.bf16.mxu0 0
      %1522 = vmatpush1.bf16.xpose.msra.mxu0 0
      %1523 = vmatprep.subr.bf16.mxu0 0
      %1524 = vmatpush1.bf16.xpose.msra.mxu0 0
      %1525 = vmatprep.subr.bf16.mxu0 0
      %1526 = vmatpush1.bf16.xpose.msra.mxu0 0
      %1527 = vmatprep.subr.bf16.mxu0 0
      %1528 = vmatpush1.bf16.xpose.msra.mxu0 0
      %1529 = vmatprep.subr.bf16.mxu0 0
      %1530 = vmatpush1.bf16.xpose.msra.mxu0 0
      %1531 = vmatprep.subr.bf16.mxu0 0
      %1532 = vmatpush1.bf16.xpose.msra.mxu0 0
      %1533 = vmatprep.subr.bf16.mxu0 0
      %1534 = vmatpush1.bf16.xpose.msra.mxu0 0
      %1535 = vmatprep.subr.bf16.mxu0 0
      %1536 = vmatpush1.bf16.xpose.msra.mxu0 0
      %1537 = vmatprep.subr.bf16.mxu0 0
      %1538 = vmatpush1.bf16.xpose.msra.mxu0 0
      %1539 = vmatprep.mubr.bf16.mxu0 0
      %1540 = vmatmul.mubr.bf16.gmra.mrb[0].mxu0 %v1502
      %v1541 = vpop.f32.mrb[0].mxu0
      %v1542 = vadd.f32 0.0, %v1541
      %v1543 = vpop.f32.mrb[0].mxu0
      %v1544 = vpop.f32.mrb[0].mxu0
      %v1545 = vpop.f32.mrb[0].mxu0
      %1546 = vdwg.mxu0
      %1547 = vrot.lane.b32.xlu0 %v1209, 96
      %v1548 = vpop.permute.xlu0 %1547
      %v1550 = vsel %vm1212, %v1209, 0
      %v1553 = vsel %vm1212, %v1548, 0
      %1555 = vmatprep.subr.bf16.mxu0 0
      %1556 = vmatpush1.bf16.xpose.msra.mxu0 %v1553
      %1557 = vmatprep.subr.bf16.mxu0 0
      %1558 = vmatpush1.bf16.xpose.msra.mxu0 0
      %1559 = vmatprep.subr.bf16.mxu0 0
      %1560 = vmatpush1.bf16.xpose.msra.mxu0 0
      %1561 = vmatprep.subr.bf16.mxu0 0
      %1562 = vmatpush1.bf16.xpose.msra.mxu0 0
      %1563 = vmatprep.subr.bf16.mxu0 0
      %1564 = vmatpush1.bf16.xpose.msra.mxu0 0
      %1565 = vmatprep.subr.bf16.mxu0 0
      %1566 = vmatpush1.bf16.xpose.msra.mxu0 0
      %1567 = vmatprep.subr.bf16.mxu0 0
      %1568 = vmatpush1.bf16.xpose.msra.mxu0 0
      %1569 = vmatprep.subr.bf16.mxu0 0
      %1570 = vmatpush1.bf16.xpose.msra.mxu0 0
      %1571 = vmatprep.subr.bf16.mxu0 0
      %1572 = vmatpush1.bf16.xpose.msra.mxu0 0
      %1573 = vmatprep.subr.bf16.mxu0 0
      %1574 = vmatpush1.bf16.xpose.msra.mxu0 0
      %1575 = vmatprep.subr.bf16.mxu0 0
      %1576 = vmatpush1.bf16.xpose.msra.mxu0 0
      %1577 = vmatprep.subr.bf16.mxu0 0
      %1578 = vmatpush1.bf16.xpose.msra.mxu0 0
      %1579 = vmatprep.subr.bf16.mxu0 0
      %1580 = vmatpush1.bf16.xpose.msra.mxu0 0
      %1581 = vmatprep.subr.bf16.mxu0 0
      %1582 = vmatpush1.bf16.xpose.msra.mxu0 0
      %1583 = vmatprep.subr.bf16.mxu0 0
      %1584 = vmatpush1.bf16.xpose.msra.mxu0 0
      %1585 = vmatprep.subr.bf16.mxu0 0
      %1586 = vmatpush1.bf16.xpose.msra.mxu0 0
      %1587 = vmatprep.mubr.bf16.mxu0 0
      %1588 = vmatmul.mubr.bf16.gmra.mrb[0].mxu0 %v1550
      %v1589 = vpop.f32.mrb[0].mxu0
      %v1590 = vadd.f32 0.0, %v1589
      %v1591 = vpop.f32.mrb[0].mxu0
      %v1592 = vpop.f32.mrb[0].mxu0
      %v1593 = vpop.f32.mrb[0].mxu0
      %1594 = vdwg.mxu0
      %v1595 = vmul.f32 %v1254, 0.35355338
      %v1596 = vmul.f32 %v1302, 0.35355338
      %v1597 = vmul.f32 %v1350, 0.35355338
      %v1598 = vmul.f32 %v1398, 0.35355338
      %v1599 = vmul.f32 %v1446, 0.35355338
      %v1600 = vmul.f32 %v1494, 0.35355338
      %v1601 = vmul.f32 %v1542, 0.35355338
      %v1602 = vmul.f32 %v1590, 0.35355338
      %vm1603 = vcmask 36864
      %v1604 = vsel %vm1603, %v1595, -inf
      %1605 = vmax.xlane.f32.xlu0 %v1604
      %v1606 = vpop.xlane.xlu0 %1605
      %v1607 = vsel %vm1603, %v1596, -inf
      %1608 = vmax.xlane.f32.xlu0 %v1607
      %v1609 = vpop.xlane.xlu0 %1608
      %v1610 = vsel %vm1603, %v1597, -inf
      %1611 = vmax.xlane.f32.xlu0 %v1610
      %v1612 = vpop.xlane.xlu0 %1611
      %v1613 = vsel %vm1603, %v1598, -inf
      %1614 = vmax.xlane.f32.xlu0 %v1613
      %v1615 = vpop.xlane.xlu0 %1614
      %v1616 = vsel %vm1603, %v1599, -inf
      %1617 = vmax.xlane.f32.xlu0 %v1616
      %v1618 = vpop.xlane.xlu0 %1617
      %v1619 = vsel %vm1603, %v1600, -inf
      %1620 = vmax.xlane.f32.xlu0 %v1619
      %v1621 = vpop.xlane.xlu0 %1620
      %v1622 = vsel %vm1603, %v1601, -inf
      %1623 = vmax.xlane.f32.xlu0 %v1622
      %v1624 = vpop.xlane.xlu0 %1623
      %v1625 = vsel %vm1603, %v1602, -inf
      %1626 = vmax.xlane.f32.xlu0 %v1625
      %v1627 = vpop.xlane.xlu0 %1626
      %v1628 = vsub.f32 %v1595, %v1606
      %v1629 = vsub.f32 %v1596, %v1609
      %v1630 = vsub.f32 %v1597, %v1612
      %v1631 = vsub.f32 %v1598, %v1615
      %v1632 = vsub.f32 %v1599, %v1618
      %v1633 = vsub.f32 %v1600, %v1621
      %v1634 = vsub.f32 %v1601, %v1624
      %v1635 = vsub.f32 %v1602, %v1627
      %v1636 = vmul.f32 %v1628, 1.442695
      %v1637 = vpow.pop %v1636
      %v1638 = vmul.f32 %v1629, 1.442695
      %v1639 = vpow.pop %v1638
      %v1640 = vmul.f32 %v1630, 1.442695
      %v1641 = vpow.pop %v1640
      %v1642 = vmul.f32 %v1631, 1.442695
      %v1643 = vpow.pop %v1642
      %v1644 = vmul.f32 %v1632, 1.442695
      %v1645 = vpow.pop %v1644
      %v1646 = vmul.f32 %v1633, 1.442695
      %v1647 = vpow.pop %v1646
      %v1648 = vmul.f32 %v1634, 1.442695
      %v1649 = vpow.pop %v1648
      %v1650 = vmul.f32 %v1635, 1.442695
      %v1651 = vpow.pop %v1650
      %v1652 = vsel %vm1603, %v1637, 0.0
      %1653 = vadd.xlane.f32.xlu0 %v1652
      %v1654 = vpop.xlane.xlu0 %1653
      %v1655 = vsel %vm1603, %v1639, 0.0
      %1656 = vadd.xlane.f32.xlu0 %v1655
      %v1657 = vpop.xlane.xlu0 %1656
      %v1658 = vsel %vm1603, %v1641, 0.0
      %1659 = vadd.xlane.f32.xlu0 %v1658
      %v1660 = vpop.xlane.xlu0 %1659
      %v1661 = vsel %vm1603, %v1643, 0.0
      %1662 = vadd.xlane.f32.xlu0 %v1661
      %v1663 = vpop.xlane.xlu0 %1662
      %v1664 = vsel %vm1603, %v1645, 0.0
      %1665 = vadd.xlane.f32.xlu0 %v1664
      %v1666 = vpop.xlane.xlu0 %1665
      %v1667 = vsel %vm1603, %v1647, 0.0
      %1668 = vadd.xlane.f32.xlu0 %v1667
      %v1669 = vpop.xlane.xlu0 %1668
      %v1670 = vsel %vm1603, %v1649, 0.0
      %1671 = vadd.xlane.f32.xlu0 %v1670
      %v1672 = vpop.xlane.xlu0 %1671
      %v1673 = vsel %vm1603, %v1651, 0.0
      %1674 = vadd.xlane.f32.xlu0 %v1673
      %v1675 = vpop.xlane.xlu0 %1674
      %v1676 = vrcp.pop %v1654
      %v1677 = vrcp.pop %v1657
      %v1678 = vrcp.pop %v1660
      %v1679 = vrcp.pop %v1663
      %v1680 = vrcp.pop %v1666
      %v1681 = vrcp.pop %v1669
      %v1682 = vrcp.pop %v1672
      %v1683 = vrcp.pop %v1675
      %v1684 = vmul.f32 %v1637, %v1676
      %v1685 = vmul.f32 %v1639, %v1677
      %v1686 = vmul.f32 %v1641, %v1678
      %v1687 = vmul.f32 %v1643, %v1679
      %v1688 = vmul.f32 %v1645, %v1680
      %v1689 = vmul.f32 %v1647, %v1681
      %v1690 = vmul.f32 %v1649, %v1682
      %v1691 = vmul.f32 %v1651, %v1683
      %v1692 = vpack.c.bf16 %v1684, %v1684
      %v1693 = vpack.c.bf16 %v1685, %v1685
      %v1694 = vpack.c.bf16 %v1686, %v1686
      %v1695 = vpack.c.bf16 %v1687, %v1687
      %v1696 = vpack.c.bf16 %v1688, %v1688
      %v1697 = vpack.c.bf16 %v1689, %v1689
      %v1698 = vpack.c.bf16 %v1690, %v1690
      %v1699 = vpack.c.bf16 %v1691, %v1691
      %1700 = vrot.lane.b32.xlu0 %v1194, 64
      %v1701 = vpop.permute.xlu0 %1700
      %vm1702 = vcmask 39936
      %v1704 = vsel %vm1702, %v1692, 0
      %vm1706 = vcmask 1041408
      %vm1707 = vcmask 1042432
      %v1708 = vsel %vm1706, 4294967295, 65535
      %v1709 = vsel %vm1707, %v1708, 0
      %v1711 = vand.u32 %v1701, %v1709
      %1713 = vmatprep.subr.bf16.mxu0 0
      %1714 = vmatpush1.bf16.msra.mxu0 %v1711
      %1715 = vmatprep.subr.bf16.mxu0 0
      %1716 = vmatpush1.bf16.msra.mxu0 0
      %1717 = vmatprep.subr.bf16.mxu0 0
      %1718 = vmatpush1.bf16.msra.mxu0 0
      %1719 = vmatprep.subr.bf16.mxu0 0
      %1720 = vmatpush1.bf16.msra.mxu0 0
      %1721 = vmatprep.subr.bf16.mxu0 0
      %1722 = vmatpush1.bf16.msra.mxu0 0
      %1723 = vmatprep.subr.bf16.mxu0 0
      %1724 = vmatpush1.bf16.msra.mxu0 0
      %1725 = vmatprep.subr.bf16.mxu0 0
      %1726 = vmatpush1.bf16.msra.mxu0 0
      %1727 = vmatprep.subr.bf16.mxu0 0
      %1728 = vmatpush1.bf16.msra.mxu0 0
      %1729 = vmatprep.subr.bf16.mxu0 0
      %1730 = vmatpush1.bf16.msra.mxu0 0
      %1731 = vmatprep.subr.bf16.mxu0 0
      %1732 = vmatpush1.bf16.msra.mxu0 0
      %1733 = vmatprep.subr.bf16.mxu0 0
      %1734 = vmatpush1.bf16.msra.mxu0 0
      %1735 = vmatprep.subr.bf16.mxu0 0
      %1736 = vmatpush1.bf16.msra.mxu0 0
      %1737 = vmatprep.subr.bf16.mxu0 0
      %1738 = vmatpush1.bf16.msra.mxu0 0
      %1739 = vmatprep.subr.bf16.mxu0 0
      %1740 = vmatpush1.bf16.msra.mxu0 0
      %1741 = vmatprep.subr.bf16.mxu0 0
      %1742 = vmatpush1.bf16.msra.mxu0 0
      %1743 = vmatprep.subr.bf16.mxu0 0
      %1744 = vmatpush1.bf16.msra.mxu0 0
      %1745 = vmatprep.mubr.bf16.mxu0 0
      %1746 = vmatmul.mubr.bf16.gmra.mrb[0].mxu0 %v1704
      %v1747 = vpop.f32.mrb[0].mxu0
      %v1748 = vadd.f32 0.0, %v1747
      %v1749 = vpop.f32.mrb[0].mxu0
      %v1750 = vpop.f32.mrb[0].mxu0
      %v1751 = vpop.f32.mrb[0].mxu0
      %1752 = vdwg.mxu0
      %1753 = vrot.lane.b32.xlu0 %v1195, 64
      %v1754 = vpop.permute.xlu0 %1753
      %v1756 = vsel %vm1702, %v1693, 0
      %v1759 = vand.u32 %v1754, %v1709
      %1761 = vmatprep.subr.bf16.mxu0 0
      %1762 = vmatpush1.bf16.msra.mxu0 %v1759
      %1763 = vmatprep.subr.bf16.mxu0 0
      %1764 = vmatpush1.bf16.msra.mxu0 0
      %1765 = vmatprep.subr.bf16.mxu0 0
      %1766 = vmatpush1.bf16.msra.mxu0 0
      %1767 = vmatprep.subr.bf16.mxu0 0
      %1768 = vmatpush1.bf16.msra.mxu0 0
      %1769 = vmatprep.subr.bf16.mxu0 0
      %1770 = vmatpush1.bf16.msra.mxu0 0
      %1771 = vmatprep.subr.bf16.mxu0 0
      %1772 = vmatpush1.bf16.msra.mxu0 0
      %1773 = vmatprep.subr.bf16.mxu0 0
      %1774 = vmatpush1.bf16.msra.mxu0 0
      %1775 = vmatprep.subr.bf16.mxu0 0
      %1776 = vmatpush1.bf16.msra.mxu0 0
      %1777 = vmatprep.subr.bf16.mxu0 0
      %1778 = vmatpush1.bf16.msra.mxu0 0
      %1779 = vmatprep.subr.bf16.mxu0 0
      %1780 = vmatpush1.bf16.msra.mxu0 0
      %1781 = vmatprep.subr.bf16.mxu0 0
      %1782 = vmatpush1.bf16.msra.mxu0 0
      %1783 = vmatprep.subr.bf16.mxu0 0
      %1784 = vmatpush1.bf16.msra.mxu0 0
      %1785 = vmatprep.subr.bf16.mxu0 0
      %1786 = vmatpush1.bf16.msra.mxu0 0
      %1787 = vmatprep.subr.bf16.mxu0 0
      %1788 = vmatpush1.bf16.msra.mxu0 0
      %1789 = vmatprep.subr.bf16.mxu0 0
      %1790 = vmatpush1.bf16.msra.mxu0 0
      %1791 = vmatprep.subr.bf16.mxu0 0
      %1792 = vmatpush1.bf16.msra.mxu0 0
      %1793 = vmatprep.mubr.bf16.mxu0 0
      %1794 = vmatmul.mubr.bf16.gmra.mrb[0].mxu0 %v1756
      %v1795 = vpop.f32.mrb[0].mxu0
      %v1796 = vadd.f32 0.0, %v1795
      %v1797 = vpop.f32.mrb[0].mxu0
      %v1798 = vpop.f32.mrb[0].mxu0
      %v1799 = vpop.f32.mrb[0].mxu0
      %1800 = vdwg.mxu0
      %1801 = vrot.lane.b32.xlu0 %v1199, 64
      %v1802 = vpop.permute.xlu0 %1801
      %v1804 = vsel %vm1702, %v1694, 0
      %v1807 = vand.u32 %v1802, %v1709
      %1809 = vmatprep.subr.bf16.mxu0 0
      %1810 = vmatpush1.bf16.msra.mxu0 %v1807
      %1811 = vmatprep.subr.bf16.mxu0 0
      %1812 = vmatpush1.bf16.msra.mxu0 0
      %1813 = vmatprep.subr.bf16.mxu0 0
      %1814 = vmatpush1.bf16.msra.mxu0 0
      %1815 = vmatprep.subr.bf16.mxu0 0
      %1816 = vmatpush1.bf16.msra.mxu0 0
      %1817 = vmatprep.subr.bf16.mxu0 0
      %1818 = vmatpush1.bf16.msra.mxu0 0
      %1819 = vmatprep.subr.bf16.mxu0 0
      %1820 = vmatpush1.bf16.msra.mxu0 0
      %1821 = vmatprep.subr.bf16.mxu0 0
      %1822 = vmatpush1.bf16.msra.mxu0 0
      %1823 = vmatprep.subr.bf16.mxu0 0
      %1824 = vmatpush1.bf16.msra.mxu0 0
      %1825 = vmatprep.subr.bf16.mxu0 0
      %1826 = vmatpush1.bf16.msra.mxu0 0
      %1827 = vmatprep.subr.bf16.mxu0 0
      %1828 = vmatpush1.bf16.msra.mxu0 0
      %1829 = vmatprep.subr.bf16.mxu0 0
      %1830 = vmatpush1.bf16.msra.mxu0 0
      %1831 = vmatprep.subr.bf16.mxu0 0
      %1832 = vmatpush1.bf16.msra.mxu0 0
      %1833 = vmatprep.subr.bf16.mxu0 0
      %1834 = vmatpush1.bf16.msra.mxu0 0
      %1835 = vmatprep.subr.bf16.mxu0 0
      %1836 = vmatpush1.bf16.msra.mxu0 0
      %1837 = vmatprep.subr.bf16.mxu0 0
      %1838 = vmatpush1.bf16.msra.mxu0 0
      %1839 = vmatprep.subr.bf16.mxu0 0
      %1840 = vmatpush1.bf16.msra.mxu0 0
      %1841 = vmatprep.mubr.bf16.mxu0 0
      %1842 = vmatmul.mubr.bf16.gmra.mrb[0].mxu0 %v1804
      %v1843 = vpop.f32.mrb[0].mxu0
      %v1844 = vadd.f32 0.0, %v1843
      %v1845 = vpop.f32.mrb[0].mxu0
      %v1846 = vpop.f32.mrb[0].mxu0
      %v1847 = vpop.f32.mrb[0].mxu0
      %1848 = vdwg.mxu0
      %1849 = vrot.lane.b32.xlu0 %v1201, 64
      %v1850 = vpop.permute.xlu0 %1849
      %v1852 = vsel %vm1702, %v1695, 0
      %v1855 = vand.u32 %v1850, %v1709
      %1857 = vmatprep.subr.bf16.mxu0 0
      %1858 = vmatpush1.bf16.msra.mxu0 %v1855
      %1859 = vmatprep.subr.bf16.mxu0 0
      %1860 = vmatpush1.bf16.msra.mxu0 0
      %1861 = vmatprep.subr.bf16.mxu0 0
      %1862 = vmatpush1.bf16.msra.mxu0 0
      %1863 = vmatprep.subr.bf16.mxu0 0
      %1864 = vmatpush1.bf16.msra.mxu0 0
      %1865 = vmatprep.subr.bf16.mxu0 0
      %1866 = vmatpush1.bf16.msra.mxu0 0
      %1867 = vmatprep.subr.bf16.mxu0 0
      %1868 = vmatpush1.bf16.msra.mxu0 0
      %1869 = vmatprep.subr.bf16.mxu0 0
      %1870 = vmatpush1.bf16.msra.mxu0 0
      %1871 = vmatprep.subr.bf16.mxu0 0
      %1872 = vmatpush1.bf16.msra.mxu0 0
      %1873 = vmatprep.subr.bf16.mxu0 0
      %1874 = vmatpush1.bf16.msra.mxu0 0
      %1875 = vmatprep.subr.bf16.mxu0 0
      %1876 = vmatpush1.bf16.msra.mxu0 0
      %1877 = vmatprep.subr.bf16.mxu0 0
      %1878 = vmatpush1.bf16.msra.mxu0 0
      %1879 = vmatprep.subr.bf16.mxu0 0
      %1880 = vmatpush1.bf16.msra.mxu0 0
      %1881 = vmatprep.subr.bf16.mxu0 0
      %1882 = vmatpush1.bf16.msra.mxu0 0
      %1883 = vmatprep.subr.bf16.mxu0 0
      %1884 = vmatpush1.bf16.msra.mxu0 0
      %1885 = vmatprep.subr.bf16.mxu0 0
      %1886 = vmatpush1.bf16.msra.mxu0 0
      %1887 = vmatprep.subr.bf16.mxu0 0
      %1888 = vmatpush1.bf16.msra.mxu0 0
      %1889 = vmatprep.mubr.bf16.mxu0 0
      %1890 = vmatmul.mubr.bf16.gmra.mrb[0].mxu0 %v1852
      %v1891 = vpop.f32.mrb[0].mxu0
      %v1892 = vadd.f32 0.0, %v1891
      %v1893 = vpop.f32.mrb[0].mxu0
      %v1894 = vpop.f32.mrb[0].mxu0
      %v1895 = vpop.f32.mrb[0].mxu0
      %1896 = vdwg.mxu0
      %1897 = vrot.lane.b32.xlu0 %v1203, 64
      %v1898 = vpop.permute.xlu0 %1897
      %v1900 = vsel %vm1702, %v1696, 0
      %v1903 = vand.u32 %v1898, %v1709
      %1905 = vmatprep.subr.bf16.mxu0 0
      %1906 = vmatpush1.bf16.msra.mxu0 %v1903
      %1907 = vmatprep.subr.bf16.mxu0 0
      %1908 = vmatpush1.bf16.msra.mxu0 0
      %1909 = vmatprep.subr.bf16.mxu0 0
      %1910 = vmatpush1.bf16.msra.mxu0 0
      %1911 = vmatprep.subr.bf16.mxu0 0
      %1912 = vmatpush1.bf16.msra.mxu0 0
      %1913 = vmatprep.subr.bf16.mxu0 0
      %1914 = vmatpush1.bf16.msra.mxu0 0
      %1915 = vmatprep.subr.bf16.mxu0 0
      %1916 = vmatpush1.bf16.msra.mxu0 0
      %1917 = vmatprep.subr.bf16.mxu0 0
      %1918 = vmatpush1.bf16.msra.mxu0 0
      %1919 = vmatprep.subr.bf16.mxu0 0
      %1920 = vmatpush1.bf16.msra.mxu0 0
      %1921 = vmatprep.subr.bf16.mxu0 0
      %1922 = vmatpush1.bf16.msra.mxu0 0
      %1923 = vmatprep.subr.bf16.mxu0 0
      %1924 = vmatpush1.bf16.msra.mxu0 0
      %1925 = vmatprep.subr.bf16.mxu0 0
      %1926 = vmatpush1.bf16.msra.mxu0 0
      %1927 = vmatprep.subr.bf16.mxu0 0
      %1928 = vmatpush1.bf16.msra.mxu0 0
      %1929 = vmatprep.subr.bf16.mxu0 0
      %1930 = vmatpush1.bf16.msra.mxu0 0
      %1931 = vmatprep.subr.bf16.mxu0 0
      %1932 = vmatpush1.bf16.msra.mxu0 0
      %1933 = vmatprep.subr.bf16.mxu0 0
      %1934 = vmatpush1.bf16.msra.mxu0 0
      %1935 = vmatprep.subr.bf16.mxu0 0
      %1936 = vmatpush1.bf16.msra.mxu0 0
      %1937 = vmatprep.mubr.bf16.mxu0 0
      %1938 = vmatmul.mubr.bf16.gmra.mrb[0].mxu0 %v1900
      %v1939 = vpop.f32.mrb[0].mxu0
      %v1940 = vadd.f32 0.0, %v1939
      %v1941 = vpop.f32.mrb[0].mxu0
      %v1942 = vpop.f32.mrb[0].mxu0
      %v1943 = vpop.f32.mrb[0].mxu0
      %1944 = vdwg.mxu0
      %1945 = vrot.lane.b32.xlu0 %v1205, 64
      %v1946 = vpop.permute.xlu0 %1945
      %v1948 = vsel %vm1702, %v1697, 0
      %v1951 = vand.u32 %v1946, %v1709
      %1953 = vmatprep.subr.bf16.mxu0 0
      %1954 = vmatpush1.bf16.msra.mxu0 %v1951
      %1955 = vmatprep.subr.bf16.mxu0 0
      %1956 = vmatpush1.bf16.msra.mxu0 0
      %1957 = vmatprep.subr.bf16.mxu0 0
      %1958 = vmatpush1.bf16.msra.mxu0 0
      %1959 = vmatprep.subr.bf16.mxu0 0
      %1960 = vmatpush1.bf16.msra.mxu0 0
      %1961 = vmatprep.subr.bf16.mxu0 0
      %1962 = vmatpush1.bf16.msra.mxu0 0
      %1963 = vmatprep.subr.bf16.mxu0 0
      %1964 = vmatpush1.bf16.msra.mxu0 0
      %1965 = vmatprep.subr.bf16.mxu0 0
      %1966 = vmatpush1.bf16.msra.mxu0 0
      %1967 = vmatprep.subr.bf16.mxu0 0
      %1968 = vmatpush1.bf16.msra.mxu0 0
      %1969 = vmatprep.subr.bf16.mxu0 0
      %1970 = vmatpush1.bf16.msra.mxu0 0
      %1971 = vmatprep.subr.bf16.mxu0 0
      %1972 = vmatpush1.bf16.msra.mxu0 0
      %1973 = vmatprep.subr.bf16.mxu0 0
      %1974 = vmatpush1.bf16.msra.mxu0 0
      %1975 = vmatprep.subr.bf16.mxu0 0
      %1976 = vmatpush1.bf16.msra.mxu0 0
      %1977 = vmatprep.subr.bf16.mxu0 0
      %1978 = vmatpush1.bf16.msra.mxu0 0
      %1979 = vmatprep.subr.bf16.mxu0 0
      %1980 = vmatpush1.bf16.msra.mxu0 0
      %1981 = vmatprep.subr.bf16.mxu0 0
      %1982 = vmatpush1.bf16.msra.mxu0 0
      %1983 = vmatprep.subr.bf16.mxu0 0
      %1984 = vmatpush1.bf16.msra.mxu0 0
      %1985 = vmatprep.mubr.bf16.mxu0 0
      %1986 = vmatmul.mubr.bf16.gmra.mrb[0].mxu0 %v1948
      %v1987 = vpop.f32.mrb[0].mxu0
      %v1988 = vadd.f32 0.0, %v1987
      %v1989 = vpop.f32.mrb[0].mxu0
      %v1990 = vpop.f32.mrb[0].mxu0
      %v1991 = vpop.f32.mrb[0].mxu0
      %1992 = vdwg.mxu0
      %1993 = vrot.lane.b32.xlu0 %v1207, 64
      %v1994 = vpop.permute.xlu0 %1993
      %v1996 = vsel %vm1702, %v1698, 0
      %v1999 = vand.u32 %v1994, %v1709
      %2001 = vmatprep.subr.bf16.mxu0 0
      %2002 = vmatpush1.bf16.msra.mxu0 %v1999
      %2003 = vmatprep.subr.bf16.mxu0 0
      %2004 = vmatpush1.bf16.msra.mxu0 0
      %2005 = vmatprep.subr.bf16.mxu0 0
      %2006 = vmatpush1.bf16.msra.mxu0 0
      %2007 = vmatprep.subr.bf16.mxu0 0
      %2008 = vmatpush1.bf16.msra.mxu0 0
      %2009 = vmatprep.subr.bf16.mxu0 0
      %2010 = vmatpush1.bf16.msra.mxu0 0
      %2011 = vmatprep.subr.bf16.mxu0 0
      %2012 = vmatpush1.bf16.msra.mxu0 0
      %2013 = vmatprep.subr.bf16.mxu0 0
      %2014 = vmatpush1.bf16.msra.mxu0 0
      %2015 = vmatprep.subr.bf16.mxu0 0
      %2016 = vmatpush1.bf16.msra.mxu0 0
      %2017 = vmatprep.subr.bf16.mxu0 0
      %2018 = vmatpush1.bf16.msra.mxu0 0
      %2019 = vmatprep.subr.bf16.mxu0 0
      %2020 = vmatpush1.bf16.msra.mxu0 0
      %2021 = vmatprep.subr.bf16.mxu0 0
      %2022 = vmatpush1.bf16.msra.mxu0 0
      %2023 = vmatprep.subr.bf16.mxu0 0
      %2024 = vmatpush1.bf16.msra.mxu0 0
      %2025 = vmatprep.subr.bf16.mxu0 0
      %2026 = vmatpush1.bf16.msra.mxu0 0
      %2027 = vmatprep.subr.bf16.mxu0 0
      %2028 = vmatpush1.bf16.msra.mxu0 0
      %2029 = vmatprep.subr.bf16.mxu0 0
      %2030 = vmatpush1.bf16.msra.mxu0 0
      %2031 = vmatprep.subr.bf16.mxu0 0
      %2032 = vmatpush1.bf16.msra.mxu0 0
      %2033 = vmatprep.mubr.bf16.mxu0 0
      %2034 = vmatmul.mubr.bf16.gmra.mrb[0].mxu0 %v1996
      %v2035 = vpop.f32.mrb[0].mxu0
      %v2036 = vadd.f32 0.0, %v2035
      %v2037 = vpop.f32.mrb[0].mxu0
      %v2038 = vpop.f32.mrb[0].mxu0
      %v2039 = vpop.f32.mrb[0].mxu0
      %2040 = vdwg.mxu0
      %2041 = vrot.lane.b32.xlu0 %v1209, 64
      %v2042 = vpop.permute.xlu0 %2041
      %v2044 = vsel %vm1702, %v1699, 0
      %v2047 = vand.u32 %v2042, %v1709
      %2049 = vmatprep.subr.bf16.mxu0 0
      %2050 = vmatpush1.bf16.msra.mxu0 %v2047
      %2051 = vmatprep.subr.bf16.mxu0 0
      %2052 = vmatpush1.bf16.msra.mxu0 0
      %2053 = vmatprep.subr.bf16.mxu0 0
      %2054 = vmatpush1.bf16.msra.mxu0 0
      %2055 = vmatprep.subr.bf16.mxu0 0
      %2056 = vmatpush1.bf16.msra.mxu0 0
      %2057 = vmatprep.subr.bf16.mxu0 0
      %2058 = vmatpush1.bf16.msra.mxu0 0
      %2059 = vmatprep.subr.bf16.mxu0 0
      %2060 = vmatpush1.bf16.msra.mxu0 0
      %2061 = vmatprep.subr.bf16.mxu0 0
      %2062 = vmatpush1.bf16.msra.mxu0 0
      %2063 = vmatprep.subr.bf16.mxu0 0
      %2064 = vmatpush1.bf16.msra.mxu0 0
      %2065 = vmatprep.subr.bf16.mxu0 0
      %2066 = vmatpush1.bf16.msra.mxu0 0
      %2067 = vmatprep.subr.bf16.mxu0 0
      %2068 = vmatpush1.bf16.msra.mxu0 0
      %2069 = vmatprep.subr.bf16.mxu0 0
      %2070 = vmatpush1.bf16.msra.mxu0 0
      %2071 = vmatprep.subr.bf16.mxu0 0
      %2072 = vmatpush1.bf16.msra.mxu0 0
      %2073 = vmatprep.subr.bf16.mxu0 0
      %2074 = vmatpush1.bf16.msra.mxu0 0
      %2075 = vmatprep.subr.bf16.mxu0 0
      %2076 = vmatpush1.bf16.msra.mxu0 0
      %2077 = vmatprep.subr.bf16.mxu0 0
      %2078 = vmatpush1.bf16.msra.mxu0 0
      %2079 = vmatprep.subr.bf16.mxu0 0
      %2080 = vmatpush1.bf16.msra.mxu0 0
      %2081 = vmatprep.mubr.bf16.mxu0 0
      %2082 = vmatmul.mubr.bf16.gmra.mrb[0].mxu0 %v2044
      %v2083 = vpop.f32.mrb[0].mxu0
      %v2084 = vadd.f32 0.0, %v2083
      %v2085 = vpop.f32.mrb[0].mxu0
      %v2086 = vpop.f32.mrb[0].mxu0
      %v2087 = vpop.f32.mrb[0].mxu0
      %2088 = vdwg.mxu0
      %2091 = vrot.lane.b32.xlu0 %v1844, 8
      %v2092 = vpop.permute.xlu0 %2091
      %2093 = vrot.lane.b32.xlu0 %v1892, 8
      %v2094 = vpop.permute.xlu0 %2093
      %2099 = vrot.lane.b32.xlu0 %v1940, 16
      %v2100 = vpop.permute.xlu0 %2099
      %2101 = vrot.lane.b32.xlu0 %v1988, 16
      %v2102 = vpop.permute.xlu0 %2101
      %2107 = vrot.lane.b32.xlu0 %v2036, 24
      %v2108 = vpop.permute.xlu0 %2107
      %2109 = vrot.lane.b32.xlu0 %v2084, 24
      %v2110 = vpop.permute.xlu0 %2109
      %v2113 = vsel %vm1212, %v1748, %v2092
      %v2114 = vsel %vm1212, %v1796, %v2094
      %vm2115 = vcmask 130048
      %v2116 = vsel %vm2115, %v2113, %v2100
      %v2117 = vsel %vm2115, %v2114, %v2102
      %vm2118 = vcmask 195584
      %v2119 = vsel %vm2118, %v2116, %v2108
      %v2120 = vsel %vm2118, %v2117, %v2110
      %v2121 = vpack.c.bf16 %v2119, %v2119
      %v2122 = vpack.c.bf16 %v2120, %v2120
      %v2123 = vld [vmem:[%s674] sm:$0xf]
      %v2124 = vld [vmem:[%s674 + $0x4] sm:$0xf]
      %v2125 = vld [vmem:[%s674 + $0x8] sm:$0xf]
      %v2126 = vld [vmem:[%s674 + $0xc] sm:$0xf]
      %v2127 = vld [vmem:[%s677] sm:$0x1]
      %v2129 = vlaneseq
      %v2130 = vshrl.u32 %v2129, 7
      %v2131 = vsub.s32 0, %v2130
      %v2132 = vrot.slane %v2127, %v2131
      %v2136 = vunpack.c.l.s4 1966171168
      %v2137 = vunpack.c.0.s8 %v2136
      %v2138 = vlaneseq
      %v2139 = vshrl.u32 %v2138, 7
      %v2140 = vsub.s32 %v2137, %v2139
      %v2141 = vrot.slane %v2121, %v2140
      %v2142 = vcombine.high %v2141, %v2141
      %v2144 = vunpack.c.l.s4 1966171168
      %v2145 = vunpack.c.0.s8 %v2144
      %v2146 = vlaneseq
      %v2147 = vshrl.u32 %v2146, 7
      %v2148 = vsub.s32 %v2145, %v2147
      %v2149 = vrot.slane %v2141, %v2148
      %v2151 = vunpack.c.l.s4 1966171168
      %v2152 = vunpack.c.0.s8 %v2151
      %v2153 = vlaneseq
      %v2154 = vshrl.u32 %v2153, 7
      %v2155 = vsub.s32 %v2152, %v2154
      %v2156 = vrot.slane %v2142, %v2155
      %v2157 = vcombine.high %v2149, %v2149
      %v2159 = vunpack.c.l.s4 1966171168
      %v2160 = vunpack.c.0.s8 %v2159
      %v2161 = vlaneseq
      %v2162 = vshrl.u32 %v2161, 7
      %v2163 = vsub.s32 %v2160, %v2162
      %v2164 = vrot.slane %v2122, %v2163
      %v2165 = vcombine.high %v2164, %v2164
      %v2167 = vunpack.c.l.s4 1966171168
      %v2168 = vunpack.c.0.s8 %v2167
      %v2169 = vlaneseq
      %v2170 = vshrl.u32 %v2169, 7
      %v2171 = vsub.s32 %v2168, %v2170
      %v2172 = vrot.slane %v2164, %v2171
      %v2174 = vunpack.c.l.s4 1966171168
      %v2175 = vunpack.c.0.s8 %v2174
      %v2176 = vlaneseq
      %v2177 = vshrl.u32 %v2176, 7
      %v2178 = vsub.s32 %v2175, %v2177
      %v2179 = vrot.slane %v2165, %v2178
      %v2180 = vcombine.high %v2172, %v2172
      %v2181 = vunpack.i.l.s16 %v2149
      %v2182 = vunpack.i.h.s16 %v2149
      %v2183 = vunpack.i.l.s16 %v2156
      %v2184 = vunpack.i.h.s16 %v2156
      %v2185 = vunpack.i.l.s16 %v2157
      %v2186 = vunpack.i.l.s16 %v2172
      %v2187 = vunpack.i.h.s16 %v2172
      %v2188 = vunpack.i.l.s16 %v2179
      %v2189 = vunpack.i.h.s16 %v2179
      %v2190 = vunpack.i.l.s16 %v2180
      %v2191 = vcombine.high %v2132, %v2132
      %v2193 = vunpack.c.l.s4 1966171168
      %v2194 = vunpack.c.0.s8 %v2193
      %v2195 = vlaneseq
      %v2196 = vshrl.u32 %v2195, 7
      %v2197 = vsub.s32 %v2194, %v2196
      %v2198 = vrot.slane %v2132, %v2197
      %v2200 = vunpack.c.l.s4 1966171168
      %v2201 = vunpack.c.0.s8 %v2200
      %v2202 = vlaneseq
      %v2203 = vshrl.u32 %v2202, 7
      %v2204 = vsub.s32 %v2201, %v2203
      %v2205 = vrot.slane %v2191, %v2204
      %v2206 = vcombine.high %v2198, %v2198
      %v2208 = vunpack.c.l.s4 1966171168
      %v2209 = vunpack.c.0.s8 %v2208
      %v2210 = vlaneseq
      %v2211 = vshrl.u32 %v2210, 7
      %v2212 = vsub.s32 %v2209, %v2211
      %v2213 = vrot.slane %v2198, %v2212
      %v2215 = vunpack.c.l.s4 1966171168
      %v2216 = vunpack.c.0.s8 %v2215
      %v2217 = vlaneseq
      %v2218 = vshrl.u32 %v2217, 7
      %v2219 = vsub.s32 %v2216, %v2218
      %v2220 = vrot.slane %v2205, %v2219
      %v2222 = vunpack.c.l.s4 1966171168
      %v2223 = vunpack.c.0.s8 %v2222
      %v2224 = vlaneseq
      %v2225 = vshrl.u32 %v2224, 7
      %v2226 = vsub.s32 %v2223, %v2225
      %v2227 = vrot.slane %v2206, %v2226
      %v2228 = vcombine.high %v2213, %v2213
      %v2229 = vcombine.high %v2227, %v2227
      %v2230 = vpack.i.b16 %v2182, %v2181
      %v2231 = vpack.i.b16 %v2184, %v2183
      %v2232 = vpack.i.b16 %v2186, %v2185
      %v2233 = vpack.i.b16 %v2188, %v2187
      %v2234 = vpack.i.b16 %v2190, %v2189
      %v2235 = vcombine.low %v2230, %v2231
      %v2236 = vcombine.low %v2232, %v2233
      %v2238 = vunpack.c.l.s4 1966171168
      %v2239 = vunpack.c.0.s8 %v2238
      %v2240 = vlaneseq
      %v2241 = vshrl.u32 %v2240, 7
      %v2242 = vsub.s32 %v2239, %v2241
      %v2243 = vrot.slane %v2235, %v2242
      %v2245 = vunpack.c.l.s4 1966171168
      %v2246 = vunpack.c.0.s8 %v2245
      %v2247 = vlaneseq
      %v2248 = vshrl.u32 %v2247, 7
      %v2249 = vsub.s32 %v2246, %v2248
      %v2250 = vrot.slane %v2236, %v2249
      %v2252 = vunpack.c.l.s4 1966171168
      %v2253 = vunpack.c.0.s8 %v2252
      %v2254 = vlaneseq
      %v2255 = vshrl.u32 %v2254, 7
      %v2256 = vsub.s32 %v2253, %v2255
      %v2257 = vrot.slane %v2234, %v2256
      %v2258 = vcombine.low %v2243, %v2250
      %v2260 = vunpack.c.l.s4 1966171168
      %v2261 = vunpack.c.0.s8 %v2260
      %v2262 = vlaneseq
      %v2263 = vshrl.u32 %v2262, 7
      %v2264 = vsub.s32 %v2261, %v2263
      %v2265 = vrot.slane %v2258, %v2264
      %v2267 = vunpack.c.l.s4 1966171168
      %v2268 = vunpack.c.0.s8 %v2267
      %v2269 = vlaneseq
      %v2270 = vshrl.u32 %v2269, 7
      %v2271 = vsub.s32 %v2268, %v2270
      %v2272 = vrot.slane %v2257, %v2271
      %v2273 = vcombine.low %v2265, %v2272
      %v2278 = vunpack.c.l.b16 %v2123
      %v2279 = vunpack.c.l.b16 %v2124
      %v2280 = vunpack.c.l.b16 %v2125
      %v2281 = vunpack.c.l.b16 %v2126
      %v2282 = vpack.c.b16 %v2279, %v2278
      %v2283 = vpack.c.b16 %v2281, %v2280
      %v2286 = vcombine.low %v2213, %v2227
      %v2287 = vcombine.low %v2228, %v2229
      %v2288 = vcombine.low %v2220, %v2213
      %v2289 = vcombine.low %v2227, %v2228
      %v2291 = vunpack.c.l.s4 1966171168
      %v2292 = vunpack.c.0.s8 %v2291
      %v2293 = vlaneseq
      %v2294 = vshrl.u32 %v2293, 7
      %v2295 = vsub.s32 %v2292, %v2294
      %v2296 = vrot.slane %v2286, %v2295
      %v2298 = vunpack.c.l.s4 1966171168
      %v2299 = vunpack.c.0.s8 %v2298
      %v2300 = vlaneseq
      %v2301 = vshrl.u32 %v2300, 7
      %v2302 = vsub.s32 %v2299, %v2301
      %v2303 = vrot.slane %v2287, %v2302
      %v2305 = vunpack.c.l.s4 1966171168
      %v2306 = vunpack.c.0.s8 %v2305
      %v2307 = vlaneseq
      %v2308 = vshrl.u32 %v2307, 7
      %v2309 = vsub.s32 %v2306, %v2308
      %v2310 = vrot.slane %v2288, %v2309
      %v2312 = vunpack.c.l.s4 1966171168
      %v2313 = vunpack.c.0.s8 %v2312
      %v2314 = vlaneseq
      %v2315 = vshrl.u32 %v2314, 7
      %v2316 = vsub.s32 %v2313, %v2315
      %v2317 = vrot.slane %v2289, %v2316
      %v2318 = vcombine.low %v2296, %v2303
      %v2319 = vcombine.low %v2310, %v2317
      %v2321 = vunpack.c.l.s4 1966171168
      %v2322 = vunpack.c.0.s8 %v2321
      %v2323 = vlaneseq
      %v2324 = vshrl.u32 %v2323, 7
      %v2325 = vsub.s32 %v2322, %v2324
      %v2326 = vrot.slane %v2318, %v2325
      %v2328 = vunpack.c.l.s4 1966171168
      %v2329 = vunpack.c.0.s8 %v2328
      %v2330 = vlaneseq
      %v2331 = vshrl.u32 %v2330, 7
      %v2332 = vsub.s32 %v2329, %v2331
      %v2333 = vrot.slane %v2319, %v2332
      %v2334 = vcombine.low %v2326, %v2333
      %v2335 = vcombine.low %v2229, %v2220
      %v2337 = vunpack.c.l.s4 1966171168
      %v2338 = vunpack.c.0.s8 %v2337
      %v2339 = vlaneseq
      %v2340 = vshrl.u32 %v2339, 7
      %v2341 = vsub.s32 %v2338, %v2340
      %v2342 = vrot.slane %v2335, %v2341
      %v2344 = vunpack.c.l.s4 1966171168
      %v2345 = vunpack.c.0.s8 %v2344
      %v2346 = vlaneseq
      %v2347 = vshrl.u32 %v2346, 7
      %v2348 = vsub.s32 %v2345, %v2347
      %v2349 = vrot.slane %v2342, %v2348
      %v2353 = vsel %vm996, %v2273, 0
      %2355 = vmatprep.subr.bf16.mxu0 0
      %2356 = vmatpush1.bf16.msra.mxu0 %v2282
      %2357 = vmatprep.subr.bf16.mxu0 0
      %2358 = vmatpush1.bf16.msra.mxu0 %v2283
      %2359 = vmatprep.subr.bf16.mxu0 0
      %2360 = vmatpush1.bf16.msra.mxu0 0
      %2361 = vmatprep.subr.bf16.mxu0 0
      %2362 = vmatpush1.bf16.msra.mxu0 0
      %2363 = vmatprep.subr.bf16.mxu0 0
      %2364 = vmatpush1.bf16.msra.mxu0 0
      %2365 = vmatprep.subr.bf16.mxu0 0
      %2366 = vmatpush1.bf16.msra.mxu0 0
      %2367 = vmatprep.subr.bf16.mxu0 0
      %2368 = vmatpush1.bf16.msra.mxu0 0
      %2369 = vmatprep.subr.bf16.mxu0 0
      %2370 = vmatpush1.bf16.msra.mxu0 0
      %2371 = vmatprep.subr.bf16.mxu0 0
      %2372 = vmatpush1.bf16.msra.mxu0 0
      %2373 = vmatprep.subr.bf16.mxu0 0
      %2374 = vmatpush1.bf16.msra.mxu0 0
      %2375 = vmatprep.subr.bf16.mxu0 0
      %2376 = vmatpush1.bf16.msra.mxu0 0
      %2377 = vmatprep.subr.bf16.mxu0 0
      %2378 = vmatpush1.bf16.msra.mxu0 0
      %2379 = vmatprep.subr.bf16.mxu0 0
      %2380 = vmatpush1.bf16.msra.mxu0 0
      %2381 = vmatprep.subr.bf16.mxu0 0
      %2382 = vmatpush1.bf16.msra.mxu0 0
      %2383 = vmatprep.subr.bf16.mxu0 0
      %2384 = vmatpush1.bf16.msra.mxu0 0
      %2385 = vmatprep.subr.bf16.mxu0 0
      %2386 = vmatpush1.bf16.msra.mxu0 0
      %2387 = vmatprep.mubr.bf16.mxu0 0
      %2388 = vmatmul.mubr.bf16.gmra.mrb[0].mxu0 %v2353
      %v2389 = vpop.f32.mrb[0].mxu0
      %v2390 = vadd.f32 %v2334, %v2389
      %v2391 = vpop.f32.mrb[0].mxu0
      %v2392 = vpop.f32.mrb[0].mxu0
      %v2393 = vadd.f32 %v2349, %v2392
      %v2394 = vpop.f32.mrb[0].mxu0
      %2395 = vdwg.mxu0
      %v2398 = vcombine.high %v2390, %v2390
      %v2400 = vunpack.c.l.s4 1966171168
      %v2401 = vunpack.c.0.s8 %v2400
      %v2402 = vlaneseq
      %v2403 = vshrl.u32 %v2402, 7
      %v2404 = vsub.s32 %v2401, %v2403
      %v2405 = vrot.slane %v2390, %v2404
      %v2407 = vunpack.c.l.s4 1966171168
      %v2408 = vunpack.c.0.s8 %v2407
      %v2409 = vlaneseq
      %v2410 = vshrl.u32 %v2409, 7
      %v2411 = vsub.s32 %v2408, %v2410
      %v2412 = vrot.slane %v2398, %v2411
      %v2413 = vcombine.high %v2405, %v2405
      %v2414 = vcombine.high %v2412, %v2412
      %v2416 = vunpack.c.l.s4 1966171168
      %v2417 = vunpack.c.0.s8 %v2416
      %v2418 = vlaneseq
      %v2419 = vshrl.u32 %v2418, 7
      %v2420 = vsub.s32 %v2417, %v2419
      %v2421 = vrot.slane %v2405, %v2420
      %v2423 = vunpack.c.l.s4 1966171168
      %v2424 = vunpack.c.0.s8 %v2423
      %v2425 = vlaneseq
      %v2426 = vshrl.u32 %v2425, 7
      %v2427 = vsub.s32 %v2424, %v2426
      %v2428 = vrot.slane %v2412, %v2427
      %v2430 = vunpack.c.l.s4 1966171168
      %v2431 = vunpack.c.0.s8 %v2430
      %v2432 = vlaneseq
      %v2433 = vshrl.u32 %v2432, 7
      %v2434 = vsub.s32 %v2431, %v2433
      %v2435 = vrot.slane %v2413, %v2434
      %v2437 = vunpack.c.l.s4 1966171168
      %v2438 = vunpack.c.0.s8 %v2437
      %v2439 = vlaneseq
      %v2440 = vshrl.u32 %v2439, 7
      %v2441 = vsub.s32 %v2438, %v2440
      %v2442 = vrot.slane %v2414, %v2441
      %v2443 = vcombine.high %v2421, %v2421
      %v2444 = vcombine.high %v2428, %v2428
      %v2445 = vcombine.high %v2435, %v2435
      %v2446 = vcombine.high %v2442, %v2442
      %v2448 = vunpack.c.l.s4 1966171168
      %v2449 = vunpack.c.0.s8 %v2448
      %v2450 = vlaneseq
      %v2451 = vshrl.u32 %v2450, 7
      %v2452 = vsub.s32 %v2449, %v2451
      %v2453 = vrot.slane %v2393, %v2452
      %v2454 = vcombine.high %v2453, %v2453
      %v2456 = vunpack.c.l.s4 1966171168
      %v2457 = vunpack.c.0.s8 %v2456
      %v2458 = vlaneseq
      %v2459 = vshrl.u32 %v2458, 7
      %v2460 = vsub.s32 %v2457, %v2459
      %v2461 = vrot.slane %v2453, %v2460
      %v2463 = vunpack.c.l.s4 1966171168
      %v2464 = vunpack.c.0.s8 %v2463
      %v2465 = vlaneseq
      %v2466 = vshrl.u32 %v2465, 7
      %v2467 = vsub.s32 %v2464, %v2466
      %v2468 = vrot.slane %v2454, %v2467
      %v2469 = vcombine.low %v2421, %v2435
      %v2470 = vcombine.low %v2443, %v2445
      %v2472 = vunpack.c.l.s4 1966171168
      %v2473 = vunpack.c.0.s8 %v2472
      %v2474 = vlaneseq
      %v2475 = vshrl.u32 %v2474, 7
      %v2476 = vsub.s32 %v2473, %v2475
      %v2477 = vrot.slane %v2469, %v2476
      %v2479 = vunpack.c.l.s4 1966171168
      %v2480 = vunpack.c.0.s8 %v2479
      %v2481 = vlaneseq
      %v2482 = vshrl.u32 %v2481, 7
      %v2483 = vsub.s32 %v2480, %v2482
      %v2484 = vrot.slane %v2470, %v2483
      %v2486 = vunpack.c.l.s4 1966171168
      %v2487 = vunpack.c.0.s8 %v2486
      %v2488 = vlaneseq
      %v2489 = vshrl.u32 %v2488, 7
      %v2490 = vsub.s32 %v2487, %v2489
      %v2491 = vrot.slane %v2428, %v2490
      %v2492 = vcombine.low %v2477, %v2484
      %v2494 = vunpack.c.l.s4 1966171168
      %v2495 = vunpack.c.0.s8 %v2494
      %v2496 = vlaneseq
      %v2497 = vshrl.u32 %v2496, 7
      %v2498 = vsub.s32 %v2495, %v2497
      %v2499 = vrot.slane %v2492, %v2498
      %v2501 = vunpack.c.l.s4 1966171168
      %v2502 = vunpack.c.0.s8 %v2501
      %v2503 = vlaneseq
      %v2504 = vshrl.u32 %v2503, 7
      %v2505 = vsub.s32 %v2502, %v2504
      %v2506 = vrot.slane %v2491, %v2505
      %v2507 = vcombine.low %v2499, %v2506
      %v2508 = vcombine.low %v2442, %v2444
      %v2509 = vcombine.low %v2446, %v2461
      %v2511 = vunpack.c.l.s4 1966171168
      %v2512 = vunpack.c.0.s8 %v2511
      %v2513 = vlaneseq
      %v2514 = vshrl.u32 %v2513, 7
      %v2515 = vsub.s32 %v2512, %v2514
      %v2516 = vrot.slane %v2508, %v2515
      %v2518 = vunpack.c.l.s4 1966171168
      %v2519 = vunpack.c.0.s8 %v2518
      %v2520 = vlaneseq
      %v2521 = vshrl.u32 %v2520, 7
      %v2522 = vsub.s32 %v2519, %v2521
      %v2523 = vrot.slane %v2509, %v2522
      %v2525 = vunpack.c.l.s4 1966171168
      %v2526 = vunpack.c.0.s8 %v2525
      %v2527 = vlaneseq
      %v2528 = vshrl.u32 %v2527, 7
      %v2529 = vsub.s32 %v2526, %v2528
      %v2530 = vrot.slane %v2468, %v2529
      %v2531 = vcombine.low %v2516, %v2523
      %v2533 = vunpack.c.l.s4 1966171168
      %v2534 = vunpack.c.0.s8 %v2533
      %v2535 = vlaneseq
      %v2536 = vshrl.u32 %v2535, 7
      %v2537 = vsub.s32 %v2534, %v2536
      %v2538 = vrot.slane %v2531, %v2537
      %v2540 = vunpack.c.l.s4 1966171168
      %v2541 = vunpack.c.0.s8 %v2540
      %v2542 = vlaneseq
      %v2543 = vshrl.u32 %v2542, 7
      %v2544 = vsub.s32 %v2541, %v2543
      %v2545 = vrot.slane %v2530, %v2544
      %v2546 = vcombine.low %v2538, %v2545
      %v2549 = vadd.f32 %v717, %v2507
      %v2550 = vadd.f32 %v718, %v2546
      %v2551 = vld [vmem:[%s680] sm:$0x1]
      %v2552 = vld [vmem:[%s683] sm:$0x1]
      %v2553 = vsel %vm721, %v2549, 0.0
      %2554 = vadd.xlane.f32.xlu0 %v2553
      %v2555 = vpop.xlane.xlu0 %2554
      %v2556 = vsel %vm721, %v2550, 0.0
      %2557 = vadd.xlane.f32.xlu0 %v2556
      %v2558 = vpop.xlane.xlu0 %2557
      %v2559 = vmul.f32 %v2555, %v728
      %v2560 = vmul.f32 %v2558, %v728
      %v2561 = vsub.f32 %v2549, %v2559
      %v2562 = vsub.f32 %v2550, %v2560
      %v2563 = vmul.f32 %v2561, %v2561
      %v2564 = vmul.f32 %v2562, %v2562
      %v2565 = vsel %vm721, %v2563, 0.0
      %2566 = vadd.xlane.f32.xlu0 %v2565
      %v2567 = vpop.xlane.xlu0 %2566
      %v2568 = vsel %vm721, %v2564, 0.0
      %2569 = vadd.xlane.f32.xlu0 %v2568
      %v2570 = vpop.xlane.xlu0 %2569
      %v2571 = vmul.f32 %v2567, %v728
      %v2572 = vmul.f32 %v2570, %v728
      %v2573 = vadd.f32 %v2571, 1e-06
      %v2574 = vadd.f32 %v2572, 1e-06
      %v2575 = vrsqrt.pop %v2573
      %v2576 = vrsqrt.pop %v2574
      %v2577 = vmul.f32 %v2561, %v2575
      %v2578 = vmul.f32 %v2562, %v2576
      %v2580 = vlaneseq
      %v2581 = vshrl.u32 %v2580, 7
      %v2582 = vsub.s32 0, %v2581
      %v2583 = vrot.slane %v2551, %v2582
      %v2585 = vmul.f32 %v2577, %v2583
      %v2586 = vmul.f32 %v2578, %v2583
      %v2588 = vlaneseq
      %v2589 = vshrl.u32 %v2588, 7
      %v2590 = vsub.s32 0, %v2589
      %v2591 = vrot.slane %v2552, %v2590
      %v2593 = vadd.f32 %v2585, %v2591
      %v2594 = vadd.f32 %v2586, %v2591
      %v2595 = vpack.c.bf16 %v2593, %v2593
      %v2596 = vpack.c.bf16 %v2594, %v2594
      %v2597 = vld [vmem:[%s688] sm:$0xf]
      %v2598 = vld [vmem:[%s688 + $0x4] sm:$0xf]
      %v2599 = vld [vmem:[%s688 + $0x8] sm:$0xf]
      %v2600 = vld [vmem:[%s688 + $0xc] sm:$0xf]
      %v2601 = vld [vmem:[%s691] sm:$0x1]
      %v2603 = vlaneseq
      %v2604 = vshrl.u32 %v2603, 7
      %v2605 = vsub.s32 0, %v2604
      %v2606 = vrot.slane %v2601, %v2605
      %v2610 = vunpack.c.l.s4 1966171168
      %v2611 = vunpack.c.0.s8 %v2610
      %v2612 = vlaneseq
      %v2613 = vshrl.u32 %v2612, 7
      %v2614 = vsub.s32 %v2611, %v2613
      %v2615 = vrot.slane %v2595, %v2614
      %v2616 = vcombine.high %v2615, %v2615
      %v2618 = vunpack.c.l.s4 1966171168
      %v2619 = vunpack.c.0.s8 %v2618
      %v2620 = vlaneseq
      %v2621 = vshrl.u32 %v2620, 7
      %v2622 = vsub.s32 %v2619, %v2621
      %v2623 = vrot.slane %v2615, %v2622
      %v2625 = vunpack.c.l.s4 1966171168
      %v2626 = vunpack.c.0.s8 %v2625
      %v2627 = vlaneseq
      %v2628 = vshrl.u32 %v2627, 7
      %v2629 = vsub.s32 %v2626, %v2628
      %v2630 = vrot.slane %v2616, %v2629
      %v2631 = vcombine.high %v2623, %v2623
      %v2633 = vunpack.c.l.s4 1966171168
      %v2634 = vunpack.c.0.s8 %v2633
      %v2635 = vlaneseq
      %v2636 = vshrl.u32 %v2635, 7
      %v2637 = vsub.s32 %v2634, %v2636
      %v2638 = vrot.slane %v2596, %v2637
      %v2639 = vcombine.high %v2638, %v2638
      %v2641 = vunpack.c.l.s4 1966171168
      %v2642 = vunpack.c.0.s8 %v2641
      %v2643 = vlaneseq
      %v2644 = vshrl.u32 %v2643, 7
      %v2645 = vsub.s32 %v2642, %v2644
      %v2646 = vrot.slane %v2638, %v2645
      %v2648 = vunpack.c.l.s4 1966171168
      %v2649 = vunpack.c.0.s8 %v2648
      %v2650 = vlaneseq
      %v2651 = vshrl.u32 %v2650, 7
      %v2652 = vsub.s32 %v2649, %v2651
      %v2653 = vrot.slane %v2639, %v2652
      %v2654 = vcombine.high %v2646, %v2646
      %v2655 = vunpack.i.l.s16 %v2623
      %v2656 = vunpack.i.h.s16 %v2623
      %v2657 = vunpack.i.l.s16 %v2630
      %v2658 = vunpack.i.h.s16 %v2630
      %v2659 = vunpack.i.l.s16 %v2631
      %v2660 = vunpack.i.l.s16 %v2646
      %v2661 = vunpack.i.h.s16 %v2646
      %v2662 = vunpack.i.l.s16 %v2653
      %v2663 = vunpack.i.h.s16 %v2653
      %v2664 = vunpack.i.l.s16 %v2654
      %v2665 = vcombine.high %v2606, %v2606
      %v2667 = vunpack.c.l.s4 1966171168
      %v2668 = vunpack.c.0.s8 %v2667
      %v2669 = vlaneseq
      %v2670 = vshrl.u32 %v2669, 7
      %v2671 = vsub.s32 %v2668, %v2670
      %v2672 = vrot.slane %v2606, %v2671
      %v2674 = vunpack.c.l.s4 1966171168
      %v2675 = vunpack.c.0.s8 %v2674
      %v2676 = vlaneseq
      %v2677 = vshrl.u32 %v2676, 7
      %v2678 = vsub.s32 %v2675, %v2677
      %v2679 = vrot.slane %v2665, %v2678
      %v2680 = vcombine.high %v2672, %v2672
      %v2682 = vunpack.c.l.s4 1966171168
      %v2683 = vunpack.c.0.s8 %v2682
      %v2684 = vlaneseq
      %v2685 = vshrl.u32 %v2684, 7
      %v2686 = vsub.s32 %v2683, %v2685
      %v2687 = vrot.slane %v2672, %v2686
      %v2689 = vunpack.c.l.s4 1966171168
      %v2690 = vunpack.c.0.s8 %v2689
      %v2691 = vlaneseq
      %v2692 = vshrl.u32 %v2691, 7
      %v2693 = vsub.s32 %v2690, %v2692
      %v2694 = vrot.slane %v2679, %v2693
      %v2696 = vunpack.c.l.s4 1966171168
      %v2697 = vunpack.c.0.s8 %v2696
      %v2698 = vlaneseq
      %v2699 = vshrl.u32 %v2698, 7
      %v2700 = vsub.s32 %v2697, %v2699
      %v2701 = vrot.slane %v2680, %v2700
      %v2702 = vcombine.high %v2687, %v2687
      %v2703 = vcombine.high %v2701, %v2701
      %v2704 = vpack.i.b16 %v2656, %v2655
      %v2705 = vpack.i.b16 %v2658, %v2657
      %v2706 = vpack.i.b16 %v2660, %v2659
      %v2707 = vpack.i.b16 %v2662, %v2661
      %v2708 = vpack.i.b16 %v2664, %v2663
      %v2709 = vcombine.low %v2704, %v2705
      %v2710 = vcombine.low %v2706, %v2707
      %v2712 = vunpack.c.l.s4 1966171168
      %v2713 = vunpack.c.0.s8 %v2712
      %v2714 = vlaneseq
      %v2715 = vshrl.u32 %v2714, 7
      %v2716 = vsub.s32 %v2713, %v2715
      %v2717 = vrot.slane %v2709, %v2716
      %v2719 = vunpack.c.l.s4 1966171168
      %v2720 = vunpack.c.0.s8 %v2719
      %v2721 = vlaneseq
      %v2722 = vshrl.u32 %v2721, 7
      %v2723 = vsub.s32 %v2720, %v2722
      %v2724 = vrot.slane %v2710, %v2723
      %v2726 = vunpack.c.l.s4 1966171168
      %v2727 = vunpack.c.0.s8 %v2726
      %v2728 = vlaneseq
      %v2729 = vshrl.u32 %v2728, 7
      %v2730 = vsub.s32 %v2727, %v2729
      %v2731 = vrot.slane %v2708, %v2730
      %v2732 = vcombine.low %v2717, %v2724
      %v2734 = vunpack.c.l.s4 1966171168
      %v2735 = vunpack.c.0.s8 %v2734
      %v2736 = vlaneseq
      %v2737 = vshrl.u32 %v2736, 7
      %v2738 = vsub.s32 %v2735, %v2737
      %v2739 = vrot.slane %v2732, %v2738
      %v2741 = vunpack.c.l.s4 1966171168
      %v2742 = vunpack.c.0.s8 %v2741
      %v2743 = vlaneseq
      %v2744 = vshrl.u32 %v2743, 7
      %v2745 = vsub.s32 %v2742, %v2744
      %v2746 = vrot.slane %v2731, %v2745
      %v2747 = vcombine.low %v2739, %v2746
      %v2752 = vunpack.c.l.b16 %v2597
      %v2753 = vunpack.c.l.b16 %v2598
      %v2754 = vunpack.c.l.b16 %v2599
      %v2755 = vunpack.c.l.b16 %v2600
      %v2756 = vpack.c.b16 %v2753, %v2752
      %v2757 = vpack.c.b16 %v2755, %v2754
      %v2760 = vcombine.low %v2687, %v2701
      %v2761 = vcombine.low %v2702, %v2703
      %v2762 = vcombine.low %v2694, %v2687
      %v2763 = vcombine.low %v2701, %v2702
      %v2765 = vunpack.c.l.s4 1966171168
      %v2766 = vunpack.c.0.s8 %v2765
      %v2767 = vlaneseq
      %v2768 = vshrl.u32 %v2767, 7
      %v2769 = vsub.s32 %v2766, %v2768
      %v2770 = vrot.slane %v2760, %v2769
      %v2772 = vunpack.c.l.s4 1966171168
      %v2773 = vunpack.c.0.s8 %v2772
      %v2774 = vlaneseq
      %v2775 = vshrl.u32 %v2774, 7
      %v2776 = vsub.s32 %v2773, %v2775
      %v2777 = vrot.slane %v2761, %v2776
      %v2779 = vunpack.c.l.s4 1966171168
      %v2780 = vunpack.c.0.s8 %v2779
      %v2781 = vlaneseq
      %v2782 = vshrl.u32 %v2781, 7
      %v2783 = vsub.s32 %v2780, %v2782
      %v2784 = vrot.slane %v2762, %v2783
      %v2786 = vunpack.c.l.s4 1966171168
      %v2787 = vunpack.c.0.s8 %v2786
      %v2788 = vlaneseq
      %v2789 = vshrl.u32 %v2788, 7
      %v2790 = vsub.s32 %v2787, %v2789
      %v2791 = vrot.slane %v2763, %v2790
      %v2792 = vcombine.low %v2770, %v2777
      %v2793 = vcombine.low %v2784, %v2791
      %v2795 = vunpack.c.l.s4 1966171168
      %v2796 = vunpack.c.0.s8 %v2795
      %v2797 = vlaneseq
      %v2798 = vshrl.u32 %v2797, 7
      %v2799 = vsub.s32 %v2796, %v2798
      %v2800 = vrot.slane %v2792, %v2799
      %v2802 = vunpack.c.l.s4 1966171168
      %v2803 = vunpack.c.0.s8 %v2802
      %v2804 = vlaneseq
      %v2805 = vshrl.u32 %v2804, 7
      %v2806 = vsub.s32 %v2803, %v2805
      %v2807 = vrot.slane %v2793, %v2806
      %v2808 = vcombine.low %v2800, %v2807
      %v2809 = vcombine.low %v2703, %v2694
      %v2811 = vunpack.c.l.s4 1966171168
      %v2812 = vunpack.c.0.s8 %v2811
      %v2813 = vlaneseq
      %v2814 = vshrl.u32 %v2813, 7
      %v2815 = vsub.s32 %v2812, %v2814
      %v2816 = vrot.slane %v2809, %v2815
      %v2818 = vunpack.c.l.s4 1966171168
      %v2819 = vunpack.c.0.s8 %v2818
      %v2820 = vlaneseq
      %v2821 = vshrl.u32 %v2820, 7
      %v2822 = vsub.s32 %v2819, %v2821
      %v2823 = vrot.slane %v2816, %v2822
      %v2827 = vsel %vm996, %v2747, 0
      %2829 = vmatprep.subr.bf16.mxu0 0
      %2830 = vmatpush1.bf16.msra.mxu0 %v2756
      %2831 = vmatprep.subr.bf16.mxu0 0
      %2832 = vmatpush1.bf16.msra.mxu0 %v2757
      %2833 = vmatprep.subr.bf16.mxu0 0
      %2834 = vmatpush1.bf16.msra.mxu0 0
      %2835 = vmatprep.subr.bf16.mxu0 0
      %2836 = vmatpush1.bf16.msra.mxu0 0
      %2837 = vmatprep.subr.bf16.mxu0 0
      %2838 = vmatpush1.bf16.msra.mxu0 0
      %2839 = vmatprep.subr.bf16.mxu0 0
      %2840 = vmatpush1.bf16.msra.mxu0 0
      %2841 = vmatprep.subr.bf16.mxu0 0
      %2842 = vmatpush1.bf16.msra.mxu0 0
      %2843 = vmatprep.subr.bf16.mxu0 0
      %2844 = vmatpush1.bf16.msra.mxu0 0
      %2845 = vmatprep.subr.bf16.mxu0 0
      %2846 = vmatpush1.bf16.msra.mxu0 0
      %2847 = vmatprep.subr.bf16.mxu0 0
      %2848 = vmatpush1.bf16.msra.mxu0 0
      %2849 = vmatprep.subr.bf16.mxu0 0
      %2850 = vmatpush1.bf16.msra.mxu0 0
      %2851 = vmatprep.subr.bf16.mxu0 0
      %2852 = vmatpush1.bf16.msra.mxu0 0
      %2853 = vmatprep.subr.bf16.mxu0 0
      %2854 = vmatpush1.bf16.msra.mxu0 0
      %2855 = vmatprep.subr.bf16.mxu0 0
      %2856 = vmatpush1.bf16.msra.mxu0 0
      %2857 = vmatprep.subr.bf16.mxu0 0
      %2858 = vmatpush1.bf16.msra.mxu0 0
      %2859 = vmatprep.subr.bf16.mxu0 0
      %2860 = vmatpush1.bf16.msra.mxu0 0
      %2861 = vmatprep.mubr.bf16.mxu0 0
      %2862 = vmatmul.mubr.bf16.gmra.mrb[0].mxu0 %v2827
      %v2863 = vpop.f32.mrb[0].mxu0
      %v2864 = vadd.f32 %v2808, %v2863
      %v2865 = vpop.f32.mrb[0].mxu0
      %v2866 = vpop.f32.mrb[0].mxu0
      %v2867 = vadd.f32 %v2823, %v2866
      %v2868 = vpop.f32.mrb[0].mxu0
      %2869 = vdwg.mxu0
      %v2872 = vcombine.high %v2864, %v2864
      %v2874 = vunpack.c.l.s4 1966171168
      %v2875 = vunpack.c.0.s8 %v2874
      %v2876 = vlaneseq
      %v2877 = vshrl.u32 %v2876, 7
      %v2878 = vsub.s32 %v2875, %v2877
      %v2879 = vrot.slane %v2864, %v2878
      %v2881 = vunpack.c.l.s4 1966171168
      %v2882 = vunpack.c.0.s8 %v2881
      %v2883 = vlaneseq
      %v2884 = vshrl.u32 %v2883, 7
      %v2885 = vsub.s32 %v2882, %v2884
      %v2886 = vrot.slane %v2872, %v2885
      %v2887 = vcombine.high %v2879, %v2879
      %v2888 = vcombine.high %v2886, %v2886
      %v2890 = vunpack.c.l.s4 1966171168
      %v2891 = vunpack.c.0.s8 %v2890
      %v2892 = vlaneseq
      %v2893 = vshrl.u32 %v2892, 7
      %v2894 = vsub.s32 %v2891, %v2893
      %v2895 = vrot.slane %v2879, %v2894
      %v2897 = vunpack.c.l.s4 1966171168
      %v2898 = vunpack.c.0.s8 %v2897
      %v2899 = vlaneseq
      %v2900 = vshrl.u32 %v2899, 7
      %v2901 = vsub.s32 %v2898, %v2900
      %v2902 = vrot.slane %v2886, %v2901
      %v2904 = vunpack.c.l.s4 1966171168
      %v2905 = vunpack.c.0.s8 %v2904
      %v2906 = vlaneseq
      %v2907 = vshrl.u32 %v2906, 7
      %v2908 = vsub.s32 %v2905, %v2907
      %v2909 = vrot.slane %v2887, %v2908
      %v2911 = vunpack.c.l.s4 1966171168
      %v2912 = vunpack.c.0.s8 %v2911
      %v2913 = vlaneseq
      %v2914 = vshrl.u32 %v2913, 7
      %v2915 = vsub.s32 %v2912, %v2914
      %v2916 = vrot.slane %v2888, %v2915
      %v2917 = vcombine.high %v2895, %v2895
      %v2918 = vcombine.high %v2902, %v2902
      %v2919 = vcombine.high %v2909, %v2909
      %v2920 = vcombine.high %v2916, %v2916
      %v2922 = vunpack.c.l.s4 1966171168
      %v2923 = vunpack.c.0.s8 %v2922
      %v2924 = vlaneseq
      %v2925 = vshrl.u32 %v2924, 7
      %v2926 = vsub.s32 %v2923, %v2925
      %v2927 = vrot.slane %v2867, %v2926
      %v2928 = vcombine.high %v2927, %v2927
      %v2930 = vunpack.c.l.s4 1966171168
      %v2931 = vunpack.c.0.s8 %v2930
      %v2932 = vlaneseq
      %v2933 = vshrl.u32 %v2932, 7
      %v2934 = vsub.s32 %v2931, %v2933
      %v2935 = vrot.slane %v2927, %v2934
      %v2937 = vunpack.c.l.s4 1966171168
      %v2938 = vunpack.c.0.s8 %v2937
      %v2939 = vlaneseq
      %v2940 = vshrl.u32 %v2939, 7
      %v2941 = vsub.s32 %v2938, %v2940
      %v2942 = vrot.slane %v2928, %v2941
      %v2953 = vmul.f32 %v2895, 0.5
      %v2954 = vmul.f32 %v2909, 0.5
      %v2955 = vmul.f32 %v2917, 0.5
      %v2956 = vmul.f32 %v2919, 0.5
      %v2957 = vmul.f32 %v2902, 0.5
      %v2958 = vmul.f32 %v2916, 0.5
      %v2959 = vmul.f32 %v2918, 0.5
      %v2960 = vmul.f32 %v2920, 0.5
      %v2961 = vmul.f32 %v2935, 0.5
      %v2962 = vmul.f32 %v2942, 0.5
      %v2963 = vmul.f32 %v2895, 0.70710677
      %v2964 = vmul.f32 %v2909, 0.70710677
      %v2965 = vmul.f32 %v2917, 0.70710677
      %v2966 = vmul.f32 %v2919, 0.70710677
      %v2967 = vmul.f32 %v2902, 0.70710677
      %v2968 = vmul.f32 %v2916, 0.70710677
      %v2969 = vmul.f32 %v2918, 0.70710677
      %v2970 = vmul.f32 %v2920, 0.70710677
      %v2971 = vmul.f32 %v2935, 0.70710677
      %v2972 = vmul.f32 %v2942, 0.70710677
      %v2973 = verf.f32.pop %v2963
      %v2974 = verf.f32.pop %v2964
      %v2975 = verf.f32.pop %v2965
      %v2976 = verf.f32.pop %v2966
      %v2977 = verf.f32.pop %v2967
      %v2978 = verf.f32.pop %v2968
      %v2979 = verf.f32.pop %v2969
      %v2980 = verf.f32.pop %v2970
      %v2981 = verf.f32.pop %v2971
      %v2982 = verf.f32.pop %v2972
      %v2983 = vadd.f32 %v2973, 1.0
      %v2984 = vadd.f32 %v2974, 1.0
      %v2985 = vadd.f32 %v2975, 1.0
      %v2986 = vadd.f32 %v2976, 1.0
      %v2987 = vadd.f32 %v2977, 1.0
      %v2988 = vadd.f32 %v2978, 1.0
      %v2989 = vadd.f32 %v2979, 1.0
      %v2990 = vadd.f32 %v2980, 1.0
      %v2991 = vadd.f32 %v2981, 1.0
      %v2992 = vadd.f32 %v2982, 1.0
      %v2993 = vmul.f32 %v2953, %v2983
      %v2994 = vmul.f32 %v2954, %v2984
      %v2995 = vmul.f32 %v2955, %v2985
      %v2996 = vmul.f32 %v2956, %v2986
      %v2997 = vmul.f32 %v2957, %v2987
      %v2998 = vmul.f32 %v2958, %v2988
      %v2999 = vmul.f32 %v2959, %v2989
      %v3000 = vmul.f32 %v2960, %v2990
      %v3001 = vmul.f32 %v2961, %v2991
      %v3002 = vmul.f32 %v2962, %v2992
      %v3013 = vcombine.low %v2993, %v2994
      %v3014 = vcombine.low %v2995, %v2996
      %v3016 = vunpack.c.l.s4 1966171168
      %v3017 = vunpack.c.0.s8 %v3016
      %v3018 = vlaneseq
      %v3019 = vshrl.u32 %v3018, 7
      %v3020 = vsub.s32 %v3017, %v3019
      %v3021 = vrot.slane %v3013, %v3020
      %v3023 = vunpack.c.l.s4 1966171168
      %v3024 = vunpack.c.0.s8 %v3023
      %v3025 = vlaneseq
      %v3026 = vshrl.u32 %v3025, 7
      %v3027 = vsub.s32 %v3024, %v3026
      %v3028 = vrot.slane %v3014, %v3027
      %v3030 = vunpack.c.l.s4 1966171168
      %v3031 = vunpack.c.0.s8 %v3030
      %v3032 = vlaneseq
      %v3033 = vshrl.u32 %v3032, 7
      %v3034 = vsub.s32 %v3031, %v3033
      %v3035 = vrot.slane %v2997, %v3034
      %v3036 = vcombine.low %v3021, %v3028
      %v3038 = vunpack.c.l.s4 1966171168
      %v3039 = vunpack.c.0.s8 %v3038
      %v3040 = vlaneseq
      %v3041 = vshrl.u32 %v3040, 7
      %v3042 = vsub.s32 %v3039, %v3041
      %v3043 = vrot.slane %v3036, %v3042
      %v3045 = vunpack.c.l.s4 1966171168
      %v3046 = vunpack.c.0.s8 %v3045
      %v3047 = vlaneseq
      %v3048 = vshrl.u32 %v3047, 7
      %v3049 = vsub.s32 %v3046, %v3048
      %v3050 = vrot.slane %v3035, %v3049
      %v3051 = vcombine.low %v3043, %v3050
      %v3052 = vcombine.low %v2998, %v2999
      %v3053 = vcombine.low %v3000, %v3001
      %v3055 = vunpack.c.l.s4 1966171168
      %v3056 = vunpack.c.0.s8 %v3055
      %v3057 = vlaneseq
      %v3058 = vshrl.u32 %v3057, 7
      %v3059 = vsub.s32 %v3056, %v3058
      %v3060 = vrot.slane %v3052, %v3059
      %v3062 = vunpack.c.l.s4 1966171168
      %v3063 = vunpack.c.0.s8 %v3062
      %v3064 = vlaneseq
      %v3065 = vshrl.u32 %v3064, 7
      %v3066 = vsub.s32 %v3063, %v3065
      %v3067 = vrot.slane %v3053, %v3066
      %v3069 = vunpack.c.l.s4 1966171168
      %v3070 = vunpack.c.0.s8 %v3069
      %v3071 = vlaneseq
      %v3072 = vshrl.u32 %v3071, 7
      %v3073 = vsub.s32 %v3070, %v3072
      %v3074 = vrot.slane %v3002, %v3073
      %v3075 = vcombine.low %v3060, %v3067
      %v3077 = vunpack.c.l.s4 1966171168
      %v3078 = vunpack.c.0.s8 %v3077
      %v3079 = vlaneseq
      %v3080 = vshrl.u32 %v3079, 7
      %v3081 = vsub.s32 %v3078, %v3080
      %v3082 = vrot.slane %v3075, %v3081
      %v3084 = vunpack.c.l.s4 1966171168
      %v3085 = vunpack.c.0.s8 %v3084
      %v3086 = vlaneseq
      %v3087 = vshrl.u32 %v3086, 7
      %v3088 = vsub.s32 %v3085, %v3087
      %v3089 = vrot.slane %v3074, %v3088
      %v3090 = vcombine.low %v3082, %v3089
      %v3093 = vpack.c.bf16 %v3051, %v3051
      %v3094 = vpack.c.bf16 %v3090, %v3090
      %v3095 = vld [vmem:[%s696] sm:$0xf]
      %v3096 = vld [vmem:[%s696 + $0x4] sm:$0xf]
      %v3097 = vld [vmem:[%s696 + $0x8] sm:$0xf]
      %v3098 = vld [vmem:[%s696 + $0xc] sm:$0xf]
      %v3099 = vld [vmem:[%s696 + $0x10] sm:$0xf]
      %v3100 = vld [vmem:[%s696 + $0x14] sm:$0xf]
      %v3101 = vld [vmem:[%s696 + $0x18] sm:$0xf]
      %v3102 = vld [vmem:[%s696 + $0x1c] sm:$0xf]
      %v3103 = vld [vmem:[%s696 + $0x20] sm:$0xf]
      %v3104 = vld [vmem:[%s696 + $0x24] sm:$0xf]
      %v3105 = vld [vmem:[%s696 + $0x28] sm:$0xf]
      %v3106 = vld [vmem:[%s696 + $0x2c] sm:$0xf]
      %v3107 = vld [vmem:[%s696 + $0x30] sm:$0xf]
      %v3108 = vld [vmem:[%s696 + $0x34] sm:$0xf]
      %v3109 = vld [vmem:[%s696 + $0x38] sm:$0xf]
      %v3110 = vld [vmem:[%s696 + $0x3c] sm:$0xf]
      %v3111 = vld [vmem:[%s699] sm:$0x1]
      %v3113 = vlaneseq
      %v3114 = vshrl.u32 %v3113, 7
      %v3115 = vsub.s32 0, %v3114
      %v3116 = vrot.slane %v3111, %v3115
      %v3120 = vunpack.c.l.s4 1966171168
      %v3121 = vunpack.c.0.s8 %v3120
      %v3122 = vlaneseq
      %v3123 = vshrl.u32 %v3122, 7
      %v3124 = vsub.s32 %v3121, %v3123
      %v3125 = vrot.slane %v3093, %v3124
      %v3126 = vcombine.high %v3125, %v3125
      %v3128 = vunpack.c.l.s4 1966171168
      %v3129 = vunpack.c.0.s8 %v3128
      %v3130 = vlaneseq
      %v3131 = vshrl.u32 %v3130, 7
      %v3132 = vsub.s32 %v3129, %v3131
      %v3133 = vrot.slane %v3125, %v3132
      %v3135 = vunpack.c.l.s4 1966171168
      %v3136 = vunpack.c.0.s8 %v3135
      %v3137 = vlaneseq
      %v3138 = vshrl.u32 %v3137, 7
      %v3139 = vsub.s32 %v3136, %v3138
      %v3140 = vrot.slane %v3126, %v3139
      %v3141 = vcombine.high %v3133, %v3133
      %v3143 = vunpack.c.l.s4 1966171168
      %v3144 = vunpack.c.0.s8 %v3143
      %v3145 = vlaneseq
      %v3146 = vshrl.u32 %v3145, 7
      %v3147 = vsub.s32 %v3144, %v3146
      %v3148 = vrot.slane %v3094, %v3147
      %v3149 = vcombine.high %v3148, %v3148
      %v3151 = vunpack.c.l.s4 1966171168
      %v3152 = vunpack.c.0.s8 %v3151
      %v3153 = vlaneseq
      %v3154 = vshrl.u32 %v3153, 7
      %v3155 = vsub.s32 %v3152, %v3154
      %v3156 = vrot.slane %v3148, %v3155
      %v3158 = vunpack.c.l.s4 1966171168
      %v3159 = vunpack.c.0.s8 %v3158
      %v3160 = vlaneseq
      %v3161 = vshrl.u32 %v3160, 7
      %v3162 = vsub.s32 %v3159, %v3161
      %v3163 = vrot.slane %v3149, %v3162
      %v3164 = vcombine.high %v3156, %v3156
      %v3165 = vunpack.i.l.s16 %v3133
      %v3166 = vunpack.i.h.s16 %v3133
      %v3167 = vunpack.i.l.s16 %v3140
      %v3168 = vunpack.i.h.s16 %v3140
      %v3169 = vunpack.i.l.s16 %v3141
      %v3170 = vunpack.i.l.s16 %v3156
      %v3171 = vunpack.i.h.s16 %v3156
      %v3172 = vunpack.i.l.s16 %v3163
      %v3173 = vunpack.i.h.s16 %v3163
      %v3174 = vunpack.i.l.s16 %v3164
      %v3175 = vcombine.high %v3116, %v3116
      %v3177 = vunpack.c.l.s4 1966171168
      %v3178 = vunpack.c.0.s8 %v3177
      %v3179 = vlaneseq
      %v3180 = vshrl.u32 %v3179, 7
      %v3181 = vsub.s32 %v3178, %v3180
      %v3182 = vrot.slane %v3116, %v3181
      %v3184 = vunpack.c.l.s4 1966171168
      %v3185 = vunpack.c.0.s8 %v3184
      %v3186 = vlaneseq
      %v3187 = vshrl.u32 %v3186, 7
      %v3188 = vsub.s32 %v3185, %v3187
      %v3189 = vrot.slane %v3175, %v3188
      %v3190 = vcombine.high %v3182, %v3182
      %v3192 = vunpack.c.l.s4 1966171168
      %v3193 = vunpack.c.0.s8 %v3192
      %v3194 = vlaneseq
      %v3195 = vshrl.u32 %v3194, 7
      %v3196 = vsub.s32 %v3193, %v3195
      %v3197 = vrot.slane %v3182, %v3196
      %v3199 = vunpack.c.l.s4 1966171168
      %v3200 = vunpack.c.0.s8 %v3199
      %v3201 = vlaneseq
      %v3202 = vshrl.u32 %v3201, 7
      %v3203 = vsub.s32 %v3200, %v3202
      %v3204 = vrot.slane %v3189, %v3203
      %v3206 = vunpack.c.l.s4 1966171168
      %v3207 = vunpack.c.0.s8 %v3206
      %v3208 = vlaneseq
      %v3209 = vshrl.u32 %v3208, 7
      %v3210 = vsub.s32 %v3207, %v3209
      %v3211 = vrot.slane %v3190, %v3210
      %v3212 = vcombine.high %v3197, %v3197
      %v3213 = vcombine.high %v3211, %v3211
      %v3214 = vpack.i.b16 %v3166, %v3165
      %v3215 = vpack.i.b16 %v3168, %v3167
      %v3216 = vpack.i.b16 %v3170, %v3169
      %v3217 = vpack.i.b16 %v3172, %v3171
      %v3218 = vpack.i.b16 %v3174, %v3173
      %v3219 = vcombine.low %v3214, %v3215
      %v3220 = vcombine.low %v3216, %v3217
      %v3222 = vunpack.c.l.s4 1966171168
      %v3223 = vunpack.c.0.s8 %v3222
      %v3224 = vlaneseq
      %v3225 = vshrl.u32 %v3224, 7
      %v3226 = vsub.s32 %v3223, %v3225
      %v3227 = vrot.slane %v3219, %v3226
      %v3229 = vunpack.c.l.s4 1966171168
      %v3230 = vunpack.c.0.s8 %v3229
      %v3231 = vlaneseq
      %v3232 = vshrl.u32 %v3231, 7
      %v3233 = vsub.s32 %v3230, %v3232
      %v3234 = vrot.slane %v3220, %v3233
      %v3236 = vunpack.c.l.s4 1966171168
      %v3237 = vunpack.c.0.s8 %v3236
      %v3238 = vlaneseq
      %v3239 = vshrl.u32 %v3238, 7
      %v3240 = vsub.s32 %v3237, %v3239
      %v3241 = vrot.slane %v3218, %v3240
      %v3242 = vcombine.low %v3227, %v3234
      %v3244 = vunpack.c.l.s4 1966171168
      %v3245 = vunpack.c.0.s8 %v3244
      %v3246 = vlaneseq
      %v3247 = vshrl.u32 %v3246, 7
      %v3248 = vsub.s32 %v3245, %v3247
      %v3249 = vrot.slane %v3242, %v3248
      %v3251 = vunpack.c.l.s4 1966171168
      %v3252 = vunpack.c.0.s8 %v3251
      %v3253 = vlaneseq
      %v3254 = vshrl.u32 %v3253, 7
      %v3255 = vsub.s32 %v3252, %v3254
      %v3256 = vrot.slane %v3241, %v3255
      %v3257 = vcombine.low %v3249, %v3256
      %v3275 = vunpack.c.l.b16 %v3095
      %v3276 = vunpack.c.l.b16 %v3096
      %v3277 = vunpack.c.l.b16 %v3097
      %v3278 = vunpack.c.l.b16 %v3098
      %v3279 = vunpack.c.l.b16 %v3099
      %v3280 = vunpack.c.l.b16 %v3100
      %v3281 = vunpack.c.l.b16 %v3101
      %v3282 = vunpack.c.l.b16 %v3102
      %v3283 = vunpack.c.l.b16 %v3103
      %v3284 = vunpack.c.l.b16 %v3104
      %v3285 = vunpack.c.l.b16 %v3105
      %v3286 = vunpack.c.l.b16 %v3106
      %v3287 = vunpack.c.l.b16 %v3107
      %v3288 = vunpack.c.l.b16 %v3108
      %v3289 = vunpack.c.l.b16 %v3109
      %v3290 = vunpack.c.l.b16 %v3110
      %v3291 = vpack.c.b16 %v3276, %v3275
      %v3292 = vpack.c.b16 %v3278, %v3277
      %v3293 = vpack.c.b16 %v3280, %v3279
      %v3294 = vpack.c.b16 %v3282, %v3281
      %v3295 = vpack.c.b16 %v3284, %v3283
      %v3296 = vpack.c.b16 %v3286, %v3285
      %v3297 = vpack.c.b16 %v3288, %v3287
      %v3298 = vpack.c.b16 %v3290, %v3289
      %v3307 = vcombine.low %v3197, %v3211
      %v3308 = vcombine.low %v3212, %v3213
      %v3309 = vcombine.low %v3204, %v3197
      %v3310 = vcombine.low %v3211, %v3212
      %v3312 = vunpack.c.l.s4 1966171168
      %v3313 = vunpack.c.0.s8 %v3312
      %v3314 = vlaneseq
      %v3315 = vshrl.u32 %v3314, 7
      %v3316 = vsub.s32 %v3313, %v3315
      %v3317 = vrot.slane %v3307, %v3316
      %v3319 = vunpack.c.l.s4 1966171168
      %v3320 = vunpack.c.0.s8 %v3319
      %v3321 = vlaneseq
      %v3322 = vshrl.u32 %v3321, 7
      %v3323 = vsub.s32 %v3320, %v3322
      %v3324 = vrot.slane %v3308, %v3323
      %v3326 = vunpack.c.l.s4 1966171168
      %v3327 = vunpack.c.0.s8 %v3326
      %v3328 = vlaneseq
      %v3329 = vshrl.u32 %v3328, 7
      %v3330 = vsub.s32 %v3327, %v3329
      %v3331 = vrot.slane %v3309, %v3330
      %v3333 = vunpack.c.l.s4 1966171168
      %v3334 = vunpack.c.0.s8 %v3333
      %v3335 = vlaneseq
      %v3336 = vshrl.u32 %v3335, 7
      %v3337 = vsub.s32 %v3334, %v3336
      %v3338 = vrot.slane %v3310, %v3337
      %v3339 = vcombine.low %v3317, %v3324
      %v3340 = vcombine.low %v3331, %v3338
      %v3342 = vunpack.c.l.s4 1966171168
      %v3343 = vunpack.c.0.s8 %v3342
      %v3344 = vlaneseq
      %v3345 = vshrl.u32 %v3344, 7
      %v3346 = vsub.s32 %v3343, %v3345
      %v3347 = vrot.slane %v3339, %v3346
      %v3349 = vunpack.c.l.s4 1966171168
      %v3350 = vunpack.c.0.s8 %v3349
      %v3351 = vlaneseq
      %v3352 = vshrl.u32 %v3351, 7
      %v3353 = vsub.s32 %v3350, %v3352
      %v3354 = vrot.slane %v3340, %v3353
      %v3355 = vcombine.low %v3347, %v3354
      %v3356 = vcombine.low %v3213, %v3204
      %v3358 = vunpack.c.l.s4 1966171168
      %v3359 = vunpack.c.0.s8 %v3358
      %v3360 = vlaneseq
      %v3361 = vshrl.u32 %v3360, 7
      %v3362 = vsub.s32 %v3359, %v3361
      %v3363 = vrot.slane %v3356, %v3362
      %v3365 = vunpack.c.l.s4 1966171168
      %v3366 = vunpack.c.0.s8 %v3365
      %v3367 = vlaneseq
      %v3368 = vshrl.u32 %v3367, 7
      %v3369 = vsub.s32 %v3366, %v3368
      %v3370 = vrot.slane %v3363, %v3369
      %3373 = vmatprep.subr.bf16.mxu0 0
      %3374 = vmatpush1.bf16.msra.mxu0 %v3291
      %3375 = vmatprep.subr.bf16.mxu0 0
      %3376 = vmatpush1.bf16.msra.mxu0 %v3292
      %3377 = vmatprep.subr.bf16.mxu0 0
      %3378 = vmatpush1.bf16.msra.mxu0 %v3293
      %3379 = vmatprep.subr.bf16.mxu0 0
      %3380 = vmatpush1.bf16.msra.mxu0 %v3294
      %3381 = vmatprep.subr.bf16.mxu0 0
      %3382 = vmatpush1.bf16.msra.mxu0 %v3295
      %3383 = vmatprep.subr.bf16.mxu0 0
      %3384 = vmatpush1.bf16.msra.mxu0 %v3296
      %3385 = vmatprep.subr.bf16.mxu0 0
      %3386 = vmatpush1.bf16.msra.mxu0 %v3297
      %3387 = vmatprep.subr.bf16.mxu0 0
      %3388 = vmatpush1.bf16.msra.mxu0 %v3298
      %3389 = vmatprep.subr.bf16.mxu0 0
      %3390 = vmatpush1.bf16.msra.mxu0 0
      %3391 = vmatprep.subr.bf16.mxu0 0
      %3392 = vmatpush1.bf16.msra.mxu0 0
      %3393 = vmatprep.subr.bf16.mxu0 0
      %3394 = vmatpush1.bf16.msra.mxu0 0
      %3395 = vmatprep.subr.bf16.mxu0 0
      %3396 = vmatpush1.bf16.msra.mxu0 0
      %3397 = vmatprep.subr.bf16.mxu0 0
      %3398 = vmatpush1.bf16.msra.mxu0 0
      %3399 = vmatprep.subr.bf16.mxu0 0
      %3400 = vmatpush1.bf16.msra.mxu0 0
      %3401 = vmatprep.subr.bf16.mxu0 0
      %3402 = vmatpush1.bf16.msra.mxu0 0
      %3403 = vmatprep.subr.bf16.mxu0 0
      %3404 = vmatpush1.bf16.msra.mxu0 0
      %3405 = vmatprep.mubr.bf16.mxu0 0
      %3406 = vmatmul.mubr.bf16.gmra.mrb[0].mxu0 %v3257
      %v3407 = vpop.f32.mrb[0].mxu0
      %v3408 = vadd.f32 %v3355, %v3407
      %v3409 = vpop.f32.mrb[0].mxu0
      %v3410 = vpop.f32.mrb[0].mxu0
      %v3411 = vadd.f32 %v3370, %v3410
      %v3412 = vpop.f32.mrb[0].mxu0
      %3413 = vdwg.mxu0
      %v3416 = vcombine.high %v3408, %v3408
      %v3418 = vunpack.c.l.s4 1966171168
      %v3419 = vunpack.c.0.s8 %v3418
      %v3420 = vlaneseq
      %v3421 = vshrl.u32 %v3420, 7
      %v3422 = vsub.s32 %v3419, %v3421
      %v3423 = vrot.slane %v3408, %v3422
      %v3425 = vunpack.c.l.s4 1966171168
      %v3426 = vunpack.c.0.s8 %v3425
      %v3427 = vlaneseq
      %v3428 = vshrl.u32 %v3427, 7
      %v3429 = vsub.s32 %v3426, %v3428
      %v3430 = vrot.slane %v3416, %v3429
      %v3431 = vcombine.high %v3423, %v3423
      %v3432 = vcombine.high %v3430, %v3430
      %v3434 = vunpack.c.l.s4 1966171168
      %v3435 = vunpack.c.0.s8 %v3434
      %v3436 = vlaneseq
      %v3437 = vshrl.u32 %v3436, 7
      %v3438 = vsub.s32 %v3435, %v3437
      %v3439 = vrot.slane %v3423, %v3438
      %v3441 = vunpack.c.l.s4 1966171168
      %v3442 = vunpack.c.0.s8 %v3441
      %v3443 = vlaneseq
      %v3444 = vshrl.u32 %v3443, 7
      %v3445 = vsub.s32 %v3442, %v3444
      %v3446 = vrot.slane %v3430, %v3445
      %v3448 = vunpack.c.l.s4 1966171168
      %v3449 = vunpack.c.0.s8 %v3448
      %v3450 = vlaneseq
      %v3451 = vshrl.u32 %v3450, 7
      %v3452 = vsub.s32 %v3449, %v3451
      %v3453 = vrot.slane %v3431, %v3452
      %v3455 = vunpack.c.l.s4 1966171168
      %v3456 = vunpack.c.0.s8 %v3455
      %v3457 = vlaneseq
      %v3458 = vshrl.u32 %v3457, 7
      %v3459 = vsub.s32 %v3456, %v3458
      %v3460 = vrot.slane %v3432, %v3459
      %v3461 = vcombine.high %v3439, %v3439
      %v3462 = vcombine.high %v3446, %v3446
      %v3463 = vcombine.high %v3453, %v3453
      %v3464 = vcombine.high %v3460, %v3460
      %v3466 = vunpack.c.l.s4 1966171168
      %v3467 = vunpack.c.0.s8 %v3466
      %v3468 = vlaneseq
      %v3469 = vshrl.u32 %v3468, 7
      %v3470 = vsub.s32 %v3467, %v3469
      %v3471 = vrot.slane %v3411, %v3470
      %v3472 = vcombine.high %v3471, %v3471
      %v3474 = vunpack.c.l.s4 1966171168
      %v3475 = vunpack.c.0.s8 %v3474
      %v3476 = vlaneseq
      %v3477 = vshrl.u32 %v3476, 7
      %v3478 = vsub.s32 %v3475, %v3477
      %v3479 = vrot.slane %v3471, %v3478
      %v3481 = vunpack.c.l.s4 1966171168
      %v3482 = vunpack.c.0.s8 %v3481
      %v3483 = vlaneseq
      %v3484 = vshrl.u32 %v3483, 7
      %v3485 = vsub.s32 %v3482, %v3484
      %v3486 = vrot.slane %v3472, %v3485
      %v3487 = vcombine.low %v3439, %v3453
      %v3488 = vcombine.low %v3461, %v3463
      %v3490 = vunpack.c.l.s4 1966171168
      %v3491 = vunpack.c.0.s8 %v3490
      %v3492 = vlaneseq
      %v3493 = vshrl.u32 %v3492, 7
      %v3494 = vsub.s32 %v3491, %v3493
      %v3495 = vrot.slane %v3487, %v3494
      %v3497 = vunpack.c.l.s4 1966171168
      %v3498 = vunpack.c.0.s8 %v3497
      %v3499 = vlaneseq
      %v3500 = vshrl.u32 %v3499, 7
      %v3501 = vsub.s32 %v3498, %v3500
      %v3502 = vrot.slane %v3488, %v3501
      %v3504 = vunpack.c.l.s4 1966171168
      %v3505 = vunpack.c.0.s8 %v3504
      %v3506 = vlaneseq
      %v3507 = vshrl.u32 %v3506, 7
      %v3508 = vsub.s32 %v3505, %v3507
      %v3509 = vrot.slane %v3446, %v3508
      %v3510 = vcombine.low %v3495, %v3502
      %v3512 = vunpack.c.l.s4 1966171168
      %v3513 = vunpack.c.0.s8 %v3512
      %v3514 = vlaneseq
      %v3515 = vshrl.u32 %v3514, 7
      %v3516 = vsub.s32 %v3513, %v3515
      %v3517 = vrot.slane %v3510, %v3516
      %v3519 = vunpack.c.l.s4 1966171168
      %v3520 = vunpack.c.0.s8 %v3519
      %v3521 = vlaneseq
      %v3522 = vshrl.u32 %v3521, 7
      %v3523 = vsub.s32 %v3520, %v3522
      %v3524 = vrot.slane %v3509, %v3523
      %v3525 = vcombine.low %v3517, %v3524
      %v3526 = vcombine.low %v3460, %v3462
      %v3527 = vcombine.low %v3464, %v3479
      %v3529 = vunpack.c.l.s4 1966171168
      %v3530 = vunpack.c.0.s8 %v3529
      %v3531 = vlaneseq
      %v3532 = vshrl.u32 %v3531, 7
      %v3533 = vsub.s32 %v3530, %v3532
      %v3534 = vrot.slane %v3526, %v3533
      %v3536 = vunpack.c.l.s4 1966171168
      %v3537 = vunpack.c.0.s8 %v3536
      %v3538 = vlaneseq
      %v3539 = vshrl.u32 %v3538, 7
      %v3540 = vsub.s32 %v3537, %v3539
      %v3541 = vrot.slane %v3527, %v3540
      %v3543 = vunpack.c.l.s4 1966171168
      %v3544 = vunpack.c.0.s8 %v3543
      %v3545 = vlaneseq
      %v3546 = vshrl.u32 %v3545, 7
      %v3547 = vsub.s32 %v3544, %v3546
      %v3548 = vrot.slane %v3486, %v3547
      %v3549 = vcombine.low %v3534, %v3541
      %v3551 = vunpack.c.l.s4 1966171168
      %v3552 = vunpack.c.0.s8 %v3551
      %v3553 = vlaneseq
      %v3554 = vshrl.u32 %v3553, 7
      %v3555 = vsub.s32 %v3552, %v3554
      %v3556 = vrot.slane %v3549, %v3555
      %v3558 = vunpack.c.l.s4 1966171168
      %v3559 = vunpack.c.0.s8 %v3558
      %v3560 = vlaneseq
      %v3561 = vshrl.u32 %v3560, 7
      %v3562 = vsub.s32 %v3559, %v3561
      %v3563 = vrot.slane %v3548, %v3562
      %v3564 = vcombine.low %v3556, %v3563
      %v3567 = vadd.f32 %v2549, %v3525
      %v3568 = vadd.f32 %v2550, %v3564
      %3569 = vst.msk [vmem:[#allocation2] sm:$0x1f] %vm721, %v3567
      %3570 = vst.msk [vmem:[#allocation2 + $0x8] sm:$0x1f] %vm721, %v3568
      %v3571 = vld [vmem:[%s13] sm:$0x1]
      %v3572 = vld [vmem:[%s14] sm:$0x1]
      %v3575 = vrot.slane %v3568, 7
      %vm3576 = vcmask 1041409
      %v3577 = vsel %vm3576, %v3575, %v3567
      %vm3579 = vcmask 254976
      %v3580 = vsel %vm3579, %v3577, 0.0
      %3581 = vadd.xlane.f32.xlu0 %v3580
      %v3582 = vpop.xlane.xlu0 %3581
      %v3583 = vmul.f32 %v3582, %v728
      %v3585 = vrot.slane %v3583, 1
      %v3588 = vsub.f32 %v3567, %v3583
      %v3589 = vsub.f32 %v3568, %v3585
      %v3590 = vmul.f32 %v3588, %v3588
      %v3591 = vmul.f32 %v3589, %v3589
      %v3594 = vrot.slane %v3591, 7
      %v3595 = vsel %vm3576, %v3594, %v3590
      %v3597 = vsel %vm3579, %v3595, 0.0
      %3598 = vadd.xlane.f32.xlu0 %v3597
      %v3599 = vpop.xlane.xlu0 %3598
      %v3600 = vmul.f32 %v3599, %v728
      %v3601 = vadd.f32 %v3600, 1e-06
      %v3602 = vrsqrt.pop %v3601
      %v3604 = vrot.slane %v3602, 1
      %v3607 = vmul.f32 %v3588, %v3602
      %v3608 = vmul.f32 %v3589, %v3604
      %v3610 = vlaneseq
      %v3611 = vshrl.u32 %v3610, 7
      %v3612 = vsub.s32 0, %v3611
      %v3613 = vrot.slane %v3571, %v3612
      %v3615 = vmul.f32 %v3607, %v3613
      %v3616 = vmul.f32 %v3608, %v3613
      %v3618 = vlaneseq
      %v3619 = vshrl.u32 %v3618, 7
      %v3620 = vsub.s32 0, %v3619
      %v3621 = vrot.slane %v3572, %v3620
      %v3623 = vadd.f32 %v3615, %v3621
      %v3624 = vadd.f32 %v3616, %v3621
      %v3627 = vrot.slane %v3624, 7
      %v3628 = vsel %vm3576, %v3627, %v3623
      %3630 = vst.msk [vmem:[%s706] sm:$0x3] %vm3579, %v3628
      %p3631 = scmp.lt.s32.totalorder %s31, 3
      %s3632 = scalar_select %p3631, %s31, 3
      %p3633 = scmp.lt.s32.totalorder %s30, 0
      %s3634 = scalar_select %p3633, %s30, 0
      %s3635 = sadd.s32 %s3634, %s3632
      %s3636 = smul.addr %s3635, 2
      %s3637 = scalar_lea.vmem %s15, %s3636
      // Predicated region
      $region85: #{dino_linear_eval_forward.4} parent=79 // pred_check
        %p3638 = pneg %p438
      $region86: #{dino_linear_eval_forward.4} parent=79 // pred_check_branch
        %3640 = sbr.rel (%p3638) target = $region88
      $region87: #{dino_linear_eval_forward.4} parent=79 // pred_region
        _
      $region88: #{dino_linear_eval_forward.4} parent=79 // pred_fallthru
        _
    $region80: #{dino_linear_eval_forward.4} parent=5 // pred_fallthru
      _
    %p3641 = scmp.le.s32.totalorder 2, %s21
    // Predicated region
    $region89: #{dino_linear_eval_forward.4} parent=5 // pred_check
      %p3642 = pneg %p3641
    $region90: #{dino_linear_eval_forward.4} parent=5 // pred_check_branch
      %3644 = sbr.rel (%p3642) target = $region92
    $region91: #{dino_linear_eval_forward.4} parent=5 // pred_region
      %s3645 = ssub.s32 %s21, 2
      // Predicated region
      $region93: #{dino_linear_eval_forward.4} parent=91 // pred_check
        %p3646 = pneg %p444
      $region94: #{dino_linear_eval_forward.4} parent=91 // pred_check_branch
        %3648 = sbr.rel (%p3646) target = $region96
      $region95: #{dino_linear_eval_forward.4} parent=91 // pred_region
        %p3649 = scmp.lt.s32.totalorder %s33, 3
        %s3650 = scalar_select %p3649, %s33, 3
        %p3651 = scmp.lt.s32.totalorder %s32, 0
        %s3652 = scalar_select %p3651, %s32, 0
        %s3653 = sadd.s32 %s3652, %s3650
        %s3654 = smul.addr %s3653, 2
        %s3655 = scalar_lea.vmem %s15, %s3654
      $region96: #{dino_linear_eval_forward.4} parent=91 // pred_fallthru
        _
    $region92: #{dino_linear_eval_forward.4} parent=5 // pred_fallthru
      _
  $region6: #{dino_linear_eval_forward.4} parent=0 // loop_footer
    %s25 = sadd.s32 1, %s21
  $region7: #{dino_linear_eval_forward.4} parent=0 // loop_footer_branch
    %20 = sbr.rel target = $region3
  $region8: #{dino_linear_eval_forward.4} parent=0 // loop_exit
    _

</llo_original>
